<compile_context>
chip_gen: v6e
topology: v6e:2x2x1
jax: 0.10.0
libtpu: 0.0.40
codegen_flags: <defaults>
</compile_context>

<pallas_src>
import math

import jax
import jax.numpy as jnp
from jax import lax
from jax.experimental import pallas as pl
from jax.experimental.pallas import tpu as pltpu


def _round_up(a, m):
    return -(-a // m) * m


def _softmax(v):
    m = jnp.max(v, axis=-1, keepdims=True)
    e = jnp.exp(v - m)
    return e * pl.reciprocal(jnp.sum(e, axis=-1, keepdims=True), approx=True)


def _decoder_kernel(dec_ref, h0_ref, enc_ref, amask_ref, onehot_ref,
                    emb_ref, embt_ref, vbias_ref,
                    wi_ref, wh_ref, bi_ref, bh_ref, wg_ref, wgb_ref,
                    out_ref, h_state, w_state):
    j = pl.program_id(0)          # n_update slot index (outer, slow)
    k = pl.program_id(1)          # decode step (inner, fast)
    Hp = h0_ref.shape[-1]
    Vp = embt_ref.shape[-1]

    # GRU hidden persists across slots and steps (torch threads `hidden` through).
    @pl.when(jnp.logical_and(j == 0, k == 0))
    def _():
        h_state[...] = h0_ref[...]

    # Slot input vector; dropout == identity in eval mode.
    @pl.when(k == 0)
    def _():
        w_state[...] = dec_ref[0]

    w = w_state[...]                  # (Bp, Hp) f32
    h = h_state[...]                  # (Bp, Hp) f32
    w16 = w.astype(jnp.bfloat16)
    h16 = h.astype(jnp.bfloat16)

    # ---- GRU cell, gates fused into two MXU matmuls (torch gate order r, z, n) ----
    gi = jnp.dot(w16, wi_ref[...], preferred_element_type=jnp.float32) + bi_ref[...]
    gh = jnp.dot(h16, wh_ref[...], preferred_element_type=jnp.float32) + bh_ref[...]
    r = jax.nn.sigmoid(gi[:, :Hp] + gh[:, :Hp])
    z = jax.nn.sigmoid(gi[:, Hp:2 * Hp] + gh[:, Hp:2 * Hp])
    n = jnp.tanh(gi[:, 2 * Hp:] + r * gh[:, 2 * Hp:])
    h_new = (1.0 - z) * n + z * h                                        # (Bp, Hp) f32
    h_new16 = h_new.astype(jnp.bfloat16)

    enc = enc_ref[...]                                                   # (Bp, S, Hp) bf16

    # ---- attention over encoder states (additive pad mask, no compare/select) ----
    attn_e = jnp.einsum('bqh,bsh->bqs', h_new16[:, None, :], enc,
                        preferred_element_type=jnp.float32)[:, 0, :] + amask_ref[...]
    attn_history = _softmax(attn_e)                                      # (Bp, S) f32
    ah16 = attn_history.astype(jnp.bfloat16)[:, None, :]                 # (Bp, 1, S)

    # ---- attention over vocabulary ----
    attn_v = jnp.dot(h_new16, embt_ref[...],
                     preferred_element_type=jnp.float32) + vbias_ref[...]
    attn_vocab = _softmax(attn_v)                                        # (Bp, Vp) f32

    # ---- context & copy distribution (MXU) ----
    context = jnp.einsum('bqs,bsh->bqh', ah16, enc,
                         preferred_element_type=jnp.float32)[:, 0, :]    # (Bp, Hp)
    p_ctx = jnp.einsum('bqs,bsv->bqv', ah16, onehot_ref[...],
                       preferred_element_type=jnp.float32)[:, 0, :]      # (Bp, Vp)

    # ---- p_gen: three VPU dot-products against split w_gen rows (no concat / MXU) ----
    wg = wg_ref[...]                                                     # (3, Hp) f32
    logit = (jnp.sum(w * wg[0:1, :], axis=-1, keepdims=True)
             + jnp.sum(h_new * wg[1:2, :], axis=-1, keepdims=True)
             + jnp.sum(context * wg[2:3, :], axis=-1, keepdims=True)
             + wgb_ref[0, 0])
    p_gen = jax.nn.sigmoid(logit)                                        # (Bp, 1)

    p_final = p_gen * attn_vocab + (1.0 - p_gen) * p_ctx                 # (Bp, Vp)
    out_ref[0, 0, :, :] = p_final

    # ---- greedy argmax + embedding lookup feeding the next decode step ----
    vi = lax.broadcasted_iota(jnp.int32, (1, Vp), 1)                     # cheap (1, Vp) iota
    mx = jnp.max(p_final, axis=-1, keepdims=True)
    idx = jnp.min(jnp.where(p_final == mx, vi, Vp), axis=-1, keepdims=True)
    onehot_idx = (vi == idx).astype(jnp.bfloat16)                        # (Bp, Vp)
    w_next = jnp.dot(onehot_idx, emb_ref[...], preferred_element_type=jnp.float32)

    h_state[...] = h_new
    w_state[...] = w_next


def decoder_forward(params, x, decoder_input, encoder_output, hidden, max_len):
    B, S = x.shape
    _, N, H = decoder_input.shape
    V = params["embed"].shape[0]

    Bp = _round_up(max(B, 8), 8)       # sublane-aligned batch
    Vp = _round_up(V, 128)             # lane-dense vocab
    Hp = _round_up(H, 128)             # lane-aligned hidden (gate slices on vreg bounds)
    f32, bf16 = jnp.float32, jnp.bfloat16

    def pad_batch(a):
        pad = [(0, Bp - B)] + [(0, 0)] * (a.ndim - 1)
        return jnp.pad(a, pad)

    def pad_last(a, target):
        pad = [(0, 0)] * (a.ndim - 1) + [(0, target - a.shape[-1])]
        return jnp.pad(a, pad)

    x_p = pad_batch(x.astype(jnp.int32))                                       # (Bp, S)
    enc_p = pad_last(pad_batch(encoder_output.astype(f32)), Hp).astype(bf16)   # (Bp, S, Hp)
    dec_p = jnp.transpose(pad_last(pad_batch(decoder_input.astype(f32)), Hp),
                          (1, 0, 2))                                           # (N, Bp, Hp)
    h0_p = pad_last(pad_batch(hidden[0].astype(f32)), Hp)                      # (Bp, Hp)

    amask = (x_p == 0).astype(f32) * (-1000000000.0)                           # (Bp, S)
    onehot_x = (x_p[:, :, None] ==
                jnp.arange(Vp, dtype=jnp.int32)[None, None, :]).astype(bf16)   # (Bp, S, Vp)

    emb_p = jnp.pad(params["embed"].astype(f32), ((0, Vp - V), (0, Hp - H)))   # (Vp, Hp)
    emb_bf = emb_p.astype(bf16)
    embt_bf = emb_p.T.astype(bf16)                                             # (Hp, Vp)
    vbias = jnp.where(jnp.arange(Vp) < V, 0.0, -1e9).astype(f32)[None, :]      # (1, Vp)

    def pad_gate_mat(wt):   # torch (3H, H), gates [r|z|n] -> (Hp, 3Hp), per-gate padded
        blocks = [jnp.pad(wt[g * H:(g + 1) * H, :].T,
                          ((0, Hp - H), (0, Hp - H))) for g in range(3)]
        return jnp.concatenate(blocks, axis=1)

    def pad_gate_bias(b):   # (3H,) -> (1, 3Hp)
        blocks = [jnp.pad(b[g * H:(g + 1) * H], (0, Hp - H)) for g in range(3)]
        return jnp.concatenate(blocks)[None, :]

    wi_cat = pad_gate_mat(params["w_ih"].astype(f32)).astype(bf16)             # (Hp, 3Hp)
    wh_cat = pad_gate_mat(params["w_hh"].astype(f32)).astype(bf16)             # (Hp, 3Hp)
    bi = pad_gate_bias(params["b_ih"].astype(f32))                             # (1, 3Hp)
    bh = pad_gate_bias(params["b_hh"].astype(f32))                             # (1, 3Hp)

    wg_flat = params["wg_w"].astype(f32).reshape(3 * H)                        # [w | h | ctx]
    wg = jnp.stack([jnp.pad(wg_flat[g * H:(g + 1) * H], (0, Hp - H))
                    for g in range(3)], axis=0)                                # (3, Hp)
    wgb = params["wg_b"].astype(f32).reshape(1, 1)                             # (1, 1)

    inputs = (dec_p, h0_p, enc_p, amask, onehot_x, emb_bf, embt_bf, vbias,
              wi_cat, wh_cat, bi, bh, wg, wgb)

    # Rough resident-VMEM budget: grid-invariant blocks single-buffered, the per-slot
    # decoder_input block and the per-step output block double-buffered, plus scratch.
    def nbytes(a):
        return math.prod(a.shape) * a.dtype.itemsize
    est = (sum(nbytes(a) for a in inputs[1:])
           + 2 * Bp * Hp * 4            # decoder_input block (double buffered)
           + 2 * Bp * Vp * 4            # per-step output block (double buffered)
           + 2 * Bp * Hp * 4)           # h / w scratch
    vmem_limit = int(min(100 * 1024 * 1024, max(32 * 1024 * 1024, 2 * est)))

    def run(single_buffer_constants):
        def const_spec(shape):
            nz = (0,) * len(shape)
            if single_buffer_constants:
                return pl.BlockSpec(shape, lambda j, k, _nz=nz: _nz,
                                    pipeline_mode=pl.Buffered(1))
            return pl.BlockSpec(shape, lambda j, k, _nz=nz: _nz)

        in_specs = [
            pl.BlockSpec((1, Bp, Hp), lambda j, k: (j, 0, 0)),   # decoder_input slot j
            const_spec((Bp, Hp)),            # h0
            const_spec((Bp, S, Hp)),         # encoder output
            const_spec((Bp, S)),             # additive pad mask
            const_spec((Bp, S, Vp)),         # one-hot(x)
            const_spec((Vp, Hp)),            # embedding
            const_spec((Hp, Vp)),            # embedding^T
            const_spec((1, Vp)),             # vocab-padding bias
            const_spec((Hp, 3 * Hp)),        # W_ih^T  [r|z|n]
            const_spec((Hp, 3 * Hp)),        # W_hh^T
            const_spec((1, 3 * Hp)),         # b_ih
            const_spec((1, 3 * Hp)),         # b_hh
            const_spec((3, Hp)),             # w_gen rows [w|h|ctx]
            const_spec((1, 1)),              # w_gen bias
        ]
        out_spec = pl.BlockSpec((1, 1, Bp, Vp), lambda j, k: (j, k, 0, 0))

        out = pl.pallas_call(
            _decoder_kernel,
            out_shape=jax.ShapeDtypeStruct((N, max_len, Bp, Vp), jnp.float32),
            grid_spec=pltpu.PrefetchScalarGridSpec(
                num_scalar_prefetch=0,
                grid=(N, max_len),
                in_specs=in_specs,
                out_specs=out_spec,
                scratch_shapes=[pltpu.VMEM((Bp, Hp), jnp.float32),   # GRU hidden carry
                                pltpu.VMEM((Bp, Hp), jnp.float32)],  # fed-back embedding
            ),
            compiler_params=pltpu.CompilerParams(
                dimension_semantics=("arbitrary", "arbitrary"),  # recurrence over (j, k)
                vmem_limit_bytes=vmem_limit),
        )(*inputs)
        return jax.block_until_ready(out)

    try:
        out = run(single_buffer_constants=hasattr(pl, "Buffered"))
    except Exception:
        # pipeline_mode=pl.Buffered(1) not supported by this JAX build: use defaults.
        out = run(single_buffer_constants=False)

    # (N, L, Bp, Vp) -> strip padding -> (B, N, L, V) == torch transpose(0, 1)
    return jnp.transpose(out[:, :, :B, :V], (2, 0, 1, 3))


if __name__ == "__main__":
    B, S, H, V, N, L = 2, 8, 32, 64, 3, 4   # batch, seq, hidden, vocab, n_update, max_len
    initializer_range = 0.02

    key = jax.random.PRNGKey(0)
    keys = jax.random.split(key, 10)

    params = {
        "embed": jax.random.normal(keys[0], (V, H), jnp.float32) * 0.1,
        "w_ih":  jax.random.normal(keys[1], (3 * H, H), jnp.float32) * initializer_range,
        "w_hh":  jax.random.normal(keys[2], (3 * H, H), jnp.float32) * initializer_range,
        "b_ih":  jax.random.uniform(keys[3], (3 * H,), jnp.float32, -0.1, 0.1),
        "b_hh":  jax.random.uniform(keys[4], (3 * H,), jnp.float32, -0.1, 0.1),
        "wg_w":  jax.random.normal(keys[5], (1, 3 * H), jnp.float32) * 0.1,
        "wg_b":  jnp.zeros((1,), jnp.float32),
    }

    x = jax.random.randint(keys[6], (B, S), 1, V).astype(jnp.int32)
    x = x.at[:, -2:].set(0)   # pad tail tokens (pad_idx = 0) to exercise the mask
    decoder_input = jax.random.normal(keys[7], (B, N, H), jnp.float32)
    encoder_output = jax.random.normal(keys[8], (B, S, H), jnp.float32)
    hidden = jax.random.normal(keys[9], (1, B, H), jnp.float32)

    out = decoder_forward(params, x, decoder_input, encoder_output, hidden, L)
    out = jax.block_until_ready(out)

    assert out.shape == (B, N, L, V), out.shape
    assert bool(jnp.all(jnp.isfinite(out)))
    # p_final is a convex combination of two (near-)normalized distributions;
    # bf16 operands + approx reciprocal leave a few-1e-3 slack in the row sums.
    assert bool(jnp.allclose(jnp.sum(out, axis=-1), 1.0, atol=1e-2))
    print("KERNEL_OK")
</pallas_src>

<mosaic_0001>
module attributes {stable_mosaic.version = 11 : i64} {
  func.func @_decoder_kernel(%arg0: i32, %arg1: i32, %arg2: memref<1x8x128xf32, #tpu.memory_space<vmem>>, %arg3: memref<8x128xf32, #tpu.memory_space<vmem>>, %arg4: memref<8x8x128xbf16, #tpu.memory_space<vmem>>, %arg5: memref<8x8xf32, #tpu.memory_space<vmem>>, %arg6: memref<8x8x128xbf16, #tpu.memory_space<vmem>>, %arg7: memref<128x128xbf16, #tpu.memory_space<vmem>>, %arg8: memref<128x128xbf16, #tpu.memory_space<vmem>>, %arg9: memref<1x128xf32, #tpu.memory_space<vmem>>, %arg10: memref<128x384xbf16, #tpu.memory_space<vmem>>, %arg11: memref<128x384xbf16, #tpu.memory_space<vmem>>, %arg12: memref<1x384xf32, #tpu.memory_space<vmem>>, %arg13: memref<1x384xf32, #tpu.memory_space<vmem>>, %arg14: memref<3x128xf32, #tpu.memory_space<vmem>>, %arg15: memref<1x1xf32, #tpu.memory_space<vmem>>, %arg16: memref<1x1x8x128xf32, #tpu.memory_space<vmem>>, %arg17: memref<8x128xf32, #tpu.memory_space<vmem>>, %arg18: memref<8x128xf32, #tpu.memory_space<vmem>>) attributes {dimension_semantics = [#tpu.dimension_semantics<arbitrary>, #tpu.dimension_semantics<arbitrary>], iteration_bounds = array<i64: 3, 4>, scalar_prefetch = 0 : i64, scratch_operands = 2 : i64, tpu.core_type = #tpu.core_type<tc>, window_params = [{transform_indices = @transform_0, window_bounds = array<i64: 1, 8, 128>}, {pipeline_mode = #tpu.pipeline_mode<synchronous>, transform_indices = @transform_1, window_bounds = array<i64: 8, 128>}, {pipeline_mode = #tpu.pipeline_mode<synchronous>, transform_indices = @transform_2, window_bounds = array<i64: 8, 8, 128>}, {pipeline_mode = #tpu.pipeline_mode<synchronous>, transform_indices = @transform_3, window_bounds = array<i64: 8, 8>}, {pipeline_mode = #tpu.pipeline_mode<synchronous>, transform_indices = @transform_4, window_bounds = array<i64: 8, 8, 128>}, {pipeline_mode = #tpu.pipeline_mode<synchronous>, transform_indices = @transform_5, window_bounds = array<i64: 128, 128>}, {pipeline_mode = #tpu.pipeline_mode<synchronous>, transform_indices = @transform_6, window_bounds = array<i64: 128, 128>}, {pipeline_mode = #tpu.pipeline_mode<synchronous>, transform_indices = @transform_7, window_bounds = array<i64: 1, 128>}, {pipeline_mode = #tpu.pipeline_mode<synchronous>, transform_indices = @transform_8, window_bounds = array<i64: 128, 384>}, {pipeline_mode = #tpu.pipeline_mode<synchronous>, transform_indices = @transform_9, window_bounds = array<i64: 128, 384>}, {pipeline_mode = #tpu.pipeline_mode<synchronous>, transform_indices = @transform_10, window_bounds = array<i64: 1, 384>}, {pipeline_mode = #tpu.pipeline_mode<synchronous>, transform_indices = @transform_11, window_bounds = array<i64: 1, 384>}, {pipeline_mode = #tpu.pipeline_mode<synchronous>, transform_indices = @transform_12, window_bounds = array<i64: 3, 128>}, {pipeline_mode = #tpu.pipeline_mode<synchronous>, transform_indices = @transform_13, window_bounds = array<i64: 1, 1>}, {transform_indices = @transform_14, window_bounds = array<i64: 1, 1, 8, 128>}]} {
    %c0_i32 = arith.constant 0 : i32
    %0 = arith.cmpi eq, %arg0, %c0_i32 : i32
    %c0_i32_0 = arith.constant 0 : i32
    %1 = arith.cmpi eq, %arg1, %c0_i32_0 : i32
    %2 = arith.andi %0, %1 : i1
    %3 = arith.extui %2 : i1 to i32
    %c0_i32_1 = arith.constant 0 : i32
    %4 = arith.cmpi ne, %3, %c0_i32_1 : i32
    scf.if %4 {
      %c0_61 = arith.constant 0 : index
      %c0_62 = arith.constant 0 : index
      %145 = vector.load %arg3[%c0_61, %c0_62] : memref<8x128xf32, #tpu.memory_space<vmem>>, vector<8x128xf32>
      %c0_63 = arith.constant 0 : index
      %c0_64 = arith.constant 0 : index
      %146 = vector.load %arg17[%c0_63, %c0_64] : memref<8x128xf32, #tpu.memory_space<vmem>>, vector<8x128xf32>
      tpu.vector_store %arg17[%c0_63, %c0_64], %145 {strides = array<i32>} : memref<8x128xf32, #tpu.memory_space<vmem>>, vector<8x128xf32>,
    } else {
    }
    %c0_i32_2 = arith.constant 0 : i32
    %5 = arith.cmpi eq, %arg1, %c0_i32_2 : i32
    %6 = arith.extui %5 : i1 to i32
    %c0_i32_3 = arith.constant 0 : i32
    %7 = arith.cmpi ne, %6, %c0_i32_3 : i32
    scf.if %7 {
      %c0_61 = arith.constant 0 : index
      %c0_62 = arith.constant 0 : index
      %c0_63 = arith.constant 0 : index
      %145 = vector.load %arg2[%c0_61, %c0_62, %c0_63] : memref<1x8x128xf32, #tpu.memory_space<vmem>>, vector<1x8x128xf32>
      %146 = vector.shape_cast %145 : vector<1x8x128xf32> to vector<8x128xf32>
      %c0_64 = arith.constant 0 : index
      %c0_65 = arith.constant 0 : index
      %147 = vector.load %arg18[%c0_64, %c0_65] : memref<8x128xf32, #tpu.memory_space<vmem>>, vector<8x128xf32>
      tpu.vector_store %arg18[%c0_64, %c0_65], %146 {strides = array<i32>} : memref<8x128xf32, #tpu.memory_space<vmem>>, vector<8x128xf32>,
    } else {
    }
    %c0 = arith.constant 0 : index
    %c0_4 = arith.constant 0 : index
    %8 = vector.load %arg18[%c0, %c0_4] : memref<8x128xf32, #tpu.memory_space<vmem>>, vector<8x128xf32>
    %c0_5 = arith.constant 0 : index
    %c0_6 = arith.constant 0 : index
    %9 = vector.load %arg17[%c0_5, %c0_6] : memref<8x128xf32, #tpu.memory_space<vmem>>, vector<8x128xf32>
    %10 = arith.truncf %8 : vector<8x128xf32> to vector<8x128xbf16>
    %11 = arith.truncf %9 : vector<8x128xf32> to vector<8x128xbf16>
    %c0_7 = arith.constant 0 : index
    %c0_8 = arith.constant 0 : index
    %12 = vector.load %arg10[%c0_7, %c0_8] : memref<128x384xbf16, #tpu.memory_space<vmem>>, vector<128x384xbf16>
    %cst = arith.constant dense<0.000000e+00> : vector<8x384xf32>
    %13 = tpu.matmul %10, %12, %cst {dimension_numbers = #tpu.dot_dimension_numbers<[1], [0], [0], [1], [0, 0, 1, 1], [], []>} : vector<8x128xbf16>, vector<128x384xbf16>, vector<8x384xf32> -> vector<8x384xf32>
    %c0_9 = arith.constant 0 : index
    %c0_10 = arith.constant 0 : index
    %14 = vector.load %arg12[%c0_9, %c0_10] : memref<1x384xf32, #tpu.memory_space<vmem>>, vector<1x384xf32>
    %15 = vector.broadcast %14 : vector<1x384xf32> to vector<8x384xf32>
    %16 = arith.addf %13, %15 : vector<8x384xf32>
    %c0_11 = arith.constant 0 : index
    %c0_12 = arith.constant 0 : index
    %17 = vector.load %arg11[%c0_11, %c0_12] : memref<128x384xbf16, #tpu.memory_space<vmem>>, vector<128x384xbf16>
    %cst_13 = arith.constant dense<0.000000e+00> : vector<8x384xf32>
    %18 = tpu.matmul %11, %17, %cst_13 {dimension_numbers = #tpu.dot_dimension_numbers<[1], [0], [0], [1], [0, 0, 1, 1], [], []>} : vector<8x128xbf16>, vector<128x384xbf16>, vector<8x384xf32> -> vector<8x384xf32>
    %c0_14 = arith.constant 0 : index
    %c0_15 = arith.constant 0 : index
    %19 = vector.load %arg13[%c0_14, %c0_15] : memref<1x384xf32, #tpu.memory_space<vmem>>, vector<1x384xf32>
    %20 = vector.broadcast %19 : vector<1x384xf32> to vector<8x384xf32>
    %21 = arith.addf %18, %20 : vector<8x384xf32>
    %22 = vector.extract_strided_slice %16 {offsets = [0, 0], sizes = [8, 128], strides = [1, 1]} : vector<8x384xf32> to vector<8x128xf32>
    %23 = vector.extract_strided_slice %21 {offsets = [0, 0], sizes = [8, 128], strides = [1, 1]} : vector<8x384xf32> to vector<8x128xf32>
    %24 = arith.addf %22, %23 : vector<8x128xf32>
    %25 = arith.negf %24 : vector<8x128xf32>
    %26 = math.exp %25 : vector<8x128xf32>
    %cst_16 = arith.constant 1.000000e+00 : f32
    %27 = vector.broadcast %cst_16 : f32 to vector<8x128xf32>
    %28 = arith.addf %27, %26 : vector<8x128xf32>
    %29 = arith.divf %27, %28 : vector<8x128xf32>
    %30 = vector.extract_strided_slice %16 {offsets = [0, 128], sizes = [8, 128], strides = [1, 1]} : vector<8x384xf32> to vector<8x128xf32>
    %31 = vector.extract_strided_slice %21 {offsets = [0, 128], sizes = [8, 128], strides = [1, 1]} : vector<8x384xf32> to vector<8x128xf32>
    %32 = arith.addf %30, %31 : vector<8x128xf32>
    %33 = arith.negf %32 : vector<8x128xf32>
    %34 = math.exp %33 : vector<8x128xf32>
    %cst_17 = arith.constant 1.000000e+00 : f32
    %35 = vector.broadcast %cst_17 : f32 to vector<8x128xf32>
    %36 = arith.addf %35, %34 : vector<8x128xf32>
    %37 = arith.divf %35, %36 : vector<8x128xf32>
    %38 = vector.extract_strided_slice %16 {offsets = [0, 256], sizes = [8, 128], strides = [1, 1]} : vector<8x384xf32> to vector<8x128xf32>
    %39 = vector.extract_strided_slice %21 {offsets = [0, 256], sizes = [8, 128], strides = [1, 1]} : vector<8x384xf32> to vector<8x128xf32>
    %40 = arith.mulf %29, %39 : vector<8x128xf32>
    %41 = arith.addf %38, %40 : vector<8x128xf32>
    %42 = math.tanh %41 : vector<8x128xf32>
    %cst_18 = arith.constant 1.000000e+00 : f32
    %43 = vector.broadcast %cst_18 : f32 to vector<8x128xf32>
    %44 = arith.subf %43, %37 : vector<8x128xf32>
    %45 = arith.mulf %44, %42 : vector<8x128xf32>
    %46 = arith.mulf %37, %9 : vector<8x128xf32>
    %47 = arith.addf %45, %46 : vector<8x128xf32>
    %48 = arith.truncf %47 : vector<8x128xf32> to vector<8x128xbf16>
    %c0_19 = arith.constant 0 : index
    %c0_20 = arith.constant 0 : index
    %c0_21 = arith.constant 0 : index
    %49 = vector.load %arg4[%c0_19, %c0_20, %c0_21] : memref<8x8x128xbf16, #tpu.memory_space<vmem>>, vector<8x8x128xbf16>
    %50 = vector.shape_cast %48 : vector<8x128xbf16> to vector<8x1x128xbf16>
    "tpu.trace_start"() <{level = 10 : i32, message = "bqh,bsh->bqs"}> : () -> ()
    %cst_22 = arith.constant dense<0.000000e+00> : vector<8x1x8xf32>
    %51 = tpu.matmul %50, %49, %cst_22 {dimension_numbers = #tpu.dot_dimension_numbers<[2], [2], [1], [1], [0, 0, 0, 1, 1, 1], [0], [0]>} : vector<8x1x128xbf16>, vector<8x8x128xbf16>, vector<8x1x8xf32> -> vector<8x1x8xf32>
    "tpu.trace_stop"() : () -> ()
    %52 = vector.shape_cast %51 : vector<8x1x8xf32> to vector<8x8xf32>
    %c0_23 = arith.constant 0 : index
    %c0_24 = arith.constant 0 : index
    %53 = vector.load %arg5[%c0_23, %c0_24] : memref<8x8xf32, #tpu.memory_space<vmem>>, vector<8x8xf32>
    %54 = arith.addf %52, %53 : vector<8x8xf32>
    %cst_25 = arith.constant dense<0xFF800000> : vector<8xf32>
    %55 = vector.multi_reduction <maximumf>, %54, %cst_25 [1] : vector<8x8xf32> to vector<8xf32>
    %56 = vector.shape_cast %55 : vector<8xf32> to vector<8x1xf32>
    %57 = vector.broadcast %56 : vector<8x1xf32> to vector<8x8xf32>
    %58 = arith.subf %54, %57 : vector<8x8xf32>
    %59 = math.exp %58 : vector<8x8xf32>
    %cst_26 = arith.constant dense<0.000000e+00> : vector<8xf32>
    %60 = vector.multi_reduction <add>, %59, %cst_26 [1] : vector<8x8xf32> to vector<8xf32>
    %61 = vector.shape_cast %60 : vector<8xf32> to vector<8x1xf32>
    %62 = tpu.reciprocal %61 {approx = true} : vector<8x1xf32> -> vector<8x1xf32>
    %63 = vector.broadcast %62 : vector<8x1xf32> to vector<8x8xf32>
    %64 = arith.mulf %59, %63 : vector<8x8xf32>
    %65 = arith.truncf %64 : vector<8x8xf32> to vector<8x8xbf16>
    %66 = vector.shape_cast %65 : vector<8x8xbf16> to vector<8x1x8xbf16>
    %c0_27 = arith.constant 0 : index
    %c0_28 = arith.constant 0 : index
    %67 = vector.load %arg8[%c0_27, %c0_28] : memref<128x128xbf16, #tpu.memory_space<vmem>>, vector<128x128xbf16>
    %cst_29 = arith.constant dense<0.000000e+00> : vector<8x128xf32>
    %68 = tpu.matmul %48, %67, %cst_29 {dimension_numbers = #tpu.dot_dimension_numbers<[1], [0], [0], [1], [0, 0, 1, 1], [], []>} : vector<8x128xbf16>, vector<128x128xbf16>, vector<8x128xf32> -> vector<8x128xf32>
    %c0_30 = arith.constant 0 : index
    %c0_31 = arith.constant 0 : index
    %69 = vector.load %arg9[%c0_30, %c0_31] : memref<1x128xf32, #tpu.memory_space<vmem>>, vector<1x128xf32>
    %70 = vector.broadcast %69 : vector<1x128xf32> to vector<8x128xf32>
    %71 = arith.addf %68, %70 : vector<8x128xf32>
    %cst_32 = arith.constant dense<0xFF800000> : vector<8xf32>
    %72 = vector.multi_reduction <maximumf>, %71, %cst_32 [1] : vector<8x128xf32> to vector<8xf32>
    %73 = vector.shape_cast %72 : vector<8xf32> to vector<8x1xf32>
    %74 = vector.broadcast %73 : vector<8x1xf32> to vector<8x128xf32>
    %75 = arith.subf %71, %74 : vector<8x128xf32>
    %76 = math.exp %75 : vector<8x128xf32>
    %cst_33 = arith.constant dense<0.000000e+00> : vector<8xf32>
    %77 = vector.multi_reduction <add>, %76, %cst_33 [1] : vector<8x128xf32> to vector<8xf32>
    %78 = vector.shape_cast %77 : vector<8xf32> to vector<8x1xf32>
    %79 = tpu.reciprocal %78 {approx = true} : vector<8x1xf32> -> vector<8x1xf32>
    %80 = vector.broadcast %79 : vector<8x1xf32> to vector<8x128xf32>
    %81 = arith.mulf %76, %80 : vector<8x128xf32>
    "tpu.trace_start"() <{level = 10 : i32, message = "bqs,bsh->bqh"}> : () -> ()
    %cst_34 = arith.constant dense<0.000000e+00> : vector<8x1x128xf32>
    %82 = tpu.matmul %66, %49, %cst_34 {dimension_numbers = #tpu.dot_dimension_numbers<[2], [1], [1], [2], [0, 0, 0, 1, 1, 2], [0], [0]>} : vector<8x1x8xbf16>, vector<8x8x128xbf16>, vector<8x1x128xf32> -> vector<8x1x128xf32>
    "tpu.trace_stop"() : () -> ()
    %83 = vector.shape_cast %82 : vector<8x1x128xf32> to vector<8x128xf32>
    %c0_35 = arith.constant 0 : index
    %c0_36 = arith.constant 0 : index
    %c0_37 = arith.constant 0 : index
    %84 = vector.load %arg6[%c0_35, %c0_36, %c0_37] : memref<8x8x128xbf16, #tpu.memory_space<vmem>>, vector<8x8x128xbf16>
    "tpu.trace_start"() <{level = 10 : i32, message = "bqs,bsv->bqv"}> : () -> ()
    %cst_38 = arith.constant dense<0.000000e+00> : vector<8x1x128xf32>
    %85 = tpu.matmul %66, %84, %cst_38 {dimension_numbers = #tpu.dot_dimension_numbers<[2], [1], [1], [2], [0, 0, 0, 1, 1, 2], [0], [0]>} : vector<8x1x8xbf16>, vector<8x8x128xbf16>, vector<8x1x128xf32> -> vector<8x1x128xf32>
    "tpu.trace_stop"() : () -> ()
    %86 = vector.shape_cast %85 : vector<8x1x128xf32> to vector<8x128xf32>
    %c0_39 = arith.constant 0 : index
    %c0_40 = arith.constant 0 : index
    %87 = vector.load %arg14[%c0_39, %c0_40] : memref<3x128xf32, #tpu.memory_space<vmem>>, vector<3x128xf32>
    %88 = vector.extract_strided_slice %87 {offsets = [0, 0], sizes = [1, 128], strides = [1, 1]} : vector<3x128xf32> to vector<1x128xf32>
    %89 = vector.broadcast %88 : vector<1x128xf32> to vector<8x128xf32>
    %90 = arith.mulf %8, %89 : vector<8x128xf32>
    %cst_41 = arith.constant dense<0.000000e+00> : vector<8xf32>
    %91 = vector.multi_reduction <add>, %90, %cst_41 [1] : vector<8x128xf32> to vector<8xf32>
    %92 = vector.shape_cast %91 : vector<8xf32> to vector<8x1xf32>
    %93 = vector.extract_strided_slice %87 {offsets = [1, 0], sizes = [1, 128], strides = [1, 1]} : vector<3x128xf32> to vector<1x128xf32>
    %94 = vector.broadcast %93 : vector<1x128xf32> to vector<8x128xf32>
    %95 = arith.mulf %47, %94 : vector<8x128xf32>
    %cst_42 = arith.constant dense<0.000000e+00> : vector<8xf32>
    %96 = vector.multi_reduction <add>, %95, %cst_42 [1] : vector<8x128xf32> to vector<8xf32>
    %97 = vector.shape_cast %96 : vector<8xf32> to vector<8x1xf32>
    %98 = arith.addf %92, %97 : vector<8x1xf32>
    %99 = vector.extract_strided_slice %87 {offsets = [2, 0], sizes = [1, 128], strides = [1, 1]} : vector<3x128xf32> to vector<1x128xf32>
    %100 = vector.broadcast %99 : vector<1x128xf32> to vector<8x128xf32>
    %101 = arith.mulf %83, %100 : vector<8x128xf32>
    %cst_43 = arith.constant dense<0.000000e+00> : vector<8xf32>
    %102 = vector.multi_reduction <add>, %101, %cst_43 [1] : vector<8x128xf32> to vector<8xf32>
    %103 = vector.shape_cast %102 : vector<8xf32> to vector<8x1xf32>
    %104 = arith.addf %98, %103 : vector<8x1xf32>
    %c0_44 = arith.constant 0 : index
    %c0_45 = arith.constant 0 : index
    %105 = vector.load %arg15[%c0_44, %c0_45] : memref<1x1xf32, #tpu.memory_space<vmem>>, vector<1x1xf32>
    %106 = vector.extract %105[0, 0] : f32 from vector<1x1xf32>
    %107 = vector.broadcast %106 : f32 to vector<8x1xf32>
    %108 = arith.addf %104, %107 : vector<8x1xf32>
    %109 = arith.negf %108 : vector<8x1xf32>
    %110 = math.exp %109 : vector<8x1xf32>
    %cst_46 = arith.constant 1.000000e+00 : f32
    %111 = vector.broadcast %cst_46 : f32 to vector<8x1xf32>
    %112 = arith.addf %111, %110 : vector<8x1xf32>
    %113 = arith.divf %111, %112 : vector<8x1xf32>
    %114 = vector.broadcast %113 : vector<8x1xf32> to vector<8x128xf32>
    %115 = arith.mulf %114, %81 : vector<8x128xf32>
    %cst_47 = arith.constant 1.000000e+00 : f32
    %116 = vector.broadcast %cst_47 : f32 to vector<8x1xf32>
    %117 = arith.subf %116, %113 : vector<8x1xf32>
    %118 = vector.broadcast %117 : vector<8x1xf32> to vector<8x128xf32>
    %119 = arith.mulf %118, %86 : vector<8x128xf32>
    %120 = arith.addf %115, %119 : vector<8x128xf32>
    %c0_48 = arith.constant 0 : index
    %c0_49 = arith.constant 0 : index
    %c0_50 = arith.constant 0 : index
    %c0_51 = arith.constant 0 : index
    %121 = vector.load %arg16[%c0_48, %c0_49, %c0_50, %c0_51] : memref<1x1x8x128xf32, #tpu.memory_space<vmem>>, vector<1x1x8x128xf32>
    %122 = vector.shape_cast %121 : vector<1x1x8x128xf32> to vector<8x128xf32>
    %123 = vector.shape_cast %120 : vector<8x128xf32> to vector<1x1x8x128xf32>
    tpu.vector_store %arg16[%c0_48, %c0_49, %c0_50, %c0_51], %123 {strides = array<i32>} : memref<1x1x8x128xf32, #tpu.memory_space<vmem>>, vector<1x1x8x128xf32>,
    %124 = tpu.iota {dimensions = array<i32: 1>} : vector<1x128xi32>
    %cst_52 = arith.constant dense<0xFF800000> : vector<8xf32>
    %125 = vector.multi_reduction <maximumf>, %120, %cst_52 [1] : vector<8x128xf32> to vector<8xf32>
    %126 = vector.shape_cast %125 : vector<8xf32> to vector<8x1xf32>
    %127 = vector.broadcast %126 : vector<8x1xf32> to vector<8x128xf32>
    %128 = arith.cmpf oeq, %120, %127 : vector<8x128xf32>
    %c128_i32 = arith.constant 128 : i32
    %129 = vector.shape_cast %124 : vector<1x128xi32> to vector<1x128xi32>
    %130 = vector.broadcast %129 : vector<1x128xi32> to vector<8x128xi32>
    %131 = vector.broadcast %c128_i32 : i32 to vector<8x128xi32>
    %132 = arith.select %128, %130, %131 : vector<8x128xi1>, vector<8x128xi32>
    %cst_53 = arith.constant dense<2147483647> : vector<8xi32>
    %133 = vector.multi_reduction <minsi>, %132, %cst_53 [1] : vector<8x128xi32> to vector<8xi32>
    %134 = vector.shape_cast %133 : vector<8xi32> to vector<8x1xi32>
    %135 = vector.broadcast %124 : vector<1x128xi32> to vector<8x128xi32>
    %136 = vector.broadcast %134 : vector<8x1xi32> to vector<8x128xi32>
    %137 = arith.cmpi eq, %135, %136 : vector<8x128xi32>
    %138 = arith.extui %137 : vector<8x128xi1> to vector<8x128xi32>
    %139 = arith.sitofp %138 : vector<8x128xi32> to vector<8x128xf32>
    %140 = arith.truncf %139 : vector<8x128xf32> to vector<8x128xbf16>
    %c0_54 = arith.constant 0 : index
    %c0_55 = arith.constant 0 : index
    %141 = vector.load %arg7[%c0_54, %c0_55] : memref<128x128xbf16, #tpu.memory_space<vmem>>, vector<128x128xbf16>
    %cst_56 = arith.constant dense<0.000000e+00> : vector<8x128xf32>
    %142 = tpu.matmul %140, %141, %cst_56 {dimension_numbers = #tpu.dot_dimension_numbers<[1], [0], [0], [1], [0, 0, 1, 1], [], []>} : vector<8x128xbf16>, vector<128x128xbf16>, vector<8x128xf32> -> vector<8x128xf32>
    %c0_57 = arith.constant 0 : index
    %c0_58 = arith.constant 0 : index
    %143 = vector.load %arg17[%c0_57, %c0_58] : memref<8x128xf32, #tpu.memory_space<vmem>>, vector<8x128xf32>
    tpu.vector_store %arg17[%c0_57, %c0_58], %47 {strides = array<i32>} : memref<8x128xf32, #tpu.memory_space<vmem>>, vector<8x128xf32>,
    %c0_59 = arith.constant 0 : index
    %c0_60 = arith.constant 0 : index
    %144 = vector.load %arg18[%c0_59, %c0_60] : memref<8x128xf32, #tpu.memory_space<vmem>>, vector<8x128xf32>
    tpu.vector_store %arg18[%c0_59, %c0_60], %142 {strides = array<i32>} : memref<8x128xf32, #tpu.memory_space<vmem>>, vector<8x128xf32>,
    return
  }
  func.func @transform_0(%arg0: i32, %arg1: i32) -> (i32, i32, i32) {
    %c0_i32 = arith.constant 0 : i32
    %c0_i32_0 = arith.constant 0 : i32
    %c0_i32_1 = arith.constant 0 : i32
    return %arg0, %c0_i32, %c0_i32_0 : i32, i32, i32
  }
  func.func @transform_1(%arg0: i32, %arg1: i32) -> (i32, i32) {
    %c0_i32 = arith.constant 0 : i32
    %c0_i32_0 = arith.constant 0 : i32
    %c0_i32_1 = arith.constant 0 : i32
    return %c0_i32, %c0_i32_0 : i32, i32
  }
  func.func @transform_2(%arg0: i32, %arg1: i32) -> (i32, i32, i32) {
    %c0_i32 = arith.constant 0 : i32
    %c0_i32_0 = arith.constant 0 : i32
    %c0_i32_1 = arith.constant 0 : i32
    %c0_i32_2 = arith.constant 0 : i32
    return %c0_i32, %c0_i32_0, %c0_i32_1 : i32, i32, i32
  }
  func.func @transform_3(%arg0: i32, %arg1: i32) -> (i32, i32) {
    %c0_i32 = arith.constant 0 : i32
    %c0_i32_0 = arith.constant 0 : i32
    %c0_i32_1 = arith.constant 0 : i32
    return %c0_i32, %c0_i32_0 : i32, i32
  }
  func.func @transform_4(%arg0: i32, %arg1: i32) -> (i32, i32, i32) {
    %c0_i32 = arith.constant 0 : i32
    %c0_i32_0 = arith.constant 0 : i32
    %c0_i32_1 = arith.constant 0 : i32
    %c0_i32_2 = arith.constant 0 : i32
    return %c0_i32, %c0_i32_0, %c0_i32_1 : i32, i32, i32
  }
  func.func @transform_5(%arg0: i32, %arg1: i32) -> (i32, i32) {
    %c0_i32 = arith.constant 0 : i32
    %c0_i32_0 = arith.constant 0 : i32
    %c0_i32_1 = arith.constant 0 : i32
    return %c0_i32, %c0_i32_0 : i32, i32
  }
  func.func @transform_6(%arg0: i32, %arg1: i32) -> (i32, i32) {
    %c0_i32 = arith.constant 0 : i32
    %c0_i32_0 = arith.constant 0 : i32
    %c0_i32_1 = arith.constant 0 : i32
    return %c0_i32, %c0_i32_0 : i32, i32
  }
  func.func @transform_7(%arg0: i32, %arg1: i32) -> (i32, i32) {
    %c0_i32 = arith.constant 0 : i32
    %c0_i32_0 = arith.constant 0 : i32
    %c0_i32_1 = arith.constant 0 : i32
    return %c0_i32, %c0_i32_0 : i32, i32
  }
  func.func @transform_8(%arg0: i32, %arg1: i32) -> (i32, i32) {
    %c0_i32 = arith.constant 0 : i32
    %c0_i32_0 = arith.constant 0 : i32
    %c0_i32_1 = arith.constant 0 : i32
    return %c0_i32, %c0_i32_0 : i32, i32
  }
  func.func @transform_9(%arg0: i32, %arg1: i32) -> (i32, i32) {
    %c0_i32 = arith.constant 0 : i32
    %c0_i32_0 = arith.constant 0 : i32
    %c0_i32_1 = arith.constant 0 : i32
    return %c0_i32, %c0_i32_0 : i32, i32
  }
  func.func @transform_10(%arg0: i32, %arg1: i32) -> (i32, i32) {
    %c0_i32 = arith.constant 0 : i32
    %c0_i32_0 = arith.constant 0 : i32
    %c0_i32_1 = arith.constant 0 : i32
    return %c0_i32, %c0_i32_0 : i32, i32
  }
  func.func @transform_11(%arg0: i32, %arg1: i32) -> (i32, i32) {
    %c0_i32 = arith.constant 0 : i32
    %c0_i32_0 = arith.constant 0 : i32
    %c0_i32_1 = arith.constant 0 : i32
    return %c0_i32, %c0_i32_0 : i32, i32
  }
  func.func @transform_12(%arg0: i32, %arg1: i32) -> (i32, i32) {
    %c0_i32 = arith.constant 0 : i32
    %c0_i32_0 = arith.constant 0 : i32
    %c0_i32_1 = arith.constant 0 : i32
    return %c0_i32, %c0_i32_0 : i32, i32
  }
  func.func @transform_13(%arg0: i32, %arg1: i32) -> (i32, i32) {
    %c0_i32 = arith.constant 0 : i32
    %c0_i32_0 = arith.constant 0 : i32
    %c0_i32_1 = arith.constant 0 : i32
    return %c0_i32, %c0_i32_0 : i32, i32
  }
  func.func @transform_14(%arg0: i32, %arg1: i32) -> (i32, i32, i32, i32) {
    %c0_i32 = arith.constant 0 : i32
    %c0_i32_0 = arith.constant 0 : i32
    %c0_i32_1 = arith.constant 0 : i32
    return %arg0, %arg1, %c0_i32, %c0_i32_0 : i32, i32, i32, i32
  }
}

module attributes {stable_mosaic.version = 11 : i64} {
  func.func @_decoder_kernel(%arg0: i32, %arg1: i32, %arg2: memref<1x8x128xf32, #tpu.memory_space<vmem>>, %arg3: memref<8x128xf32, #tpu.memory_space<vmem>>, %arg4: memref<8x8x128xbf16, #tpu.memory_space<vmem>>, %arg5: memref<8x8xf32, #tpu.memory_space<vmem>>, %arg6: memref<8x8x128xbf16, #tpu.memory_space<vmem>>, %arg7: memref<128x128xbf16, #tpu.memory_space<vmem>>, %arg8: memref<128x128xbf16, #tpu.memory_space<vmem>>, %arg9: memref<1x128xf32, #tpu.memory_space<vmem>>, %arg10: memref<128x384xbf16, #tpu.memory_space<vmem>>, %arg11: memref<128x384xbf16, #tpu.memory_space<vmem>>, %arg12: memref<1x384xf32, #tpu.memory_space<vmem>>, %arg13: memref<1x384xf32, #tpu.memory_space<vmem>>, %arg14: memref<3x128xf32, #tpu.memory_space<vmem>>, %arg15: memref<1x1xf32, #tpu.memory_space<vmem>>, %arg16: memref<1x1x8x128xf32, #tpu.memory_space<vmem>>, %arg17: memref<8x128xf32, #tpu.memory_space<vmem>>, %arg18: memref<8x128xf32, #tpu.memory_space<vmem>>) attributes {dimension_semantics = [#tpu.dimension_semantics<arbitrary>, #tpu.dimension_semantics<arbitrary>], iteration_bounds = array<i64: 3, 4>, scalar_prefetch = 0 : i64, scratch_operands = 2 : i64, tpu.core_type = #tpu.core_type<tc>, window_params = [{transform_indices = @transform_0, window_bounds = array<i64: 1, 8, 128>}, {pipeline_mode = #tpu.pipeline_mode<synchronous>, transform_indices = @transform_1, window_bounds = array<i64: 8, 128>}, {pipeline_mode = #tpu.pipeline_mode<synchronous>, transform_indices = @transform_2, window_bounds = array<i64: 8, 8, 128>}, {pipeline_mode = #tpu.pipeline_mode<synchronous>, transform_indices = @transform_3, window_bounds = array<i64: 8, 8>}, {pipeline_mode = #tpu.pipeline_mode<synchronous>, transform_indices = @transform_4, window_bounds = array<i64: 8, 8, 128>}, {pipeline_mode = #tpu.pipeline_mode<synchronous>, transform_indices = @transform_5, window_bounds = array<i64: 128, 128>}, {pipeline_mode = #tpu.pipeline_mode<synchronous>, transform_indices = @transform_6, window_bounds = array<i64: 128, 128>}, {pipeline_mode = #tpu.pipeline_mode<synchronous>, transform_indices = @transform_7, window_bounds = array<i64: 1, 128>}, {pipeline_mode = #tpu.pipeline_mode<synchronous>, transform_indices = @transform_8, window_bounds = array<i64: 128, 384>}, {pipeline_mode = #tpu.pipeline_mode<synchronous>, transform_indices = @transform_9, window_bounds = array<i64: 128, 384>}, {pipeline_mode = #tpu.pipeline_mode<synchronous>, transform_indices = @transform_10, window_bounds = array<i64: 1, 384>}, {pipeline_mode = #tpu.pipeline_mode<synchronous>, transform_indices = @transform_11, window_bounds = array<i64: 1, 384>}, {pipeline_mode = #tpu.pipeline_mode<synchronous>, transform_indices = @transform_12, window_bounds = array<i64: 3, 128>}, {pipeline_mode = #tpu.pipeline_mode<synchronous>, transform_indices = @transform_13, window_bounds = array<i64: 1, 1>}, {transform_indices = @transform_14, window_bounds = array<i64: 1, 1, 8, 128>}]} {
    %c0_i32 = arith.constant 0 : i32
    %0 = arith.cmpi eq, %arg0, %c0_i32 : i32
    %c0_i32_0 = arith.constant 0 : i32
    %1 = arith.cmpi eq, %arg1, %c0_i32_0 : i32
    %2 = arith.andi %0, %1 : i1
    %3 = arith.extui %2 : i1 to i32
    %c0_i32_1 = arith.constant 0 : i32
    %4 = arith.cmpi ne, %3, %c0_i32_1 : i32
    scf.if %4 {
      %c0_61 = arith.constant 0 : index
      %c0_62 = arith.constant 0 : index
      %145 = vector.load %arg3[%c0_61, %c0_62] : memref<8x128xf32, #tpu.memory_space<vmem>>, vector<8x128xf32>
      %c0_63 = arith.constant 0 : index
      %c0_64 = arith.constant 0 : index
      %146 = vector.load %arg17[%c0_63, %c0_64] : memref<8x128xf32, #tpu.memory_space<vmem>>, vector<8x128xf32>
      tpu.vector_store %arg17[%c0_63, %c0_64], %145 {strides = array<i32>} : memref<8x128xf32, #tpu.memory_space<vmem>>, vector<8x128xf32>,
    } else {
    }
    %c0_i32_2 = arith.constant 0 : i32
    %5 = arith.cmpi eq, %arg1, %c0_i32_2 : i32
    %6 = arith.extui %5 : i1 to i32
    %c0_i32_3 = arith.constant 0 : i32
    %7 = arith.cmpi ne, %6, %c0_i32_3 : i32
    scf.if %7 {
      %c0_61 = arith.constant 0 : index
      %c0_62 = arith.constant 0 : index
      %c0_63 = arith.constant 0 : index
      %145 = vector.load %arg2[%c0_61, %c0_62, %c0_63] : memref<1x8x128xf32, #tpu.memory_space<vmem>>, vector<1x8x128xf32>
      %146 = vector.shape_cast %145 : vector<1x8x128xf32> to vector<8x128xf32>
      %c0_64 = arith.constant 0 : index
      %c0_65 = arith.constant 0 : index
      %147 = vector.load %arg18[%c0_64, %c0_65] : memref<8x128xf32, #tpu.memory_space<vmem>>, vector<8x128xf32>
      tpu.vector_store %arg18[%c0_64, %c0_65], %146 {strides = array<i32>} : memref<8x128xf32, #tpu.memory_space<vmem>>, vector<8x128xf32>,
    } else {
    }
    %c0 = arith.constant 0 : index
    %c0_4 = arith.constant 0 : index
    %8 = vector.load %arg18[%c0, %c0_4] : memref<8x128xf32, #tpu.memory_space<vmem>>, vector<8x128xf32>
    %c0_5 = arith.constant 0 : index
    %c0_6 = arith.constant 0 : index
    %9 = vector.load %arg17[%c0_5, %c0_6] : memref<8x128xf32, #tpu.memory_space<vmem>>, vector<8x128xf32>
    %10 = arith.truncf %8 : vector<8x128xf32> to vector<8x128xbf16>
    %11 = arith.truncf %9 : vector<8x128xf32> to vector<8x128xbf16>
    %c0_7 = arith.constant 0 : index
    %c0_8 = arith.constant 0 : index
    %12 = vector.load %arg10[%c0_7, %c0_8] : memref<128x384xbf16, #tpu.memory_space<vmem>>, vector<128x384xbf16>
    %cst = arith.constant dense<0.000000e+00> : vector<8x384xf32>
    %13 = tpu.matmul %10, %12, %cst {dimension_numbers = #tpu.dot_dimension_numbers<[1], [0], [0], [1], [0, 0, 1, 1], [], []>} : vector<8x128xbf16>, vector<128x384xbf16>, vector<8x384xf32> -> vector<8x384xf32>
    %c0_9 = arith.constant 0 : index
    %c0_10 = arith.constant 0 : index
    %14 = vector.load %arg12[%c0_9, %c0_10] : memref<1x384xf32, #tpu.memory_space<vmem>>, vector<1x384xf32>
    %15 = vector.broadcast %14 : vector<1x384xf32> to vector<8x384xf32>
    %16 = arith.addf %13, %15 : vector<8x384xf32>
    %c0_11 = arith.constant 0 : index
    %c0_12 = arith.constant 0 : index
    %17 = vector.load %arg11[%c0_11, %c0_12] : memref<128x384xbf16, #tpu.memory_space<vmem>>, vector<128x384xbf16>
    %cst_13 = arith.constant dense<0.000000e+00> : vector<8x384xf32>
    %18 = tpu.matmul %11, %17, %cst_13 {dimension_numbers = #tpu.dot_dimension_numbers<[1], [0], [0], [1], [0, 0, 1, 1], [], []>} : vector<8x128xbf16>, vector<128x384xbf16>, vector<8x384xf32> -> vector<8x384xf32>
    %c0_14 = arith.constant 0 : index
    %c0_15 = arith.constant 0 : index
    %19 = vector.load %arg13[%c0_14, %c0_15] : memref<1x384xf32, #tpu.memory_space<vmem>>, vector<1x384xf32>
    %20 = vector.broadcast %19 : vector<1x384xf32> to vector<8x384xf32>
    %21 = arith.addf %18, %20 : vector<8x384xf32>
    %22 = vector.extract_strided_slice %16 {offsets = [0, 0], sizes = [8, 128], strides = [1, 1]} : vector<8x384xf32> to vector<8x128xf32>
    %23 = vector.extract_strided_slice %21 {offsets = [0, 0], sizes = [8, 128], strides = [1, 1]} : vector<8x384xf32> to vector<8x128xf32>
    %24 = arith.addf %22, %23 : vector<8x128xf32>
    %25 = arith.negf %24 : vector<8x128xf32>
    %26 = math.exp %25 : vector<8x128xf32>
    %cst_16 = arith.constant 1.000000e+00 : f32
    %27 = vector.broadcast %cst_16 : f32 to vector<8x128xf32>
    %28 = arith.addf %27, %26 : vector<8x128xf32>
    %29 = arith.divf %27, %28 : vector<8x128xf32>
    %30 = vector.extract_strided_slice %16 {offsets = [0, 128], sizes = [8, 128], strides = [1, 1]} : vector<8x384xf32> to vector<8x128xf32>
    %31 = vector.extract_strided_slice %21 {offsets = [0, 128], sizes = [8, 128], strides = [1, 1]} : vector<8x384xf32> to vector<8x128xf32>
    %32 = arith.addf %30, %31 : vector<8x128xf32>
    %33 = arith.negf %32 : vector<8x128xf32>
    %34 = math.exp %33 : vector<8x128xf32>
    %cst_17 = arith.constant 1.000000e+00 : f32
    %35 = vector.broadcast %cst_17 : f32 to vector<8x128xf32>
    %36 = arith.addf %35, %34 : vector<8x128xf32>
    %37 = arith.divf %35, %36 : vector<8x128xf32>
    %38 = vector.extract_strided_slice %16 {offsets = [0, 256], sizes = [8, 128], strides = [1, 1]} : vector<8x384xf32> to vector<8x128xf32>
    %39 = vector.extract_strided_slice %21 {offsets = [0, 256], sizes = [8, 128], strides = [1, 1]} : vector<8x384xf32> to vector<8x128xf32>
    %40 = arith.mulf %29, %39 : vector<8x128xf32>
    %41 = arith.addf %38, %40 : vector<8x128xf32>
    %42 = math.tanh %41 : vector<8x128xf32>
    %cst_18 = arith.constant 1.000000e+00 : f32
    %43 = vector.broadcast %cst_18 : f32 to vector<8x128xf32>
    %44 = arith.subf %43, %37 : vector<8x128xf32>
    %45 = arith.mulf %44, %42 : vector<8x128xf32>
    %46 = arith.mulf %37, %9 : vector<8x128xf32>
    %47 = arith.addf %45, %46 : vector<8x128xf32>
    %48 = arith.truncf %47 : vector<8x128xf32> to vector<8x128xbf16>
    %c0_19 = arith.constant 0 : index
    %c0_20 = arith.constant 0 : index
    %c0_21 = arith.constant 0 : index
    %49 = vector.load %arg4[%c0_19, %c0_20, %c0_21] : memref<8x8x128xbf16, #tpu.memory_space<vmem>>, vector<8x8x128xbf16>
    %50 = vector.shape_cast %48 : vector<8x128xbf16> to vector<8x1x128xbf16>
    "tpu.trace_start"() <{level = 10 : i32, message = "bqh,bsh->bqs"}> : () -> ()
    %cst_22 = arith.constant dense<0.000000e+00> : vector<8x1x8xf32>
    %51 = tpu.matmul %50, %49, %cst_22 {dimension_numbers = #tpu.dot_dimension_numbers<[2], [2], [1], [1], [0, 0, 0, 1, 1, 1], [0], [0]>} : vector<8x1x128xbf16>, vector<8x8x128xbf16>, vector<8x1x8xf32> -> vector<8x1x8xf32>
    "tpu.trace_stop"() : () -> ()
    %52 = vector.shape_cast %51 : vector<8x1x8xf32> to vector<8x8xf32>
    %c0_23 = arith.constant 0 : index
    %c0_24 = arith.constant 0 : index
    %53 = vector.load %arg5[%c0_23, %c0_24] : memref<8x8xf32, #tpu.memory_space<vmem>>, vector<8x8xf32>
    %54 = arith.addf %52, %53 : vector<8x8xf32>
    %cst_25 = arith.constant dense<0xFF800000> : vector<8xf32>
    %55 = vector.multi_reduction <maximumf>, %54, %cst_25 [1] : vector<8x8xf32> to vector<8xf32>
    %56 = vector.shape_cast %55 : vector<8xf32> to vector<8x1xf32>
    %57 = vector.broadcast %56 : vector<8x1xf32> to vector<8x8xf32>
    %58 = arith.subf %54, %57 : vector<8x8xf32>
    %59 = math.exp %58 : vector<8x8xf32>
    %cst_26 = arith.constant dense<0.000000e+00> : vector<8xf32>
    %60 = vector.multi_reduction <add>, %59, %cst_26 [1] : vector<8x8xf32> to vector<8xf32>
    %61 = vector.shape_cast %60 : vector<8xf32> to vector<8x1xf32>
    %62 = tpu.reciprocal %61 {approx = true} : vector<8x1xf32> -> vector<8x1xf32>
    %63 = vector.broadcast %62 : vector<8x1xf32> to vector<8x8xf32>
    %64 = arith.mulf %59, %63 : vector<8x8xf32>
    %65 = arith.truncf %64 : vector<8x8xf32> to vector<8x8xbf16>
    %66 = vector.shape_cast %65 : vector<8x8xbf16> to vector<8x1x8xbf16>
    %c0_27 = arith.constant 0 : index
    %c0_28 = arith.constant 0 : index
    %67 = vector.load %arg8[%c0_27, %c0_28] : memref<128x128xbf16, #tpu.memory_space<vmem>>, vector<128x128xbf16>
    %cst_29 = arith.constant dense<0.000000e+00> : vector<8x128xf32>
    %68 = tpu.matmul %48, %67, %cst_29 {dimension_numbers = #tpu.dot_dimension_numbers<[1], [0], [0], [1], [0, 0, 1, 1], [], []>} : vector<8x128xbf16>, vector<128x128xbf16>, vector<8x128xf32> -> vector<8x128xf32>
    %c0_30 = arith.constant 0 : index
    %c0_31 = arith.constant 0 : index
    %69 = vector.load %arg9[%c0_30, %c0_31] : memref<1x128xf32, #tpu.memory_space<vmem>>, vector<1x128xf32>
    %70 = vector.broadcast %69 : vector<1x128xf32> to vector<8x128xf32>
    %71 = arith.addf %68, %70 : vector<8x128xf32>
    %cst_32 = arith.constant dense<0xFF800000> : vector<8xf32>
    %72 = vector.multi_reduction <maximumf>, %71, %cst_32 [1] : vector<8x128xf32> to vector<8xf32>
    %73 = vector.shape_cast %72 : vector<8xf32> to vector<8x1xf32>
    %74 = vector.broadcast %73 : vector<8x1xf32> to vector<8x128xf32>
    %75 = arith.subf %71, %74 : vector<8x128xf32>
    %76 = math.exp %75 : vector<8x128xf32>
    %cst_33 = arith.constant dense<0.000000e+00> : vector<8xf32>
    %77 = vector.multi_reduction <add>, %76, %cst_33 [1] : vector<8x128xf32> to vector<8xf32>
    %78 = vector.shape_cast %77 : vector<8xf32> to vector<8x1xf32>
    %79 = tpu.reciprocal %78 {approx = true} : vector<8x1xf32> -> vector<8x1xf32>
    %80 = vector.broadcast %79 : vector<8x1xf32> to vector<8x128xf32>
    %81 = arith.mulf %76, %80 : vector<8x128xf32>
    "tpu.trace_start"() <{level = 10 : i32, message = "bqs,bsh->bqh"}> : () -> ()
    %cst_34 = arith.constant dense<0.000000e+00> : vector<8x1x128xf32>
    %82 = tpu.matmul %66, %49, %cst_34 {dimension_numbers = #tpu.dot_dimension_numbers<[2], [1], [1], [2], [0, 0, 0, 1, 1, 2], [0], [0]>} : vector<8x1x8xbf16>, vector<8x8x128xbf16>, vector<8x1x128xf32> -> vector<8x1x128xf32>
    "tpu.trace_stop"() : () -> ()
    %83 = vector.shape_cast %82 : vector<8x1x128xf32> to vector<8x128xf32>
    %c0_35 = arith.constant 0 : index
    %c0_36 = arith.constant 0 : index
    %c0_37 = arith.constant 0 : index
    %84 = vector.load %arg6[%c0_35, %c0_36, %c0_37] : memref<8x8x128xbf16, #tpu.memory_space<vmem>>, vector<8x8x128xbf16>
    "tpu.trace_start"() <{level = 10 : i32, message = "bqs,bsv->bqv"}> : () -> ()
    %cst_38 = arith.constant dense<0.000000e+00> : vector<8x1x128xf32>
    %85 = tpu.matmul %66, %84, %cst_38 {dimension_numbers = #tpu.dot_dimension_numbers<[2], [1], [1], [2], [0, 0, 0, 1, 1, 2], [0], [0]>} : vector<8x1x8xbf16>, vector<8x8x128xbf16>, vector<8x1x128xf32> -> vector<8x1x128xf32>
    "tpu.trace_stop"() : () -> ()
    %86 = vector.shape_cast %85 : vector<8x1x128xf32> to vector<8x128xf32>
    %c0_39 = arith.constant 0 : index
    %c0_40 = arith.constant 0 : index
    %87 = vector.load %arg14[%c0_39, %c0_40] : memref<3x128xf32, #tpu.memory_space<vmem>>, vector<3x128xf32>
    %88 = vector.extract_strided_slice %87 {offsets = [0, 0], sizes = [1, 128], strides = [1, 1]} : vector<3x128xf32> to vector<1x128xf32>
    %89 = vector.broadcast %88 : vector<1x128xf32> to vector<8x128xf32>
    %90 = arith.mulf %8, %89 : vector<8x128xf32>
    %cst_41 = arith.constant dense<0.000000e+00> : vector<8xf32>
    %91 = vector.multi_reduction <add>, %90, %cst_41 [1] : vector<8x128xf32> to vector<8xf32>
    %92 = vector.shape_cast %91 : vector<8xf32> to vector<8x1xf32>
    %93 = vector.extract_strided_slice %87 {offsets = [1, 0], sizes = [1, 128], strides = [1, 1]} : vector<3x128xf32> to vector<1x128xf32>
    %94 = vector.broadcast %93 : vector<1x128xf32> to vector<8x128xf32>
    %95 = arith.mulf %47, %94 : vector<8x128xf32>
    %cst_42 = arith.constant dense<0.000000e+00> : vector<8xf32>
    %96 = vector.multi_reduction <add>, %95, %cst_42 [1] : vector<8x128xf32> to vector<8xf32>
    %97 = vector.shape_cast %96 : vector<8xf32> to vector<8x1xf32>
    %98 = arith.addf %92, %97 : vector<8x1xf32>
    %99 = vector.extract_strided_slice %87 {offsets = [2, 0], sizes = [1, 128], strides = [1, 1]} : vector<3x128xf32> to vector<1x128xf32>
    %100 = vector.broadcast %99 : vector<1x128xf32> to vector<8x128xf32>
    %101 = arith.mulf %83, %100 : vector<8x128xf32>
    %cst_43 = arith.constant dense<0.000000e+00> : vector<8xf32>
    %102 = vector.multi_reduction <add>, %101, %cst_43 [1] : vector<8x128xf32> to vector<8xf32>
    %103 = vector.shape_cast %102 : vector<8xf32> to vector<8x1xf32>
    %104 = arith.addf %98, %103 : vector<8x1xf32>
    %c0_44 = arith.constant 0 : index
    %c0_45 = arith.constant 0 : index
    %105 = vector.load %arg15[%c0_44, %c0_45] : memref<1x1xf32, #tpu.memory_space<vmem>>, vector<1x1xf32>
    %106 = vector.extract %105[0, 0] : f32 from vector<1x1xf32>
    %107 = vector.broadcast %106 : f32 to vector<8x1xf32>
    %108 = arith.addf %104, %107 : vector<8x1xf32>
    %109 = arith.negf %108 : vector<8x1xf32>
    %110 = math.exp %109 : vector<8x1xf32>
    %cst_46 = arith.constant 1.000000e+00 : f32
    %111 = vector.broadcast %cst_46 : f32 to vector<8x1xf32>
    %112 = arith.addf %111, %110 : vector<8x1xf32>
    %113 = arith.divf %111, %112 : vector<8x1xf32>
    %114 = vector.broadcast %113 : vector<8x1xf32> to vector<8x128xf32>
    %115 = arith.mulf %114, %81 : vector<8x128xf32>
    %cst_47 = arith.constant 1.000000e+00 : f32
    %116 = vector.broadcast %cst_47 : f32 to vector<8x1xf32>
    %117 = arith.subf %116, %113 : vector<8x1xf32>
    %118 = vector.broadcast %117 : vector<8x1xf32> to vector<8x128xf32>
    %119 = arith.mulf %118, %86 : vector<8x128xf32>
    %120 = arith.addf %115, %119 : vector<8x128xf32>
    %c0_48 = arith.constant 0 : index
    %c0_49 = arith.constant 0 : index
    %c0_50 = arith.constant 0 : index
    %c0_51 = arith.constant 0 : index
    %121 = vector.load %arg16[%c0_48, %c0_49, %c0_50, %c0_51] : memref<1x1x8x128xf32, #tpu.memory_space<vmem>>, vector<1x1x8x128xf32>
    %122 = vector.shape_cast %121 : vector<1x1x8x128xf32> to vector<8x128xf32>
    %123 = vector.shape_cast %120 : vector<8x128xf32> to vector<1x1x8x128xf32>
    tpu.vector_store %arg16[%c0_48, %c0_49, %c0_50, %c0_51], %123 {strides = array<i32>} : memref<1x1x8x128xf32, #tpu.memory_space<vmem>>, vector<1x1x8x128xf32>,
    %124 = tpu.iota {dimensions = array<i32: 1>} : vector<1x128xi32>
    %cst_52 = arith.constant dense<0xFF800000> : vector<8xf32>
    %125 = vector.multi_reduction <maximumf>, %120, %cst_52 [1] : vector<8x128xf32> to vector<8xf32>
    %126 = vector.shape_cast %125 : vector<8xf32> to vector<8x1xf32>
    %127 = vector.broadcast %126 : vector<8x1xf32> to vector<8x128xf32>
    %128 = arith.cmpf oeq, %120, %127 : vector<8x128xf32>
    %c128_i32 = arith.constant 128 : i32
    %129 = vector.shape_cast %124 : vector<1x128xi32> to vector<1x128xi32>
    %130 = vector.broadcast %129 : vector<1x128xi32> to vector<8x128xi32>
    %131 = vector.broadcast %c128_i32 : i32 to vector<8x128xi32>
    %132 = arith.select %128, %130, %131 : vector<8x128xi1>, vector<8x128xi32>
    %cst_53 = arith.constant dense<2147483647> : vector<8xi32>
    %133 = vector.multi_reduction <minsi>, %132, %cst_53 [1] : vector<8x128xi32> to vector<8xi32>
    %134 = vector.shape_cast %133 : vector<8xi32> to vector<8x1xi32>
    %135 = vector.broadcast %124 : vector<1x128xi32> to vector<8x128xi32>
    %136 = vector.broadcast %134 : vector<8x1xi32> to vector<8x128xi32>
    %137 = arith.cmpi eq, %135, %136 : vector<8x128xi32>
    %138 = arith.extui %137 : vector<8x128xi1> to vector<8x128xi32>
    %139 = arith.sitofp %138 : vector<8x128xi32> to vector<8x128xf32>
    %140 = arith.truncf %139 : vector<8x128xf32> to vector<8x128xbf16>
    %c0_54 = arith.constant 0 : index
    %c0_55 = arith.constant 0 : index
    %141 = vector.load %arg7[%c0_54, %c0_55] : memref<128x128xbf16, #tpu.memory_space<vmem>>, vector<128x128xbf16>
    %cst_56 = arith.constant dense<0.000000e+00> : vector<8x128xf32>
    %142 = tpu.matmul %140, %141, %cst_56 {dimension_numbers = #tpu.dot_dimension_numbers<[1], [0], [0], [1], [0, 0, 1, 1], [], []>} : vector<8x128xbf16>, vector<128x128xbf16>, vector<8x128xf32> -> vector<8x128xf32>
    %c0_57 = arith.constant 0 : index
    %c0_58 = arith.constant 0 : index
    %143 = vector.load %arg17[%c0_57, %c0_58] : memref<8x128xf32, #tpu.memory_space<vmem>>, vector<8x128xf32>
    tpu.vector_store %arg17[%c0_57, %c0_58], %47 {strides = array<i32>} : memref<8x128xf32, #tpu.memory_space<vmem>>, vector<8x128xf32>,
    %c0_59 = arith.constant 0 : index
    %c0_60 = arith.constant 0 : index
    %144 = vector.load %arg18[%c0_59, %c0_60] : memref<8x128xf32, #tpu.memory_space<vmem>>, vector<8x128xf32>
    tpu.vector_store %arg18[%c0_59, %c0_60], %142 {strides = array<i32>} : memref<8x128xf32, #tpu.memory_space<vmem>>, vector<8x128xf32>,
    return
  }
  func.func @transform_0(%arg0: i32, %arg1: i32) -> (i32, i32, i32) {
    %c0_i32 = arith.constant 0 : i32
    %c0_i32_0 = arith.constant 0 : i32
    %c0_i32_1 = arith.constant 0 : i32
    return %arg0, %c0_i32, %c0_i32_0 : i32, i32, i32
  }
  func.func @transform_1(%arg0: i32, %arg1: i32) -> (i32, i32) {
    %c0_i32 = arith.constant 0 : i32
    %c0_i32_0 = arith.constant 0 : i32
    %c0_i32_1 = arith.constant 0 : i32
    return %c0_i32, %c0_i32_0 : i32, i32
  }
  func.func @transform_2(%arg0: i32, %arg1: i32) -> (i32, i32, i32) {
    %c0_i32 = arith.constant 0 : i32
    %c0_i32_0 = arith.constant 0 : i32
    %c0_i32_1 = arith.constant 0 : i32
    %c0_i32_2 = arith.constant 0 : i32
    return %c0_i32, %c0_i32_0, %c0_i32_1 : i32, i32, i32
  }
  func.func @transform_3(%arg0: i32, %arg1: i32) -> (i32, i32) {
    %c0_i32 = arith.constant 0 : i32
    %c0_i32_0 = arith.constant 0 : i32
    %c0_i32_1 = arith.constant 0 : i32
    return %c0_i32, %c0_i32_0 : i32, i32
  }
  func.func @transform_4(%arg0: i32, %arg1: i32) -> (i32, i32, i32) {
    %c0_i32 = arith.constant 0 : i32
    %c0_i32_0 = arith.constant 0 : i32
    %c0_i32_1 = arith.constant 0 : i32
    %c0_i32_2 = arith.constant 0 : i32
    return %c0_i32, %c0_i32_0, %c0_i32_1 : i32, i32, i32
  }
  func.func @transform_5(%arg0: i32, %arg1: i32) -> (i32, i32) {
    %c0_i32 = arith.constant 0 : i32
    %c0_i32_0 = arith.constant 0 : i32
    %c0_i32_1 = arith.constant 0 : i32
    return %c0_i32, %c0_i32_0 : i32, i32
  }
  func.func @transform_6(%arg0: i32, %arg1: i32) -> (i32, i32) {
    %c0_i32 = arith.constant 0 : i32
    %c0_i32_0 = arith.constant 0 : i32
    %c0_i32_1 = arith.constant 0 : i32
    return %c0_i32, %c0_i32_0 : i32, i32
  }
  func.func @transform_7(%arg0: i32, %arg1: i32) -> (i32, i32) {
    %c0_i32 = arith.constant 0 : i32
    %c0_i32_0 = arith.constant 0 : i32
    %c0_i32_1 = arith.constant 0 : i32
    return %c0_i32, %c0_i32_0 : i32, i32
  }
  func.func @transform_8(%arg0: i32, %arg1: i32) -> (i32, i32) {
    %c0_i32 = arith.constant 0 : i32
    %c0_i32_0 = arith.constant 0 : i32
    %c0_i32_1 = arith.constant 0 : i32
    return %c0_i32, %c0_i32_0 : i32, i32
  }
  func.func @transform_9(%arg0: i32, %arg1: i32) -> (i32, i32) {
    %c0_i32 = arith.constant 0 : i32
    %c0_i32_0 = arith.constant 0 : i32
    %c0_i32_1 = arith.constant 0 : i32
    return %c0_i32, %c0_i32_0 : i32, i32
  }
  func.func @transform_10(%arg0: i32, %arg1: i32) -> (i32, i32) {
    %c0_i32 = arith.constant 0 : i32
    %c0_i32_0 = arith.constant 0 : i32
    %c0_i32_1 = arith.constant 0 : i32
    return %c0_i32, %c0_i32_0 : i32, i32
  }
  func.func @transform_11(%arg0: i32, %arg1: i32) -> (i32, i32) {
    %c0_i32 = arith.constant 0 : i32
    %c0_i32_0 = arith.constant 0 : i32
    %c0_i32_1 = arith.constant 0 : i32
    return %c0_i32, %c0_i32_0 : i32, i32
  }
  func.func @transform_12(%arg0: i32, %arg1: i32) -> (i32, i32) {
    %c0_i32 = arith.constant 0 : i32
    %c0_i32_0 = arith.constant 0 : i32
    %c0_i32_1 = arith.constant 0 : i32
    return %c0_i32, %c0_i32_0 : i32, i32
  }
  func.func @transform_13(%arg0: i32, %arg1: i32) -> (i32, i32) {
    %c0_i32 = arith.constant 0 : i32
    %c0_i32_0 = arith.constant 0 : i32
    %c0_i32_1 = arith.constant 0 : i32
    return %c0_i32, %c0_i32_0 : i32, i32
  }
  func.func @transform_14(%arg0: i32, %arg1: i32) -> (i32, i32, i32, i32) {
    %c0_i32 = arith.constant 0 : i32
    %c0_i32_0 = arith.constant 0 : i32
    %c0_i32_1 = arith.constant 0 : i32
    return %arg0, %arg1, %c0_i32, %c0_i32_0 : i32, i32, i32, i32
  }
}

</mosaic_0001>

<llo_original>
// kernel: tpu_custom_call.1
$region0: #{tpu_custom_call.1}
  #allocation0 [shape = 'u32[]', space=smem, size = 0x4, offset = 0x4, fixed_abs, tag = 'smem constant byte address 0x4 - core index']
  #allocation1 [shape = 'u32[144,128]{1,0:T(1,128)}', space=vmem, size = 0x12000, scoped, tag = 'internal scratch']
  #allocation2 [shape = 'f32[8,128]{1,0:T(8,128)}', space=vmem, size = 0x1000, scoped, tag = 'scratch operand']
  #allocation3 [shape = 'f32[8,128]{1,0:T(8,128)}', space=vmem, size = 0x1000, scoped, tag = 'scratch operand']
  #allocation4 [shape = 'f32[1,1]{1,0:T(1,128)S(1)}', space=vmem, size = 0x200, scoped, tag = 'scoped memory for tpu_custom_call.1']
  %s0 = inlined_call_operand.hbm [shape: f32[3,8,128], index: 0, kind: input, shape index: {}]
  %s1 = inlined_call_operand.hbm [shape: f32[8,128], index: 1, kind: input, shape index: {}]
  %s2 = inlined_call_operand.hbm [shape: bf16[8,8,128], index: 2, kind: input, shape index: {}]
  %s3 = inlined_call_operand.hbm [shape: f32[8,8], index: 3, kind: input, shape index: {}]
  %s4 = inlined_call_operand.hbm [shape: bf16[8,8,128], index: 4, kind: input, shape index: {}]
  %s5 = inlined_call_operand.hbm [shape: bf16[128,128], index: 5, kind: input, shape index: {}]
  %s6 = inlined_call_operand.hbm [shape: bf16[128,128], index: 6, kind: input, shape index: {}]
  %s7 = inlined_call_operand.vmem [shape: f32[1,128], index: 7, kind: input, shape index: {}]
  %s8 = inlined_call_operand.hbm [shape: bf16[128,384], index: 8, kind: input, shape index: {}]
  %s9 = inlined_call_operand.hbm [shape: bf16[128,384], index: 9, kind: input, shape index: {}]
  %s10 = inlined_call_operand.vmem [shape: f32[1,384], index: 10, kind: input, shape index: {}]
  %s11 = inlined_call_operand.vmem [shape: f32[1,384], index: 11, kind: input, shape index: {}]
  %s12 = inlined_call_operand.vmem [shape: f32[3,128], index: 12, kind: input, shape index: {}]
  %s13 = inlined_call_operand.<no memory space> [shape: f32[1,1], index: 13, kind: input, shape index: {}]
  %s14 = inlined_call_operand.hbm [shape: f32[3,4,8,128], index: 14, kind: output, shape index: {}]
  %s15 = sld [smem:[#allocation0]]
  $region133: #{tpu_custom_call.1} parent=0
    _
  %s17 = ssub.s32 1, %s15
  %s18 = scalar_select 0, %s17, %s15
  %v19 = vstv %s13
  %20 = vst [vmem:[#allocation4] sm:$0x1] %v19
  $region1: #{tpu_custom_call.1} parent=0
    #allocation5 [shape = 'u8[8192]{0}', space=vmem, size = 0x2000, scoped, tag = 'input window, operand 0']
    #allocation6 [shape = 's32[2]{0}', space=sflag, size = 0x8, scoped, tag = 'scoped memory for tpu_custom_call.1']
    #allocation7 [shape = 's32[2]{0}', space=sflag, size = 0x8, scoped, tag = 'scoped memory for tpu_custom_call.1']
    #allocation8 [shape = 'u8[4096]{0}', space=vmem, size = 0x1000, scoped, tag = 'input window, operand 1, single buffered']
    #allocation9 [shape = 's32[1]{0}', space=sflag, size = 0x4, scoped, tag = 'scoped memory for tpu_custom_call.1']
    #allocation10 [shape = 'u8[16384]{0}', space=vmem, size = 0x4000, scoped, tag = 'input window, operand 2, single buffered']
    #allocation11 [shape = 'u8[4096]{0}', space=vmem, size = 0x1000, scoped, tag = 'input window, operand 3, single buffered']
    #allocation12 [shape = 's32[1]{0}', space=sflag, size = 0x4, scoped, tag = 'scoped memory for tpu_custom_call.1']
    #allocation13 [shape = 'u8[16384]{0}', space=vmem, size = 0x4000, scoped, tag = 'input window, operand 4, single buffered']
    #allocation14 [shape = 'u8[32768]{0}', space=vmem, size = 0x8000, scoped, tag = 'input window, operand 5, single buffered']
    #allocation15 [shape = 's32[1]{0}', space=sflag, size = 0x4, scoped, tag = 'scoped memory for tpu_custom_call.1']
    #allocation16 [shape = 'u8[32768]{0}', space=vmem, size = 0x8000, scoped, tag = 'input window, operand 6, single buffered']
    #allocation17 [shape = 'u8[98304]{0}', space=vmem, size = 0x18000, scoped, tag = 'input window, operand 8, single buffered']
    #allocation18 [shape = 's32[1]{0}', space=sflag, size = 0x4, scoped, tag = 'scoped memory for tpu_custom_call.1']
    #allocation19 [shape = 'u8[98304]{0}', space=vmem, size = 0x18000, scoped, tag = 'input window, operand 9, single buffered']
    #allocation20 [shape = 'u8[8192]{0}', space=vmem, size = 0x2000, scoped, tag = 'output window, operand 0']
    %21 = vsyncpa [#allocation6], 0
    %s22 = scalar_lea.sflag [#allocation6], 1
    %23 = vsyncpa %s22, 0
    %24 = vsyncpa [#allocation9], 0
    %25 = vsyncpa [#allocation12], 0
    %26 = vsyncpa [#allocation15], 0
    %27 = vsyncpa [#allocation18], 0
    %28 = vsyncpa [#allocation7], 0
    %s29 = scalar_lea.sflag [#allocation7], 1
    %30 = vsyncpa %s29, 0
    loop: start=0, step=1, limit=14
    $region2: #{tpu_custom_call.1} parent=1 // loop_pre_header
      _
    $region3: #{tpu_custom_call.1} parent=1 // loop_header
      %s32 = sphi 0, %s36
      %p33 = scmp.ge.s32.totalorder %s32, 14
      %s39 = sphi 0, %s51
      %s40 = sphi 0, %s47
      %s41 = sphi 0, %s39
      %s42 = sphi 0, %s40
      %s43 = sphi 0, %s41
      %s44 = sphi 0, %s42
      %s54 = sphi 0, %s56
      %s57 = sphi 0, %s54
      %s58 = sphi 0, %s57
      %s74 = sphi 0, %s58
      %s78 = sphi 0, %s78
      %s80 = sphi 0, %s78
      %s81 = sphi 0, %s80
      %s95 = sphi 0, %s81
      %s99 = sphi 0, %s99
      %s101 = sphi 0, %s99
      %s102 = sphi 0, %s101
      %s116 = sphi 0, %s102
      %s120 = sphi 0, %s120
      %s122 = sphi 0, %s120
      %s123 = sphi 0, %s122
      %s137 = sphi 0, %s123
      %s141 = sphi 0, %s141
      %s143 = sphi 0, %s141
      %s144 = sphi 0, %s143
      %s158 = sphi 0, %s144
      %s162 = sphi 0, %s162
      %s164 = sphi 0, %s162
      %s165 = sphi 0, %s164
      %s179 = sphi 0, %s165
      %s183 = sphi 0, %s183
      %s185 = sphi 0, %s183
      %s186 = sphi 0, %s185
      %s200 = sphi 0, %s186
      %s204 = sphi 0, %s204
      %s206 = sphi 0, %s204
      %s207 = sphi 0, %s206
      %s221 = sphi 0, %s207
      %s225 = sphi 0, %s225
      %s227 = sphi 0, %s225
      %s228 = sphi 0, %s227
      %s242 = sphi 0, %s228
      %s246 = sphi 0, %s246
      %s248 = sphi 0, %s246
      %s249 = sphi 0, %s248
      %s263 = sphi 0, %s249
      %s267 = sphi 0, %s267
      %s269 = sphi 0, %s267
      %s270 = sphi 0, %s269
      %s284 = sphi 0, %s270
      %s288 = sphi 0, %s288
      %s290 = sphi 0, %s288
      %s291 = sphi 0, %s290
      %s305 = sphi 0, %s291
      %s309 = sphi 0, %s309
      %s311 = sphi 0, %s309
      %s312 = sphi 0, %s311
      %s326 = sphi 0, %s312
      %s330 = sphi 0, %s330
      %s332 = sphi 0, %s330
      %s333 = sphi 0, %s332
      %s347 = sphi 0, %s333
      %s355 = sphi 0, %s357
      %s358 = sphi 0, %s355
      %s359 = sphi 0, %s358
      %s375 = sphi 0, %s359
    $region4: #{tpu_custom_call.1} parent=1 // loop_header_branch
      %35 = sbr.rel (%p33) target = $region8
    $region5: #{tpu_custom_call.1} parent=1 // loop_body
      %s37 = ssub.s32 %s32, 1
      %s38 = ssub.s32 %s32, 2
      %s45 = sadd.s32 1, %s40
      %p46 = scmp.ge.s32.totalorder %s45, 4
      %s47 = scalar_select %p46, 0, %s45
      %s48 = sadd.s32 1, %s39
      %s49 = scalar_select %p46, %s48, %s39
      %p50 = scmp.ge.s32.totalorder %s49, 3
      %s51 = scalar_select %p50, 0, %s49
      %s52 = ssub.s32 %s39, %s51
      %p53 = scmp.eq.s32.totalorder %s52, 0
      %s55 = sadd.s32 %s54, 1
      %s56 = scalar_select %p53, %s54, %s55
      %p59 = pneg %p53
      %p60 = scmp.eq.s32.totalorder %s32, 11
      %p61 = por %p59, %p60
      %p62 = scmp.ne.s32.totalorder %s54, %s57
      %p63 = scmp.eq.s32.totalorder %s32, 0
      %p64 = por %p62, %p63
      %p65 = scmp.ne.s32.totalorder %s54, %s57
      %p66 = scmp.eq.s32.totalorder %s37, 11
      %p67 = por %p65, %p66
      %p68 = scmp.ne.s32.totalorder %s57, %s58
      %p69 = scmp.eq.s32.totalorder %s37, 0
      %p70 = por %p68, %p69
      %p71 = scmp.ne.s32.totalorder %s57, %s58
      %p72 = scmp.eq.s32.totalorder %s38, 11
      %p73 = por %p71, %p72
      %p75 = scmp.ne.s32.totalorder %s58, %s74
      %p76 = scmp.eq.s32.totalorder %s38, 0
      %p77 = por %p75, %p76
      %s79 = sadd.s32 %s78, 1
      %p82 = scmp.eq.s32.totalorder %s32, 11
      %p83 = scmp.ne.s32.totalorder %s78, %s80
      %p84 = scmp.eq.s32.totalorder %s32, 0
      %p85 = por %p83, %p84
      %p86 = scmp.ne.s32.totalorder %s78, %s80
      %p87 = scmp.eq.s32.totalorder %s37, 11
      %p88 = por %p86, %p87
      %p89 = scmp.ne.s32.totalorder %s80, %s81
      %p90 = scmp.eq.s32.totalorder %s37, 0
      %p91 = por %p89, %p90
      %p92 = scmp.ne.s32.totalorder %s80, %s81
      %p93 = scmp.eq.s32.totalorder %s38, 11
      %p94 = por %p92, %p93
      %p96 = scmp.ne.s32.totalorder %s81, %s95
      %p97 = scmp.eq.s32.totalorder %s38, 0
      %p98 = por %p96, %p97
      %s100 = sadd.s32 %s99, 1
      %p103 = scmp.eq.s32.totalorder %s32, 11
      %p104 = scmp.ne.s32.totalorder %s99, %s101
      %p105 = scmp.eq.s32.totalorder %s32, 0
      %p106 = por %p104, %p105
      %p107 = scmp.ne.s32.totalorder %s99, %s101
      %p108 = scmp.eq.s32.totalorder %s37, 11
      %p109 = por %p107, %p108
      %p110 = scmp.ne.s32.totalorder %s101, %s102
      %p111 = scmp.eq.s32.totalorder %s37, 0
      %p112 = por %p110, %p111
      %p113 = scmp.ne.s32.totalorder %s101, %s102
      %p114 = scmp.eq.s32.totalorder %s38, 11
      %p115 = por %p113, %p114
      %p117 = scmp.ne.s32.totalorder %s102, %s116
      %p118 = scmp.eq.s32.totalorder %s38, 0
      %p119 = por %p117, %p118
      %s121 = sadd.s32 %s120, 1
      %p124 = scmp.eq.s32.totalorder %s32, 11
      %p125 = scmp.ne.s32.totalorder %s120, %s122
      %p126 = scmp.eq.s32.totalorder %s32, 0
      %p127 = por %p125, %p126
      %p128 = scmp.ne.s32.totalorder %s120, %s122
      %p129 = scmp.eq.s32.totalorder %s37, 11
      %p130 = por %p128, %p129
      %p131 = scmp.ne.s32.totalorder %s122, %s123
      %p132 = scmp.eq.s32.totalorder %s37, 0
      %p133 = por %p131, %p132
      %p134 = scmp.ne.s32.totalorder %s122, %s123
      %p135 = scmp.eq.s32.totalorder %s38, 11
      %p136 = por %p134, %p135
      %p138 = scmp.ne.s32.totalorder %s123, %s137
      %p139 = scmp.eq.s32.totalorder %s38, 0
      %p140 = por %p138, %p139
      %s142 = sadd.s32 %s141, 1
      %p145 = scmp.eq.s32.totalorder %s32, 11
      %p146 = scmp.ne.s32.totalorder %s141, %s143
      %p147 = scmp.eq.s32.totalorder %s32, 0
      %p148 = por %p146, %p147
      %p149 = scmp.ne.s32.totalorder %s141, %s143
      %p150 = scmp.eq.s32.totalorder %s37, 11
      %p151 = por %p149, %p150
      %p152 = scmp.ne.s32.totalorder %s143, %s144
      %p153 = scmp.eq.s32.totalorder %s37, 0
      %p154 = por %p152, %p153
      %p155 = scmp.ne.s32.totalorder %s143, %s144
      %p156 = scmp.eq.s32.totalorder %s38, 11
      %p157 = por %p155, %p156
      %p159 = scmp.ne.s32.totalorder %s144, %s158
      %p160 = scmp.eq.s32.totalorder %s38, 0
      %p161 = por %p159, %p160
      %s163 = sadd.s32 %s162, 1
      %p166 = scmp.eq.s32.totalorder %s32, 11
      %p167 = scmp.ne.s32.totalorder %s162, %s164
      %p168 = scmp.eq.s32.totalorder %s32, 0
      %p169 = por %p167, %p168
      %p170 = scmp.ne.s32.totalorder %s162, %s164
      %p171 = scmp.eq.s32.totalorder %s37, 11
      %p172 = por %p170, %p171
      %p173 = scmp.ne.s32.totalorder %s164, %s165
      %p174 = scmp.eq.s32.totalorder %s37, 0
      %p175 = por %p173, %p174
      %p176 = scmp.ne.s32.totalorder %s164, %s165
      %p177 = scmp.eq.s32.totalorder %s38, 11
      %p178 = por %p176, %p177
      %p180 = scmp.ne.s32.totalorder %s165, %s179
      %p181 = scmp.eq.s32.totalorder %s38, 0
      %p182 = por %p180, %p181
      %s184 = sadd.s32 %s183, 1
      %p187 = scmp.eq.s32.totalorder %s32, 11
      %p188 = scmp.ne.s32.totalorder %s183, %s185
      %p189 = scmp.eq.s32.totalorder %s32, 0
      %p190 = por %p188, %p189
      %p191 = scmp.ne.s32.totalorder %s183, %s185
      %p192 = scmp.eq.s32.totalorder %s37, 11
      %p193 = por %p191, %p192
      %p194 = scmp.ne.s32.totalorder %s185, %s186
      %p195 = scmp.eq.s32.totalorder %s37, 0
      %p196 = por %p194, %p195
      %p197 = scmp.ne.s32.totalorder %s185, %s186
      %p198 = scmp.eq.s32.totalorder %s38, 11
      %p199 = por %p197, %p198
      %p201 = scmp.ne.s32.totalorder %s186, %s200
      %p202 = scmp.eq.s32.totalorder %s38, 0
      %p203 = por %p201, %p202
      %s205 = sadd.s32 %s204, 1
      %p208 = scmp.eq.s32.totalorder %s32, 11
      %p209 = scmp.ne.s32.totalorder %s204, %s206
      %p210 = scmp.eq.s32.totalorder %s32, 0
      %p211 = por %p209, %p210
      %p212 = scmp.ne.s32.totalorder %s204, %s206
      %p213 = scmp.eq.s32.totalorder %s37, 11
      %p214 = por %p212, %p213
      %p215 = scmp.ne.s32.totalorder %s206, %s207
      %p216 = scmp.eq.s32.totalorder %s37, 0
      %p217 = por %p215, %p216
      %p218 = scmp.ne.s32.totalorder %s206, %s207
      %p219 = scmp.eq.s32.totalorder %s38, 11
      %p220 = por %p218, %p219
      %p222 = scmp.ne.s32.totalorder %s207, %s221
      %p223 = scmp.eq.s32.totalorder %s38, 0
      %p224 = por %p222, %p223
      %s226 = sadd.s32 %s225, 1
      %p229 = scmp.eq.s32.totalorder %s32, 11
      %p230 = scmp.ne.s32.totalorder %s225, %s227
      %p231 = scmp.eq.s32.totalorder %s32, 0
      %p232 = por %p230, %p231
      %p233 = scmp.ne.s32.totalorder %s225, %s227
      %p234 = scmp.eq.s32.totalorder %s37, 11
      %p235 = por %p233, %p234
      %p236 = scmp.ne.s32.totalorder %s227, %s228
      %p237 = scmp.eq.s32.totalorder %s37, 0
      %p238 = por %p236, %p237
      %p239 = scmp.ne.s32.totalorder %s227, %s228
      %p240 = scmp.eq.s32.totalorder %s38, 11
      %p241 = por %p239, %p240
      %p243 = scmp.ne.s32.totalorder %s228, %s242
      %p244 = scmp.eq.s32.totalorder %s38, 0
      %p245 = por %p243, %p244
      %s247 = sadd.s32 %s246, 1
      %p250 = scmp.eq.s32.totalorder %s32, 11
      %p251 = scmp.ne.s32.totalorder %s246, %s248
      %p252 = scmp.eq.s32.totalorder %s32, 0
      %p253 = por %p251, %p252
      %p254 = scmp.ne.s32.totalorder %s246, %s248
      %p255 = scmp.eq.s32.totalorder %s37, 11
      %p256 = por %p254, %p255
      %p257 = scmp.ne.s32.totalorder %s248, %s249
      %p258 = scmp.eq.s32.totalorder %s37, 0
      %p259 = por %p257, %p258
      %p260 = scmp.ne.s32.totalorder %s248, %s249
      %p261 = scmp.eq.s32.totalorder %s38, 11
      %p262 = por %p260, %p261
      %p264 = scmp.ne.s32.totalorder %s249, %s263
      %p265 = scmp.eq.s32.totalorder %s38, 0
      %p266 = por %p264, %p265
      %s268 = sadd.s32 %s267, 1
      %p271 = scmp.eq.s32.totalorder %s32, 11
      %p272 = scmp.ne.s32.totalorder %s267, %s269
      %p273 = scmp.eq.s32.totalorder %s32, 0
      %p274 = por %p272, %p273
      %p275 = scmp.ne.s32.totalorder %s267, %s269
      %p276 = scmp.eq.s32.totalorder %s37, 11
      %p277 = por %p275, %p276
      %p278 = scmp.ne.s32.totalorder %s269, %s270
      %p279 = scmp.eq.s32.totalorder %s37, 0
      %p280 = por %p278, %p279
      %p281 = scmp.ne.s32.totalorder %s269, %s270
      %p282 = scmp.eq.s32.totalorder %s38, 11
      %p283 = por %p281, %p282
      %p285 = scmp.ne.s32.totalorder %s270, %s284
      %p286 = scmp.eq.s32.totalorder %s38, 0
      %p287 = por %p285, %p286
      %s289 = sadd.s32 %s288, 1
      %p292 = scmp.eq.s32.totalorder %s32, 11
      %p293 = scmp.ne.s32.totalorder %s288, %s290
      %p294 = scmp.eq.s32.totalorder %s32, 0
      %p295 = por %p293, %p294
      %p296 = scmp.ne.s32.totalorder %s288, %s290
      %p297 = scmp.eq.s32.totalorder %s37, 11
      %p298 = por %p296, %p297
      %p299 = scmp.ne.s32.totalorder %s290, %s291
      %p300 = scmp.eq.s32.totalorder %s37, 0
      %p301 = por %p299, %p300
      %p302 = scmp.ne.s32.totalorder %s290, %s291
      %p303 = scmp.eq.s32.totalorder %s38, 11
      %p304 = por %p302, %p303
      %p306 = scmp.ne.s32.totalorder %s291, %s305
      %p307 = scmp.eq.s32.totalorder %s38, 0
      %p308 = por %p306, %p307
      %s310 = sadd.s32 %s309, 1
      %p313 = scmp.eq.s32.totalorder %s32, 11
      %p314 = scmp.ne.s32.totalorder %s309, %s311
      %p315 = scmp.eq.s32.totalorder %s32, 0
      %p316 = por %p314, %p315
      %p317 = scmp.ne.s32.totalorder %s309, %s311
      %p318 = scmp.eq.s32.totalorder %s37, 11
      %p319 = por %p317, %p318
      %p320 = scmp.ne.s32.totalorder %s311, %s312
      %p321 = scmp.eq.s32.totalorder %s37, 0
      %p322 = por %p320, %p321
      %p323 = scmp.ne.s32.totalorder %s311, %s312
      %p324 = scmp.eq.s32.totalorder %s38, 11
      %p325 = por %p323, %p324
      %p327 = scmp.ne.s32.totalorder %s312, %s326
      %p328 = scmp.eq.s32.totalorder %s38, 0
      %p329 = por %p327, %p328
      %s331 = sadd.s32 %s330, 1
      %p334 = scmp.eq.s32.totalorder %s32, 11
      %p335 = scmp.ne.s32.totalorder %s330, %s332
      %p336 = scmp.eq.s32.totalorder %s32, 0
      %p337 = por %p335, %p336
      %p338 = scmp.ne.s32.totalorder %s330, %s332
      %p339 = scmp.eq.s32.totalorder %s37, 11
      %p340 = por %p338, %p339
      %p341 = scmp.ne.s32.totalorder %s332, %s333
      %p342 = scmp.eq.s32.totalorder %s37, 0
      %p343 = por %p341, %p342
      %p344 = scmp.ne.s32.totalorder %s332, %s333
      %p345 = scmp.eq.s32.totalorder %s38, 11
      %p346 = por %p344, %p345
      %p348 = scmp.ne.s32.totalorder %s333, %s347
      %p349 = scmp.eq.s32.totalorder %s38, 0
      %p350 = por %p348, %p349
      %s351 = ssub.s32 %s39, %s51
      %s352 = ssub.s32 %s40, %s47
      %s353 = sor.u32 %s351, %s352
      %p354 = scmp.eq.s32.totalorder %s353, 0
      %s356 = sadd.s32 %s355, 1
      %s357 = scalar_select %p354, %s355, %s356
      %p360 = pneg %p354
      %p361 = scmp.eq.s32.totalorder %s32, 11
      %p362 = por %p360, %p361
      %p363 = scmp.ne.s32.totalorder %s355, %s358
      %p364 = scmp.eq.s32.totalorder %s32, 0
      %p365 = por %p363, %p364
      %p366 = scmp.ne.s32.totalorder %s355, %s358
      %p367 = scmp.eq.s32.totalorder %s37, 11
      %p368 = por %p366, %p367
      %p369 = scmp.ne.s32.totalorder %s358, %s359
      %p370 = scmp.eq.s32.totalorder %s37, 0
      %p371 = por %p369, %p370
      %p372 = scmp.ne.s32.totalorder %s358, %s359
      %p373 = scmp.eq.s32.totalorder %s38, 11
      %p374 = por %p372, %p373
      %p376 = scmp.ne.s32.totalorder %s359, %s375
      %p377 = scmp.eq.s32.totalorder %s38, 0
      %p378 = por %p376, %p377
      %p379 = scmp.le.s32.totalorder 1, %s32
      %p380 = scmp.lt.s32.totalorder %s32, 13
      %p381 = pnand %p379, %p380
      %p382 = pneg %p381
      // Predicated region
      $region9: #{tpu_custom_call.1} parent=5 // pred_check
        _
      $region10: #{tpu_custom_call.1} parent=5 // pred_check_branch
        %384 = sbr.rel (%p381) target = $region12
      $region11: #{tpu_custom_call.1} parent=5 // pred_region
        %s385 = ssub.s32 %s32, 1
        // Predicated region
        $region13: #{tpu_custom_call.1} parent=11 // pred_check
          %p386 = pneg %p91
        $region14: #{tpu_custom_call.1} parent=11 // pred_check_branch
          %388 = sbr.rel (%p386) target = $region16
        $region15: #{tpu_custom_call.1} parent=11 // pred_region
          %s390 = ssub.s32 128, 128
          %391 = vsyncadd [#allocation9], %s390
          %s393 = sshll.u32 [#allocation8], 4
          %s394 = int_to_ptr.vmem [resolvable:$true] %s393
          %396 = dma.hbm_to_vmem [thread:$0]  %s1, 128, %s394, [#allocation9]
        $region16: #{tpu_custom_call.1} parent=11 // pred_fallthru
          _
        // Predicated region
        $region17: #{tpu_custom_call.1} parent=11 // pred_check
          %p397 = pneg %p112
        $region18: #{tpu_custom_call.1} parent=11 // pred_check_branch
          %399 = sbr.rel (%p397) target = $region20
        $region19: #{tpu_custom_call.1} parent=11 // pred_region
          %s401 = ssub.s32 512, 512
          %402 = vsyncadd [#allocation9], %s401
          %s403 = sshll.u32 [#allocation10], 4
          %s404 = int_to_ptr.vmem [resolvable:$true] %s403
          %409 = dma.hbm_to_vmem [thread:$0]  %s2, 512, %s404, [#allocation9], 64, 64, 4
        $region20: #{tpu_custom_call.1} parent=11 // pred_fallthru
          _
        // Predicated region
        $region21: #{tpu_custom_call.1} parent=11 // pred_check
          %p410 = pneg %p133
        $region22: #{tpu_custom_call.1} parent=11 // pred_check_branch
          %412 = sbr.rel (%p410) target = $region24
        $region23: #{tpu_custom_call.1} parent=11 // pred_region
          %s414 = ssub.s32 128, 128
          %415 = vsyncadd [#allocation12], %s414
          %s417 = sshll.u32 [#allocation11], 4
          %s418 = int_to_ptr.vmem [resolvable:$true] %s417
          %420 = dma.hbm_to_vmem [thread:$0]  %s3, 128, %s418, [#allocation12]
        $region24: #{tpu_custom_call.1} parent=11 // pred_fallthru
          _
        // Predicated region
        $region25: #{tpu_custom_call.1} parent=11 // pred_check
          %p421 = pneg %p154
        $region26: #{tpu_custom_call.1} parent=11 // pred_check_branch
          %423 = sbr.rel (%p421) target = $region28
        $region27: #{tpu_custom_call.1} parent=11 // pred_region
          %s425 = ssub.s32 512, 512
          %426 = vsyncadd [#allocation12], %s425
          %s427 = sshll.u32 [#allocation13], 4
          %s428 = int_to_ptr.vmem [resolvable:$true] %s427
          %433 = dma.hbm_to_vmem [thread:$0]  %s4, 512, %s428, [#allocation12], 64, 64, 4
        $region28: #{tpu_custom_call.1} parent=11 // pred_fallthru
          _
        // Predicated region
        $region29: #{tpu_custom_call.1} parent=11 // pred_check
          %p434 = pneg %p175
        $region30: #{tpu_custom_call.1} parent=11 // pred_check_branch
          %436 = sbr.rel (%p434) target = $region32
        $region31: #{tpu_custom_call.1} parent=11 // pred_region
          %s438 = ssub.s32 1024, 1024
          %439 = vsyncadd [#allocation15], %s438
          %s440 = sshll.u32 [#allocation14], 4
          %s441 = int_to_ptr.vmem [resolvable:$true] %s440
          %446 = dma.hbm_to_vmem [thread:$0]  %s5, 1024, %s441, [#allocation15], 64, 64, 4
        $region32: #{tpu_custom_call.1} parent=11 // pred_fallthru
          _
        // Predicated region
        $region33: #{tpu_custom_call.1} parent=11 // pred_check
          %p447 = pneg %p196
        $region34: #{tpu_custom_call.1} parent=11 // pred_check_branch
          %449 = sbr.rel (%p447) target = $region36
        $region35: #{tpu_custom_call.1} parent=11 // pred_region
          %s451 = ssub.s32 1024, 1024
          %452 = vsyncadd [#allocation15], %s451
          %s453 = sshll.u32 [#allocation16], 4
          %s454 = int_to_ptr.vmem [resolvable:$true] %s453
          %459 = dma.hbm_to_vmem [thread:$0]  %s6, 1024, %s454, [#allocation15], 64, 64, 4
        $region36: #{tpu_custom_call.1} parent=11 // pred_fallthru
          _
        // Predicated region
        $region37: #{tpu_custom_call.1} parent=11 // pred_check
          %p460 = pneg %p217
        $region38: #{tpu_custom_call.1} parent=11 // pred_check_branch
          %462 = sbr.rel (%p460) target = $region40
        $region39: #{tpu_custom_call.1} parent=11 // pred_region
          _
        $region40: #{tpu_custom_call.1} parent=11 // pred_fallthru
          _
        // Predicated region
        $region41: #{tpu_custom_call.1} parent=11 // pred_check
          %p463 = pneg %p238
        $region42: #{tpu_custom_call.1} parent=11 // pred_check_branch
          %465 = sbr.rel (%p463) target = $region44
        $region43: #{tpu_custom_call.1} parent=11 // pred_region
          %s467 = ssub.s32 3072, 3072
          %468 = vsyncadd [#allocation18], %s467
          %s469 = sshll.u32 [#allocation17], 4
          %s470 = int_to_ptr.vmem [resolvable:$true] %s469
          %475 = dma.hbm_to_vmem [thread:$0]  %s8, 3072, %s470, [#allocation18], 192, 192, 12
        $region44: #{tpu_custom_call.1} parent=11 // pred_fallthru
          _
        // Predicated region
        $region45: #{tpu_custom_call.1} parent=11 // pred_check
          %p476 = pneg %p259
        $region46: #{tpu_custom_call.1} parent=11 // pred_check_branch
          %478 = sbr.rel (%p476) target = $region48
        $region47: #{tpu_custom_call.1} parent=11 // pred_region
          %s480 = ssub.s32 3072, 3072
          %481 = vsyncadd [#allocation18], %s480
          %s482 = sshll.u32 [#allocation19], 4
          %s483 = int_to_ptr.vmem [resolvable:$true] %s482
          %488 = dma.hbm_to_vmem [thread:$0]  %s9, 3072, %s483, [#allocation18], 192, 192, 12
        $region48: #{tpu_custom_call.1} parent=11 // pred_fallthru
          _
        // Predicated region
        $region49: #{tpu_custom_call.1} parent=11 // pred_check
          %p489 = pneg %p280
        $region50: #{tpu_custom_call.1} parent=11 // pred_check_branch
          %491 = sbr.rel (%p489) target = $region52
        $region51: #{tpu_custom_call.1} parent=11 // pred_region
          _
        $region52: #{tpu_custom_call.1} parent=11 // pred_fallthru
          _
        // Predicated region
        $region53: #{tpu_custom_call.1} parent=11 // pred_check
          %p492 = pneg %p301
        $region54: #{tpu_custom_call.1} parent=11 // pred_check_branch
          %494 = sbr.rel (%p492) target = $region56
        $region55: #{tpu_custom_call.1} parent=11 // pred_region
          _
        $region56: #{tpu_custom_call.1} parent=11 // pred_fallthru
          _
        // Predicated region
        $region57: #{tpu_custom_call.1} parent=11 // pred_check
          %p495 = pneg %p322
        $region58: #{tpu_custom_call.1} parent=11 // pred_check_branch
          %497 = sbr.rel (%p495) target = $region60
        $region59: #{tpu_custom_call.1} parent=11 // pred_region
          _
        $region60: #{tpu_custom_call.1} parent=11 // pred_fallthru
          _
        // Predicated region
        $region61: #{tpu_custom_call.1} parent=11 // pred_check
          %p498 = pneg %p343
        $region62: #{tpu_custom_call.1} parent=11 // pred_check_branch
          %500 = sbr.rel (%p498) target = $region64
        $region63: #{tpu_custom_call.1} parent=11 // pred_region
          _
        $region64: #{tpu_custom_call.1} parent=11 // pred_fallthru
          _
      $region12: #{tpu_custom_call.1} parent=5 // pred_fallthru
        _
      %p501 = scmp.lt.s32.totalorder %s32, 12
      // Predicated region
      $region65: #{tpu_custom_call.1} parent=5 // pred_check
        %p502 = pneg %p501
      $region66: #{tpu_custom_call.1} parent=5 // pred_check_branch
        %504 = sbr.rel (%p502) target = $region68
      $region67: #{tpu_custom_call.1} parent=5 // pred_region
        // Predicated region
        $region69: #{tpu_custom_call.1} parent=67 // pred_check
          %p505 = pneg %p64
        $region70: #{tpu_custom_call.1} parent=67 // pred_check_branch
          %507 = sbr.rel (%p505) target = $region72
        $region71: #{tpu_custom_call.1} parent=67 // pred_region
          %s508 = sand.u32 %s54, 1
          %s509 = scalar_lea.sflag [#allocation6], %s508
          %s510 = sand.u32 %s54, 1
          %s511 = smul.addr %s510, 8
          %s512 = scalar_lea.vmem [#allocation5], %s511
          %s514 = ssub.s32 128, 128
          %515 = vsyncadd %s509, %s514
          %s516 = smul.addr %s39, 128
          %s517 = scalar_lea.hbm %s0, %s516
          %s519 = sshll.u32 %s512, 4
          %s520 = int_to_ptr.vmem [resolvable:$true] %s519
          %522 = dma.hbm_to_vmem [thread:$0]  %s517, 128, %s520, %s509
        $region72: #{tpu_custom_call.1} parent=67 // pred_fallthru
          _
      $region68: #{tpu_custom_call.1} parent=5 // pred_fallthru
        _
      %p523 = scmp.le.s32.totalorder 1, %s32
      %p524 = scmp.lt.s32.totalorder %s32, 13
      %p525 = pnand %p523, %p524
      %p526 = pneg %p525
      // Predicated region
      $region73: #{tpu_custom_call.1} parent=5 // pred_check
        _
      $region74: #{tpu_custom_call.1} parent=5 // pred_check_branch
        %528 = sbr.rel (%p525) target = $region76
      $region75: #{tpu_custom_call.1} parent=5 // pred_region
        %s529 = ssub.s32 %s32, 1
        %s530 = sand.u32 %s57, 1
        %s531 = scalar_lea.sflag [#allocation6], %s530
        %s532 = sand.u32 %s57, 1
        %s533 = smul.addr %s532, 8
        %s534 = scalar_lea.vmem [#allocation5], %s533
        // Predicated region
        $region77: #{tpu_custom_call.1} parent=75 // pred_check
          %p535 = pneg %p70
        $region78: #{tpu_custom_call.1} parent=75 // pred_check_branch
          %537 = sbr.rel (%p535) target = $region80
        $region79: #{tpu_custom_call.1} parent=75 // pred_region
          %538 = dma.done %s531, 128
        $region80: #{tpu_custom_call.1} parent=75 // pred_fallthru
          _
        // Predicated region
        $region81: #{tpu_custom_call.1} parent=75 // pred_check
          %p539 = pneg %p91
        $region82: #{tpu_custom_call.1} parent=75 // pred_check_branch
          %541 = sbr.rel (%p539) target = $region84
        $region83: #{tpu_custom_call.1} parent=75 // pred_region
          %542 = dma.done [#allocation9], 128
        $region84: #{tpu_custom_call.1} parent=75 // pred_fallthru
          _
        // Predicated region
        $region85: #{tpu_custom_call.1} parent=75 // pred_check
          %p543 = pneg %p112
        $region86: #{tpu_custom_call.1} parent=75 // pred_check_branch
          %545 = sbr.rel (%p543) target = $region88
        $region87: #{tpu_custom_call.1} parent=75 // pred_region
          %546 = dma.done [#allocation9], 512
        $region88: #{tpu_custom_call.1} parent=75 // pred_fallthru
          _
        // Predicated region
        $region89: #{tpu_custom_call.1} parent=75 // pred_check
          %p547 = pneg %p133
        $region90: #{tpu_custom_call.1} parent=75 // pred_check_branch
          %549 = sbr.rel (%p547) target = $region92
        $region91: #{tpu_custom_call.1} parent=75 // pred_region
          %550 = dma.done [#allocation12], 128
        $region92: #{tpu_custom_call.1} parent=75 // pred_fallthru
          _
        // Predicated region
        $region93: #{tpu_custom_call.1} parent=75 // pred_check
          %p551 = pneg %p154
        $region94: #{tpu_custom_call.1} parent=75 // pred_check_branch
          %553 = sbr.rel (%p551) target = $region96
        $region95: #{tpu_custom_call.1} parent=75 // pred_region
          %554 = dma.done [#allocation12], 512
        $region96: #{tpu_custom_call.1} parent=75 // pred_fallthru
          _
        // Predicated region
        $region97: #{tpu_custom_call.1} parent=75 // pred_check
          %p555 = pneg %p175
        $region98: #{tpu_custom_call.1} parent=75 // pred_check_branch
          %557 = sbr.rel (%p555) target = $region100
        $region99: #{tpu_custom_call.1} parent=75 // pred_region
          %558 = dma.done [#allocation15], 1024
        $region100: #{tpu_custom_call.1} parent=75 // pred_fallthru
          _
        // Predicated region
        $region101: #{tpu_custom_call.1} parent=75 // pred_check
          %p559 = pneg %p196
        $region102: #{tpu_custom_call.1} parent=75 // pred_check_branch
          %561 = sbr.rel (%p559) target = $region104
        $region103: #{tpu_custom_call.1} parent=75 // pred_region
          %562 = dma.done [#allocation15], 1024
        $region104: #{tpu_custom_call.1} parent=75 // pred_fallthru
          _
        // Predicated region
        $region105: #{tpu_custom_call.1} parent=75 // pred_check
          %p563 = pneg %p238
        $region106: #{tpu_custom_call.1} parent=75 // pred_check_branch
          %565 = sbr.rel (%p563) target = $region108
        $region107: #{tpu_custom_call.1} parent=75 // pred_region
          %566 = dma.done [#allocation18], 3072
        $region108: #{tpu_custom_call.1} parent=75 // pred_fallthru
          _
        // Predicated region
        $region109: #{tpu_custom_call.1} parent=75 // pred_check
          %p567 = pneg %p259
        $region110: #{tpu_custom_call.1} parent=75 // pred_check_branch
          %569 = sbr.rel (%p567) target = $region112
        $region111: #{tpu_custom_call.1} parent=75 // pred_region
          %570 = dma.done [#allocation18], 3072
        $region112: #{tpu_custom_call.1} parent=75 // pred_fallthru
          _
        %s571 = sand.u32 %s57, 1
        %s572 = scalar_lea.sflag [#allocation6], %s571
        %s573 = sand.u32 %s57, 1
        %s574 = smul.addr %s573, 8
        %s575 = scalar_lea.vmem [#allocation5], %s574
        %p576 = pneg %p70
        %p577 = pneg %p67
        %p578 = pneg %p91
        %p579 = pneg %p88
        %p580 = pneg %p112
        %p581 = pneg %p109
        %p582 = pneg %p133
        %p583 = pneg %p130
        %p584 = pneg %p154
        %p585 = pneg %p151
        %p586 = pneg %p175
        %p587 = pneg %p172
        %p588 = pneg %p196
        %p589 = pneg %p193
        %p590 = pneg %p217
        %p591 = pneg %p214
        %p592 = pneg %p238
        %p593 = pneg %p235
        %p594 = pneg %p259
        %p595 = pneg %p256
        %p596 = pneg %p280
        %p597 = pneg %p277
        %p598 = pneg %p301
        %p599 = pneg %p298
        %p600 = pneg %p322
        %p601 = pneg %p319
        %p602 = pneg %p343
        %p603 = pneg %p340
        %p604 = pneg %p371
        %p605 = pneg %p368
        %s606 = sand.u32 %s358, 1
        %s607 = scalar_lea.sflag [#allocation7], %s606
        %s608 = sand.u32 %s358, 1
        %s609 = smul.addr %s608, 8
        %s610 = scalar_lea.vmem [#allocation20], %s609
        %p612 = scmp.eq.s32.totalorder %s41, 0
        %p613 = scmp.eq.s32.totalorder %s42, 0
        %p614 = pnand %p612, %p613
        %p615 = pneg %p614
        // Predicated region
        $region113: #{tpu_custom_call.1} parent=75 // pred_check
          _
        $region114: #{tpu_custom_call.1} parent=75 // pred_check_branch
          %617 = sbr.rel (%p614) target = $region116
        $region115: #{tpu_custom_call.1} parent=75 // pred_region
          %v618 = vld [vmem:[#allocation8] sm:$0xff]
          %619 = vst [vmem:[#allocation2] sm:$0xff] %v618
        $region116: #{tpu_custom_call.1} parent=75 // pred_fallthru
          _
        // Predicated region
        $region117: #{tpu_custom_call.1} parent=75 // pred_check
          %p620 = pneg %p613
        $region118: #{tpu_custom_call.1} parent=75 // pred_check_branch
          %622 = sbr.rel (%p620) target = $region120
        $region119: #{tpu_custom_call.1} parent=75 // pred_region
          %v623 = vld [vmem:[%s534] sm:$0xff]
          %624 = vst [vmem:[#allocation3] sm:$0xff] %v623
        $region120: #{tpu_custom_call.1} parent=75 // pred_fallthru
          _
        %v625 = vld [vmem:[#allocation3] sm:$0xff]
        %v626 = vld [vmem:[#allocation2] sm:$0xff]
        %v627 = vpack.c.bf16 %v625, %v625
        %v628 = vpack.c.bf16 %v626, %v626
        %v629 = vld [vmem:[#allocation17] sm:$0xff]
        %v630 = vld [vmem:[#allocation17 + $0x8] sm:$0xf]
        %v631 = vld [vmem:[#allocation17 + $0xc] sm:$0xff]
        %v632 = vld [vmem:[#allocation17 + $0x14] sm:$0xf]
        %v633 = vld [vmem:[#allocation17 + $0x18] sm:$0xff]
        %v634 = vld [vmem:[#allocation17 + $0x20] sm:$0xf]
        %v635 = vld [vmem:[#allocation17 + $0x24] sm:$0xff]
        %v636 = vld [vmem:[#allocation17 + $0x2c] sm:$0xf]
        %v637 = vld [vmem:[#allocation17 + $0x30] sm:$0xff]
        %v638 = vld [vmem:[#allocation17 + $0x38] sm:$0xf]
        %v639 = vld [vmem:[#allocation17 + $0x3c] sm:$0xff]
        %v640 = vld [vmem:[#allocation17 + $0x44] sm:$0xf]
        %v641 = vld [vmem:[#allocation17 + $0x48] sm:$0xff]
        %v642 = vld [vmem:[#allocation17 + $0x50] sm:$0xf]
        %v643 = vld [vmem:[#allocation17 + $0x54] sm:$0xff]
        %v644 = vld [vmem:[#allocation17 + $0x5c] sm:$0xf]
        %v645 = vld [vmem:[#allocation17 + $0x60] sm:$0xff]
        %v646 = vld [vmem:[#allocation17 + $0x68] sm:$0xf]
        %v647 = vld [vmem:[#allocation17 + $0x6c] sm:$0xff]
        %v648 = vld [vmem:[#allocation17 + $0x74] sm:$0xf]
        %v649 = vld [vmem:[#allocation17 + $0x78] sm:$0xff]
        %v650 = vld [vmem:[#allocation17 + $0x80] sm:$0xf]
        %v651 = vld [vmem:[#allocation17 + $0x84] sm:$0xff]
        %v652 = vld [vmem:[#allocation17 + $0x8c] sm:$0xf]
        %v653 = vld [vmem:[#allocation17 + $0x90] sm:$0xff]
        %v654 = vld [vmem:[#allocation17 + $0x98] sm:$0xf]
        %v655 = vld [vmem:[#allocation17 + $0x9c] sm:$0xff]
        %v656 = vld [vmem:[#allocation17 + $0xa4] sm:$0xf]
        %v657 = vld [vmem:[#allocation17 + $0xa8] sm:$0xff]
        %v658 = vld [vmem:[#allocation17 + $0xb0] sm:$0xf]
        %v659 = vld [vmem:[#allocation17 + $0xb4] sm:$0xff]
        %v660 = vld [vmem:[#allocation17 + $0xbc] sm:$0xf]
        %v661 = vld [vmem:[%s10] sm:$0x7]
        %v663 = vlaneseq
        %v664 = vshrl.u32 %v663, 7
        %v665 = vsub.s32 0, %v664
        %v666 = vrot.slane %v661, %v665
        %v667 = vlaneseq
        %v668 = vshrl.u32 %v667, 7
        %v669 = vsub.s32 1, %v668
        %v670 = vrot.slane %v661, %v669
        %v671 = vlaneseq
        %v672 = vshrl.u32 %v671, 7
        %v673 = vsub.s32 2, %v672
        %v674 = vrot.slane %v661, %v673
        %v710 = vunpack.c.l.b16 %v629
        %v711 = vunpack.c.h.b16 %v629
        %v712 = vunpack.c.l.b16 %v630
        %v713 = vunpack.c.l.b16 %v631
        %v714 = vunpack.c.h.b16 %v631
        %v715 = vunpack.c.l.b16 %v632
        %v716 = vunpack.c.l.b16 %v633
        %v717 = vunpack.c.h.b16 %v633
        %v718 = vunpack.c.l.b16 %v634
        %v719 = vunpack.c.l.b16 %v635
        %v720 = vunpack.c.h.b16 %v635
        %v721 = vunpack.c.l.b16 %v636
        %v722 = vunpack.c.l.b16 %v637
        %v723 = vunpack.c.h.b16 %v637
        %v724 = vunpack.c.l.b16 %v638
        %v725 = vunpack.c.l.b16 %v639
        %v726 = vunpack.c.h.b16 %v639
        %v727 = vunpack.c.l.b16 %v640
        %v728 = vunpack.c.l.b16 %v641
        %v729 = vunpack.c.h.b16 %v641
        %v730 = vunpack.c.l.b16 %v642
        %v731 = vunpack.c.l.b16 %v643
        %v732 = vunpack.c.h.b16 %v643
        %v733 = vunpack.c.l.b16 %v644
        %v734 = vunpack.c.l.b16 %v645
        %v735 = vunpack.c.h.b16 %v645
        %v736 = vunpack.c.l.b16 %v646
        %v737 = vunpack.c.l.b16 %v647
        %v738 = vunpack.c.h.b16 %v647
        %v739 = vunpack.c.l.b16 %v648
        %v740 = vunpack.c.l.b16 %v649
        %v741 = vunpack.c.h.b16 %v649
        %v742 = vunpack.c.l.b16 %v650
        %v743 = vunpack.c.l.b16 %v651
        %v744 = vunpack.c.h.b16 %v651
        %v745 = vunpack.c.l.b16 %v652
        %v746 = vunpack.c.l.b16 %v653
        %v747 = vunpack.c.h.b16 %v653
        %v748 = vunpack.c.l.b16 %v654
        %v749 = vunpack.c.l.b16 %v655
        %v750 = vunpack.c.h.b16 %v655
        %v751 = vunpack.c.l.b16 %v656
        %v752 = vunpack.c.l.b16 %v657
        %v753 = vunpack.c.h.b16 %v657
        %v754 = vunpack.c.l.b16 %v658
        %v755 = vunpack.c.l.b16 %v659
        %v756 = vunpack.c.h.b16 %v659
        %v757 = vunpack.c.l.b16 %v660
        %v758 = vpack.c.b16 %v713, %v710
        %v759 = vpack.c.b16 %v714, %v711
        %v760 = vpack.c.b16 %v715, %v712
        %v761 = vpack.c.b16 %v719, %v716
        %v762 = vpack.c.b16 %v720, %v717
        %v763 = vpack.c.b16 %v721, %v718
        %v764 = vpack.c.b16 %v725, %v722
        %v765 = vpack.c.b16 %v726, %v723
        %v766 = vpack.c.b16 %v727, %v724
        %v767 = vpack.c.b16 %v731, %v728
        %v768 = vpack.c.b16 %v732, %v729
        %v769 = vpack.c.b16 %v733, %v730
        %v770 = vpack.c.b16 %v737, %v734
        %v771 = vpack.c.b16 %v738, %v735
        %v772 = vpack.c.b16 %v739, %v736
        %v773 = vpack.c.b16 %v743, %v740
        %v774 = vpack.c.b16 %v744, %v741
        %v775 = vpack.c.b16 %v745, %v742
        %v776 = vpack.c.b16 %v749, %v746
        %v777 = vpack.c.b16 %v750, %v747
        %v778 = vpack.c.b16 %v751, %v748
        %v779 = vpack.c.b16 %v755, %v752
        %v780 = vpack.c.b16 %v756, %v753
        %v781 = vpack.c.b16 %v757, %v754
        %806 = vmatprep.subr.bf16.mxu0 %v780
        %807 = vmatpush1.bf16.msra.mxu0 %v779
        %808 = vmatprep.subr.bf16.mxu0 %v777
        %809 = vmatpush1.bf16.msra.mxu0 %v776
        %810 = vmatprep.subr.bf16.mxu0 %v774
        %811 = vmatpush1.bf16.msra.mxu0 %v773
        %812 = vmatprep.subr.bf16.mxu0 %v771
        %813 = vmatpush1.bf16.msra.mxu0 %v770
        %814 = vmatprep.subr.bf16.mxu0 %v768
        %815 = vmatpush1.bf16.msra.mxu0 %v767
        %816 = vmatprep.subr.bf16.mxu0 %v765
        %817 = vmatpush1.bf16.msra.mxu0 %v764
        %818 = vmatprep.subr.bf16.mxu0 %v762
        %819 = vmatpush1.bf16.msra.mxu0 %v761
        %820 = vmatprep.subr.bf16.mxu0 %v759
        %821 = vmatpush1.bf16.msra.mxu0 %v758
        %822 = vmatprep.subr.bf16.mxu0 0
        %823 = vmatpush2.bf16.msra.mxu0 0
        %824 = vmatprep.subr.bf16.mxu0 0
        %825 = vmatpush2.bf16.msra.mxu0 0
        %826 = vmatprep.subr.bf16.mxu0 0
        %827 = vmatpush2.bf16.msra.mxu0 0
        %828 = vmatprep.subr.bf16.mxu0 0
        %829 = vmatpush2.bf16.msra.mxu0 0
        %830 = vmatprep.subr.bf16.mxu0 0
        %831 = vmatpush2.bf16.msra.mxu0 0
        %832 = vmatprep.subr.bf16.mxu0 0
        %833 = vmatpush2.bf16.msra.mxu0 0
        %834 = vmatprep.subr.bf16.mxu0 0
        %835 = vmatpush2.bf16.msra.mxu0 0
        %836 = vmatprep.subr.bf16.mxu0 0
        %837 = vmatpush2.bf16.msra.mxu0 0
        %838 = vmatprep.mubr.bf16.mxu0 0
        %839 = vmatmul.mubr.bf16.gmra.mxu0 %v627
        %v840 = vpop.f32.mrf.mxu0
        %v841 = vadd.f32 %v666, %v840
        %v842 = vpop.f32.mrf.mxu0
        %v843 = vadd.f32 %v670, %v842
        %v844 = vpop.f32.mrf.mxu0
        %v845 = vpop.f32.mrf.mxu0
        %846 = vdwg.mxu0
        %847 = vmatprep.subr.bf16.mxu0 0
        %848 = vmatpush1.bf16.msra.mxu0 %v781
        %849 = vmatprep.subr.bf16.mxu0 0
        %850 = vmatpush1.bf16.msra.mxu0 %v778
        %851 = vmatprep.subr.bf16.mxu0 0
        %852 = vmatpush1.bf16.msra.mxu0 %v775
        %853 = vmatprep.subr.bf16.mxu0 0
        %854 = vmatpush1.bf16.msra.mxu0 %v772
        %855 = vmatprep.subr.bf16.mxu0 0
        %856 = vmatpush1.bf16.msra.mxu0 %v769
        %857 = vmatprep.subr.bf16.mxu0 0
        %858 = vmatpush1.bf16.msra.mxu0 %v766
        %859 = vmatprep.subr.bf16.mxu0 0
        %860 = vmatpush1.bf16.msra.mxu0 %v763
        %861 = vmatprep.subr.bf16.mxu0 0
        %862 = vmatpush1.bf16.msra.mxu0 %v760
        %863 = vmatprep.subr.bf16.mxu0 0
        %864 = vmatpush2.bf16.msra.mxu0 0
        %865 = vmatprep.subr.bf16.mxu0 0
        %866 = vmatpush2.bf16.msra.mxu0 0
        %867 = vmatprep.subr.bf16.mxu0 0
        %868 = vmatpush2.bf16.msra.mxu0 0
        %869 = vmatprep.subr.bf16.mxu0 0
        %870 = vmatpush2.bf16.msra.mxu0 0
        %871 = vmatprep.subr.bf16.mxu0 0
        %872 = vmatpush2.bf16.msra.mxu0 0
        %873 = vmatprep.subr.bf16.mxu0 0
        %874 = vmatpush2.bf16.msra.mxu0 0
        %875 = vmatprep.subr.bf16.mxu0 0
        %876 = vmatpush2.bf16.msra.mxu0 0
        %877 = vmatprep.subr.bf16.mxu0 0
        %878 = vmatpush2.bf16.msra.mxu0 0
        %879 = vmatprep.mubr.bf16.mxu0 0
        %880 = vmatmul.mubr.bf16.gmra.mxu0 %v627
        %v881 = vpop.f32.mrf.mxu0
        %v882 = vadd.f32 %v674, %v881
        %v883 = vpop.f32.mrf.mxu0
        %v884 = vpop.f32.mrf.mxu0
        %v885 = vpop.f32.mrf.mxu0
        %886 = vdwg.mxu0
        %v887 = vld [vmem:[#allocation19] sm:$0xff]
        %v888 = vld [vmem:[#allocation19 + $0x8] sm:$0xf]
        %v889 = vld [vmem:[#allocation19 + $0xc] sm:$0xff]
        %v890 = vld [vmem:[#allocation19 + $0x14] sm:$0xf]
        %v891 = vld [vmem:[#allocation19 + $0x18] sm:$0xff]
        %v892 = vld [vmem:[#allocation19 + $0x20] sm:$0xf]
        %v893 = vld [vmem:[#allocation19 + $0x24] sm:$0xff]
        %v894 = vld [vmem:[#allocation19 + $0x2c] sm:$0xf]
        %v895 = vld [vmem:[#allocation19 + $0x30] sm:$0xff]
        %v896 = vld [vmem:[#allocation19 + $0x38] sm:$0xf]
        %v897 = vld [vmem:[#allocation19 + $0x3c] sm:$0xff]
        %v898 = vld [vmem:[#allocation19 + $0x44] sm:$0xf]
        %v899 = vld [vmem:[#allocation19 + $0x48] sm:$0xff]
        %v900 = vld [vmem:[#allocation19 + $0x50] sm:$0xf]
        %v901 = vld [vmem:[#allocation19 + $0x54] sm:$0xff]
        %v902 = vld [vmem:[#allocation19 + $0x5c] sm:$0xf]
        %v903 = vld [vmem:[#allocation19 + $0x60] sm:$0xff]
        %v904 = vld [vmem:[#allocation19 + $0x68] sm:$0xf]
        %v905 = vld [vmem:[#allocation19 + $0x6c] sm:$0xff]
        %v906 = vld [vmem:[#allocation19 + $0x74] sm:$0xf]
        %v907 = vld [vmem:[#allocation19 + $0x78] sm:$0xff]
        %v908 = vld [vmem:[#allocation19 + $0x80] sm:$0xf]
        %v909 = vld [vmem:[#allocation19 + $0x84] sm:$0xff]
        %v910 = vld [vmem:[#allocation19 + $0x8c] sm:$0xf]
        %v911 = vld [vmem:[#allocation19 + $0x90] sm:$0xff]
        %v912 = vld [vmem:[#allocation19 + $0x98] sm:$0xf]
        %v913 = vld [vmem:[#allocation19 + $0x9c] sm:$0xff]
        %v914 = vld [vmem:[#allocation19 + $0xa4] sm:$0xf]
        %v915 = vld [vmem:[#allocation19 + $0xa8] sm:$0xff]
        %v916 = vld [vmem:[#allocation19 + $0xb0] sm:$0xf]
        %v917 = vld [vmem:[#allocation19 + $0xb4] sm:$0xff]
        %v918 = vld [vmem:[#allocation19 + $0xbc] sm:$0xf]
        %v919 = vld [vmem:[%s11] sm:$0x7]
        %v921 = vlaneseq
        %v922 = vshrl.u32 %v921, 7
        %v923 = vsub.s32 0, %v922
        %v924 = vrot.slane %v919, %v923
        %v925 = vlaneseq
        %v926 = vshrl.u32 %v925, 7
        %v927 = vsub.s32 1, %v926
        %v928 = vrot.slane %v919, %v927
        %v929 = vlaneseq
        %v930 = vshrl.u32 %v929, 7
        %v931 = vsub.s32 2, %v930
        %v932 = vrot.slane %v919, %v931
        %v968 = vunpack.c.l.b16 %v887
        %v969 = vunpack.c.h.b16 %v887
        %v970 = vunpack.c.l.b16 %v888
        %v971 = vunpack.c.l.b16 %v889
        %v972 = vunpack.c.h.b16 %v889
        %v973 = vunpack.c.l.b16 %v890
        %v974 = vunpack.c.l.b16 %v891
        %v975 = vunpack.c.h.b16 %v891
        %v976 = vunpack.c.l.b16 %v892
        %v977 = vunpack.c.l.b16 %v893
        %v978 = vunpack.c.h.b16 %v893
        %v979 = vunpack.c.l.b16 %v894
        %v980 = vunpack.c.l.b16 %v895
        %v981 = vunpack.c.h.b16 %v895
        %v982 = vunpack.c.l.b16 %v896
        %v983 = vunpack.c.l.b16 %v897
        %v984 = vunpack.c.h.b16 %v897
        %v985 = vunpack.c.l.b16 %v898
        %v986 = vunpack.c.l.b16 %v899
        %v987 = vunpack.c.h.b16 %v899
        %v988 = vunpack.c.l.b16 %v900
        %v989 = vunpack.c.l.b16 %v901
        %v990 = vunpack.c.h.b16 %v901
        %v991 = vunpack.c.l.b16 %v902
        %v992 = vunpack.c.l.b16 %v903
        %v993 = vunpack.c.h.b16 %v903
        %v994 = vunpack.c.l.b16 %v904
        %v995 = vunpack.c.l.b16 %v905
        %v996 = vunpack.c.h.b16 %v905
        %v997 = vunpack.c.l.b16 %v906
        %v998 = vunpack.c.l.b16 %v907
        %v999 = vunpack.c.h.b16 %v907
        %v1000 = vunpack.c.l.b16 %v908
        %v1001 = vunpack.c.l.b16 %v909
        %v1002 = vunpack.c.h.b16 %v909
        %v1003 = vunpack.c.l.b16 %v910
        %v1004 = vunpack.c.l.b16 %v911
        %v1005 = vunpack.c.h.b16 %v911
        %v1006 = vunpack.c.l.b16 %v912
        %v1007 = vunpack.c.l.b16 %v913
        %v1008 = vunpack.c.h.b16 %v913
        %v1009 = vunpack.c.l.b16 %v914
        %v1010 = vunpack.c.l.b16 %v915
        %v1011 = vunpack.c.h.b16 %v915
        %v1012 = vunpack.c.l.b16 %v916
        %v1013 = vunpack.c.l.b16 %v917
        %v1014 = vunpack.c.h.b16 %v917
        %v1015 = vunpack.c.l.b16 %v918
        %v1016 = vpack.c.b16 %v971, %v968
        %v1017 = vpack.c.b16 %v972, %v969
        %v1018 = vpack.c.b16 %v973, %v970
        %v1019 = vpack.c.b16 %v977, %v974
        %v1020 = vpack.c.b16 %v978, %v975
        %v1021 = vpack.c.b16 %v979, %v976
        %v1022 = vpack.c.b16 %v983, %v980
        %v1023 = vpack.c.b16 %v984, %v981
        %v1024 = vpack.c.b16 %v985, %v982
        %v1025 = vpack.c.b16 %v989, %v986
        %v1026 = vpack.c.b16 %v990, %v987
        %v1027 = vpack.c.b16 %v991, %v988
        %v1028 = vpack.c.b16 %v995, %v992
        %v1029 = vpack.c.b16 %v996, %v993
        %v1030 = vpack.c.b16 %v997, %v994
        %v1031 = vpack.c.b16 %v1001, %v998
        %v1032 = vpack.c.b16 %v1002, %v999
        %v1033 = vpack.c.b16 %v1003, %v1000
        %v1034 = vpack.c.b16 %v1007, %v1004
        %v1035 = vpack.c.b16 %v1008, %v1005
        %v1036 = vpack.c.b16 %v1009, %v1006
        %v1037 = vpack.c.b16 %v1013, %v1010
        %v1038 = vpack.c.b16 %v1014, %v1011
        %v1039 = vpack.c.b16 %v1015, %v1012
        %1064 = vmatprep.subr.bf16.mxu0 %v1038
        %1065 = vmatpush1.bf16.msra.mxu0 %v1037
        %1066 = vmatprep.subr.bf16.mxu0 %v1035
        %1067 = vmatpush1.bf16.msra.mxu0 %v1034
        %1068 = vmatprep.subr.bf16.mxu0 %v1032
        %1069 = vmatpush1.bf16.msra.mxu0 %v1031
        %1070 = vmatprep.subr.bf16.mxu0 %v1029
        %1071 = vmatpush1.bf16.msra.mxu0 %v1028
        %1072 = vmatprep.subr.bf16.mxu0 %v1026
        %1073 = vmatpush1.bf16.msra.mxu0 %v1025
        %1074 = vmatprep.subr.bf16.mxu0 %v1023
        %1075 = vmatpush1.bf16.msra.mxu0 %v1022
        %1076 = vmatprep.subr.bf16.mxu0 %v1020
        %1077 = vmatpush1.bf16.msra.mxu0 %v1019
        %1078 = vmatprep.subr.bf16.mxu0 %v1017
        %1079 = vmatpush1.bf16.msra.mxu0 %v1016
        %1080 = vmatprep.subr.bf16.mxu0 0
        %1081 = vmatpush2.bf16.msra.mxu0 0
        %1082 = vmatprep.subr.bf16.mxu0 0
        %1083 = vmatpush2.bf16.msra.mxu0 0
        %1084 = vmatprep.subr.bf16.mxu0 0
        %1085 = vmatpush2.bf16.msra.mxu0 0
        %1086 = vmatprep.subr.bf16.mxu0 0
        %1087 = vmatpush2.bf16.msra.mxu0 0
        %1088 = vmatprep.subr.bf16.mxu0 0
        %1089 = vmatpush2.bf16.msra.mxu0 0
        %1090 = vmatprep.subr.bf16.mxu0 0
        %1091 = vmatpush2.bf16.msra.mxu0 0
        %1092 = vmatprep.subr.bf16.mxu0 0
        %1093 = vmatpush2.bf16.msra.mxu0 0
        %1094 = vmatprep.subr.bf16.mxu0 0
        %1095 = vmatpush2.bf16.msra.mxu0 0
        %1096 = vmatprep.mubr.bf16.mxu0 0
        %1097 = vmatmul.mubr.bf16.gmra.mxu0 %v628
        %v1098 = vpop.f32.mrf.mxu0
        %v1099 = vadd.f32 %v924, %v1098
        %v1100 = vpop.f32.mrf.mxu0
        %v1101 = vadd.f32 %v928, %v1100
        %v1102 = vpop.f32.mrf.mxu0
        %v1103 = vpop.f32.mrf.mxu0
        %1104 = vdwg.mxu0
        %1105 = vmatprep.subr.bf16.mxu0 0
        %1106 = vmatpush1.bf16.msra.mxu0 %v1039
        %1107 = vmatprep.subr.bf16.mxu0 0
        %1108 = vmatpush1.bf16.msra.mxu0 %v1036
        %1109 = vmatprep.subr.bf16.mxu0 0
        %1110 = vmatpush1.bf16.msra.mxu0 %v1033
        %1111 = vmatprep.subr.bf16.mxu0 0
        %1112 = vmatpush1.bf16.msra.mxu0 %v1030
        %1113 = vmatprep.subr.bf16.mxu0 0
        %1114 = vmatpush1.bf16.msra.mxu0 %v1027
        %1115 = vmatprep.subr.bf16.mxu0 0
        %1116 = vmatpush1.bf16.msra.mxu0 %v1024
        %1117 = vmatprep.subr.bf16.mxu0 0
        %1118 = vmatpush1.bf16.msra.mxu0 %v1021
        %1119 = vmatprep.subr.bf16.mxu0 0
        %1120 = vmatpush1.bf16.msra.mxu0 %v1018
        %1121 = vmatprep.subr.bf16.mxu0 0
        %1122 = vmatpush2.bf16.msra.mxu0 0
        %1123 = vmatprep.subr.bf16.mxu0 0
        %1124 = vmatpush2.bf16.msra.mxu0 0
        %1125 = vmatprep.subr.bf16.mxu0 0
        %1126 = vmatpush2.bf16.msra.mxu0 0
        %1127 = vmatprep.subr.bf16.mxu0 0
        %1128 = vmatpush2.bf16.msra.mxu0 0
        %1129 = vmatprep.subr.bf16.mxu0 0
        %1130 = vmatpush2.bf16.msra.mxu0 0
        %1131 = vmatprep.subr.bf16.mxu0 0
        %1132 = vmatpush2.bf16.msra.mxu0 0
        %1133 = vmatprep.subr.bf16.mxu0 0
        %1134 = vmatpush2.bf16.msra.mxu0 0
        %1135 = vmatprep.subr.bf16.mxu0 0
        %1136 = vmatpush2.bf16.msra.mxu0 0
        %1137 = vmatprep.mubr.bf16.mxu0 0
        %1138 = vmatmul.mubr.bf16.gmra.mxu0 %v628
        %v1139 = vpop.f32.mrf.mxu0
        %v1140 = vadd.f32 %v932, %v1139
        %v1141 = vpop.f32.mrf.mxu0
        %v1142 = vpop.f32.mrf.mxu0
        %v1143 = vpop.f32.mrf.mxu0
        %1144 = vdwg.mxu0
        %v1145 = vadd.f32 %v841, %v1099
        %v1146 = vxor.u32 %v1145, 2147483648
        %v1147 = vmul.f32 %v1146, 1.442695
        %v1148 = vpow.pop %v1147
        %v1149 = vadd.f32 %v1148, 1.0
        %v1150 = vrcp.pop %v1149
        %v1151 = vmul.f32 1.0, %v1150
        %v1152 = vadd.f32 %v843, %v1101
        %v1153 = vxor.u32 %v1152, 2147483648
        %v1154 = vmul.f32 %v1153, 1.442695
        %v1155 = vpow.pop %v1154
        %v1156 = vadd.f32 %v1155, 1.0
        %v1157 = vrcp.pop %v1156
        %v1158 = vmul.f32 1.0, %v1157
        %v1159 = vmul.f32 %v1151, %v1140
        %v1160 = vadd.f32 %v882, %v1159
        %v1161 = vtanh.pop %v1160
        %v1162 = vsub.f32 1.0, %v1158
        %v1163 = vmul.f32 %v1162, %v1161
        %v1164 = vmul.f32 %v1158, %v626
        %v1165 = vadd.f32 %v1163, %v1164
        %v1166 = vpack.c.bf16 %v1165, %v1165
        %v1167 = vld [vmem:[#allocation10] sm:$0xf]
        %v1168 = vld [vmem:[#allocation10 + $0x4] sm:$0xf]
        %v1169 = vld [vmem:[#allocation10 + $0x8] sm:$0xf]
        %v1170 = vld [vmem:[#allocation10 + $0xc] sm:$0xf]
        %v1171 = vld [vmem:[#allocation10 + $0x10] sm:$0xf]
        %v1172 = vld [vmem:[#allocation10 + $0x14] sm:$0xf]
        %v1173 = vld [vmem:[#allocation10 + $0x18] sm:$0xf]
        %v1174 = vld [vmem:[#allocation10 + $0x1c] sm:$0xf]
        %v1177 = vunpack.c.l.s4 1966171168
        %v1178 = vunpack.c.0.s8 %v1177
        %v1179 = vlaneseq
        %v1180 = vshrl.u32 %v1179, 7
        %v1181 = vsub.s32 %v1178, %v1180
        %v1182 = vrot.slane %v1166, %v1181
        %v1183 = vcombine.high %v1182, %v1182
        %v1185 = vunpack.c.l.s4 1966171168
        %v1186 = vunpack.c.0.s8 %v1185
        %v1187 = vlaneseq
        %v1188 = vshrl.u32 %v1187, 7
        %v1189 = vsub.s32 %v1186, %v1188
        %v1190 = vrot.slane %v1182, %v1189
        %v1192 = vunpack.c.l.s4 1966171168
        %v1193 = vunpack.c.0.s8 %v1192
        %v1194 = vlaneseq
        %v1195 = vshrl.u32 %v1194, 7
        %v1196 = vsub.s32 %v1193, %v1195
        %v1197 = vrot.slane %v1183, %v1196
        %v1198 = vcombine.high %v1190, %v1190
        %v1199 = vcombine.high %v1197, %v1197
        %v1200 = vunpack.i.l.s16 %v1190
        %v1201 = vunpack.i.h.s16 %v1190
        %v1202 = vunpack.i.l.s16 %v1197
        %v1203 = vunpack.i.h.s16 %v1197
        %v1204 = vunpack.i.l.s16 %v1198
        %v1205 = vunpack.i.h.s16 %v1198
        %v1206 = vunpack.i.l.s16 %v1199
        %v1207 = vunpack.i.h.s16 %v1199
        %v1208 = vpack.i.b16 %v1200, %v1200
        %v1209 = vlaneseq
        %v1210 = vshrl.u32 %v1209, 7
        %v1211 = vsub.s32 0, %v1210
        %v1212 = vrot.slane %v1208, %v1211
        %1214 = vmatprep.subr.bf16.mxu0 0
        %1215 = vmatpush1.bf16.xpose.msra.mxu0 0
        %1216 = vmatprep.subr.bf16.mxu0 0
        %1217 = vmatpush1.bf16.xpose.msra.mxu0 0
        %1218 = vmatprep.subr.bf16.mxu0 0
        %1219 = vmatpush1.bf16.xpose.msra.mxu0 0
        %1220 = vmatprep.subr.bf16.mxu0 0
        %1221 = vmatpush1.bf16.xpose.msra.mxu0 0
        %1222 = vmatprep.subr.bf16.mxu0 0
        %1223 = vmatpush1.bf16.xpose.msra.mxu0 0
        %1224 = vmatprep.subr.bf16.mxu0 0
        %1225 = vmatpush1.bf16.xpose.msra.mxu0 0
        %1226 = vmatprep.subr.bf16.mxu0 0
        %1227 = vmatpush1.bf16.xpose.msra.mxu0 0
        %1228 = vmatprep.subr.bf16.mxu0 0
        %1229 = vmatpush1.bf16.xpose.msra.mxu0 %v1167
        %1230 = vmatprep.subr.bf16.mxu0 0
        %1231 = vmatpush2.bf16.xpose.msra.mxu0 0
        %1232 = vmatprep.subr.bf16.mxu0 0
        %1233 = vmatpush2.bf16.xpose.msra.mxu0 0
        %1234 = vmatprep.subr.bf16.mxu0 0
        %1235 = vmatpush2.bf16.xpose.msra.mxu0 0
        %1236 = vmatprep.subr.bf16.mxu0 0
        %1237 = vmatpush2.bf16.xpose.msra.mxu0 0
        %1238 = vmatprep.subr.bf16.mxu0 0
        %1239 = vmatpush2.bf16.xpose.msra.mxu0 0
        %1240 = vmatprep.subr.bf16.mxu0 0
        %1241 = vmatpush2.bf16.xpose.msra.mxu0 0
        %1242 = vmatprep.subr.bf16.mxu0 0
        %1243 = vmatpush2.bf16.xpose.msra.mxu0 0
        %1244 = vmatprep.subr.bf16.mxu0 0
        %1245 = vmatpush2.bf16.xpose.msra.mxu0 0
        %1246 = vmatprep.mubr.bf16.mxu0 0
        %1247 = vmatmul.mubr.bf16.gmra.mxu0 %v1212
        %v1248 = vpop.f32.mrf.mxu0
        %v1249 = vadd.f32 0.0, %v1248
        %v1250 = vpop.f32.mrf.mxu0
        %v1251 = vpop.f32.mrf.mxu0
        %v1252 = vpop.f32.mrf.mxu0
        %1253 = vdwg.mxu0
        %v1254 = vpack.i.b16 %v1201, %v1201
        %v1255 = vlaneseq
        %v1256 = vshrl.u32 %v1255, 7
        %v1257 = vsub.s32 0, %v1256
        %v1258 = vrot.slane %v1254, %v1257
        %1260 = vmatprep.subr.bf16.mxu0 0
        %1261 = vmatpush1.bf16.xpose.msra.mxu0 0
        %1262 = vmatprep.subr.bf16.mxu0 0
        %1263 = vmatpush1.bf16.xpose.msra.mxu0 0
        %1264 = vmatprep.subr.bf16.mxu0 0
        %1265 = vmatpush1.bf16.xpose.msra.mxu0 0
        %1266 = vmatprep.subr.bf16.mxu0 0
        %1267 = vmatpush1.bf16.xpose.msra.mxu0 0
        %1268 = vmatprep.subr.bf16.mxu0 0
        %1269 = vmatpush1.bf16.xpose.msra.mxu0 0
        %1270 = vmatprep.subr.bf16.mxu0 0
        %1271 = vmatpush1.bf16.xpose.msra.mxu0 0
        %1272 = vmatprep.subr.bf16.mxu0 0
        %1273 = vmatpush1.bf16.xpose.msra.mxu0 0
        %1274 = vmatprep.subr.bf16.mxu0 0
        %1275 = vmatpush1.bf16.xpose.msra.mxu0 %v1168
        %1276 = vmatprep.subr.bf16.mxu0 0
        %1277 = vmatpush2.bf16.xpose.msra.mxu0 0
        %1278 = vmatprep.subr.bf16.mxu0 0
        %1279 = vmatpush2.bf16.xpose.msra.mxu0 0
        %1280 = vmatprep.subr.bf16.mxu0 0
        %1281 = vmatpush2.bf16.xpose.msra.mxu0 0
        %1282 = vmatprep.subr.bf16.mxu0 0
        %1283 = vmatpush2.bf16.xpose.msra.mxu0 0
        %1284 = vmatprep.subr.bf16.mxu0 0
        %1285 = vmatpush2.bf16.xpose.msra.mxu0 0
        %1286 = vmatprep.subr.bf16.mxu0 0
        %1287 = vmatpush2.bf16.xpose.msra.mxu0 0
        %1288 = vmatprep.subr.bf16.mxu0 0
        %1289 = vmatpush2.bf16.xpose.msra.mxu0 0
        %1290 = vmatprep.subr.bf16.mxu0 0
        %1291 = vmatpush2.bf16.xpose.msra.mxu0 0
        %1292 = vmatprep.mubr.bf16.mxu0 0
        %1293 = vmatmul.mubr.bf16.gmra.mxu0 %v1258
        %v1294 = vpop.f32.mrf.mxu0
        %v1295 = vadd.f32 0.0, %v1294
        %v1296 = vpop.f32.mrf.mxu0
        %v1297 = vpop.f32.mrf.mxu0
        %v1298 = vpop.f32.mrf.mxu0
        %1299 = vdwg.mxu0
        %v1300 = vpack.i.b16 %v1202, %v1202
        %v1301 = vlaneseq
        %v1302 = vshrl.u32 %v1301, 7
        %v1303 = vsub.s32 0, %v1302
        %v1304 = vrot.slane %v1300, %v1303
        %1306 = vmatprep.subr.bf16.mxu0 0
        %1307 = vmatpush1.bf16.xpose.msra.mxu0 0
        %1308 = vmatprep.subr.bf16.mxu0 0
        %1309 = vmatpush1.bf16.xpose.msra.mxu0 0
        %1310 = vmatprep.subr.bf16.mxu0 0
        %1311 = vmatpush1.bf16.xpose.msra.mxu0 0
        %1312 = vmatprep.subr.bf16.mxu0 0
        %1313 = vmatpush1.bf16.xpose.msra.mxu0 0
        %1314 = vmatprep.subr.bf16.mxu0 0
        %1315 = vmatpush1.bf16.xpose.msra.mxu0 0
        %1316 = vmatprep.subr.bf16.mxu0 0
        %1317 = vmatpush1.bf16.xpose.msra.mxu0 0
        %1318 = vmatprep.subr.bf16.mxu0 0
        %1319 = vmatpush1.bf16.xpose.msra.mxu0 0
        %1320 = vmatprep.subr.bf16.mxu0 0
        %1321 = vmatpush1.bf16.xpose.msra.mxu0 %v1169
        %1322 = vmatprep.subr.bf16.mxu0 0
        %1323 = vmatpush2.bf16.xpose.msra.mxu0 0
        %1324 = vmatprep.subr.bf16.mxu0 0
        %1325 = vmatpush2.bf16.xpose.msra.mxu0 0
        %1326 = vmatprep.subr.bf16.mxu0 0
        %1327 = vmatpush2.bf16.xpose.msra.mxu0 0
        %1328 = vmatprep.subr.bf16.mxu0 0
        %1329 = vmatpush2.bf16.xpose.msra.mxu0 0
        %1330 = vmatprep.subr.bf16.mxu0 0
        %1331 = vmatpush2.bf16.xpose.msra.mxu0 0
        %1332 = vmatprep.subr.bf16.mxu0 0
        %1333 = vmatpush2.bf16.xpose.msra.mxu0 0
        %1334 = vmatprep.subr.bf16.mxu0 0
        %1335 = vmatpush2.bf16.xpose.msra.mxu0 0
        %1336 = vmatprep.subr.bf16.mxu0 0
        %1337 = vmatpush2.bf16.xpose.msra.mxu0 0
        %1338 = vmatprep.mubr.bf16.mxu0 0
        %1339 = vmatmul.mubr.bf16.gmra.mxu0 %v1304
        %v1340 = vpop.f32.mrf.mxu0
        %v1341 = vadd.f32 0.0, %v1340
        %v1342 = vpop.f32.mrf.mxu0
        %v1343 = vpop.f32.mrf.mxu0
        %v1344 = vpop.f32.mrf.mxu0
        %1345 = vdwg.mxu0
        %v1346 = vpack.i.b16 %v1203, %v1203
        %v1347 = vlaneseq
        %v1348 = vshrl.u32 %v1347, 7
        %v1349 = vsub.s32 0, %v1348
        %v1350 = vrot.slane %v1346, %v1349
        %1352 = vmatprep.subr.bf16.mxu0 0
        %1353 = vmatpush1.bf16.xpose.msra.mxu0 0
        %1354 = vmatprep.subr.bf16.mxu0 0
        %1355 = vmatpush1.bf16.xpose.msra.mxu0 0
        %1356 = vmatprep.subr.bf16.mxu0 0
        %1357 = vmatpush1.bf16.xpose.msra.mxu0 0
        %1358 = vmatprep.subr.bf16.mxu0 0
        %1359 = vmatpush1.bf16.xpose.msra.mxu0 0
        %1360 = vmatprep.subr.bf16.mxu0 0
        %1361 = vmatpush1.bf16.xpose.msra.mxu0 0
        %1362 = vmatprep.subr.bf16.mxu0 0
        %1363 = vmatpush1.bf16.xpose.msra.mxu0 0
        %1364 = vmatprep.subr.bf16.mxu0 0
        %1365 = vmatpush1.bf16.xpose.msra.mxu0 0
        %1366 = vmatprep.subr.bf16.mxu0 0
        %1367 = vmatpush1.bf16.xpose.msra.mxu0 %v1170
        %1368 = vmatprep.subr.bf16.mxu0 0
        %1369 = vmatpush2.bf16.xpose.msra.mxu0 0
        %1370 = vmatprep.subr.bf16.mxu0 0
        %1371 = vmatpush2.bf16.xpose.msra.mxu0 0
        %1372 = vmatprep.subr.bf16.mxu0 0
        %1373 = vmatpush2.bf16.xpose.msra.mxu0 0
        %1374 = vmatprep.subr.bf16.mxu0 0
        %1375 = vmatpush2.bf16.xpose.msra.mxu0 0
        %1376 = vmatprep.subr.bf16.mxu0 0
        %1377 = vmatpush2.bf16.xpose.msra.mxu0 0
        %1378 = vmatprep.subr.bf16.mxu0 0
        %1379 = vmatpush2.bf16.xpose.msra.mxu0 0
        %1380 = vmatprep.subr.bf16.mxu0 0
        %1381 = vmatpush2.bf16.xpose.msra.mxu0 0
        %1382 = vmatprep.subr.bf16.mxu0 0
        %1383 = vmatpush2.bf16.xpose.msra.mxu0 0
        %1384 = vmatprep.mubr.bf16.mxu0 0
        %1385 = vmatmul.mubr.bf16.gmra.mxu0 %v1350
        %v1386 = vpop.f32.mrf.mxu0
        %v1387 = vadd.f32 0.0, %v1386
        %v1388 = vpop.f32.mrf.mxu0
        %v1389 = vpop.f32.mrf.mxu0
        %v1390 = vpop.f32.mrf.mxu0
        %1391 = vdwg.mxu0
        %v1392 = vpack.i.b16 %v1204, %v1204
        %v1393 = vlaneseq
        %v1394 = vshrl.u32 %v1393, 7
        %v1395 = vsub.s32 0, %v1394
        %v1396 = vrot.slane %v1392, %v1395
        %1398 = vmatprep.subr.bf16.mxu0 0
        %1399 = vmatpush1.bf16.xpose.msra.mxu0 0
        %1400 = vmatprep.subr.bf16.mxu0 0
        %1401 = vmatpush1.bf16.xpose.msra.mxu0 0
        %1402 = vmatprep.subr.bf16.mxu0 0
        %1403 = vmatpush1.bf16.xpose.msra.mxu0 0
        %1404 = vmatprep.subr.bf16.mxu0 0
        %1405 = vmatpush1.bf16.xpose.msra.mxu0 0
        %1406 = vmatprep.subr.bf16.mxu0 0
        %1407 = vmatpush1.bf16.xpose.msra.mxu0 0
        %1408 = vmatprep.subr.bf16.mxu0 0
        %1409 = vmatpush1.bf16.xpose.msra.mxu0 0
        %1410 = vmatprep.subr.bf16.mxu0 0
        %1411 = vmatpush1.bf16.xpose.msra.mxu0 0
        %1412 = vmatprep.subr.bf16.mxu0 0
        %1413 = vmatpush1.bf16.xpose.msra.mxu0 %v1171
        %1414 = vmatprep.subr.bf16.mxu0 0
        %1415 = vmatpush2.bf16.xpose.msra.mxu0 0
        %1416 = vmatprep.subr.bf16.mxu0 0
        %1417 = vmatpush2.bf16.xpose.msra.mxu0 0
        %1418 = vmatprep.subr.bf16.mxu0 0
        %1419 = vmatpush2.bf16.xpose.msra.mxu0 0
        %1420 = vmatprep.subr.bf16.mxu0 0
        %1421 = vmatpush2.bf16.xpose.msra.mxu0 0
        %1422 = vmatprep.subr.bf16.mxu0 0
        %1423 = vmatpush2.bf16.xpose.msra.mxu0 0
        %1424 = vmatprep.subr.bf16.mxu0 0
        %1425 = vmatpush2.bf16.xpose.msra.mxu0 0
        %1426 = vmatprep.subr.bf16.mxu0 0
        %1427 = vmatpush2.bf16.xpose.msra.mxu0 0
        %1428 = vmatprep.subr.bf16.mxu0 0
        %1429 = vmatpush2.bf16.xpose.msra.mxu0 0
        %1430 = vmatprep.mubr.bf16.mxu0 0
        %1431 = vmatmul.mubr.bf16.gmra.mxu0 %v1396
        %v1432 = vpop.f32.mrf.mxu0
        %v1433 = vadd.f32 0.0, %v1432
        %v1434 = vpop.f32.mrf.mxu0
        %v1435 = vpop.f32.mrf.mxu0
        %v1436 = vpop.f32.mrf.mxu0
        %1437 = vdwg.mxu0
        %v1438 = vpack.i.b16 %v1205, %v1205
        %v1439 = vlaneseq
        %v1440 = vshrl.u32 %v1439, 7
        %v1441 = vsub.s32 0, %v1440
        %v1442 = vrot.slane %v1438, %v1441
        %1444 = vmatprep.subr.bf16.mxu0 0
        %1445 = vmatpush1.bf16.xpose.msra.mxu0 0
        %1446 = vmatprep.subr.bf16.mxu0 0
        %1447 = vmatpush1.bf16.xpose.msra.mxu0 0
        %1448 = vmatprep.subr.bf16.mxu0 0
        %1449 = vmatpush1.bf16.xpose.msra.mxu0 0
        %1450 = vmatprep.subr.bf16.mxu0 0
        %1451 = vmatpush1.bf16.xpose.msra.mxu0 0
        %1452 = vmatprep.subr.bf16.mxu0 0
        %1453 = vmatpush1.bf16.xpose.msra.mxu0 0
        %1454 = vmatprep.subr.bf16.mxu0 0
        %1455 = vmatpush1.bf16.xpose.msra.mxu0 0
        %1456 = vmatprep.subr.bf16.mxu0 0
        %1457 = vmatpush1.bf16.xpose.msra.mxu0 0
        %1458 = vmatprep.subr.bf16.mxu0 0
        %1459 = vmatpush1.bf16.xpose.msra.mxu0 %v1172
        %1460 = vmatprep.subr.bf16.mxu0 0
        %1461 = vmatpush2.bf16.xpose.msra.mxu0 0
        %1462 = vmatprep.subr.bf16.mxu0 0
        %1463 = vmatpush2.bf16.xpose.msra.mxu0 0
        %1464 = vmatprep.subr.bf16.mxu0 0
        %1465 = vmatpush2.bf16.xpose.msra.mxu0 0
        %1466 = vmatprep.subr.bf16.mxu0 0
        %1467 = vmatpush2.bf16.xpose.msra.mxu0 0
        %1468 = vmatprep.subr.bf16.mxu0 0
        %1469 = vmatpush2.bf16.xpose.msra.mxu0 0
        %1470 = vmatprep.subr.bf16.mxu0 0
        %1471 = vmatpush2.bf16.xpose.msra.mxu0 0
        %1472 = vmatprep.subr.bf16.mxu0 0
        %1473 = vmatpush2.bf16.xpose.msra.mxu0 0
        %1474 = vmatprep.subr.bf16.mxu0 0
        %1475 = vmatpush2.bf16.xpose.msra.mxu0 0
        %1476 = vmatprep.mubr.bf16.mxu0 0
        %1477 = vmatmul.mubr.bf16.gmra.mxu0 %v1442
        %v1478 = vpop.f32.mrf.mxu0
        %v1479 = vadd.f32 0.0, %v1478
        %v1480 = vpop.f32.mrf.mxu0
        %v1481 = vpop.f32.mrf.mxu0
        %v1482 = vpop.f32.mrf.mxu0
        %1483 = vdwg.mxu0
        %v1484 = vpack.i.b16 %v1206, %v1206
        %v1485 = vlaneseq
        %v1486 = vshrl.u32 %v1485, 7
        %v1487 = vsub.s32 0, %v1486
        %v1488 = vrot.slane %v1484, %v1487
        %1490 = vmatprep.subr.bf16.mxu0 0
        %1491 = vmatpush1.bf16.xpose.msra.mxu0 0
        %1492 = vmatprep.subr.bf16.mxu0 0
        %1493 = vmatpush1.bf16.xpose.msra.mxu0 0
        %1494 = vmatprep.subr.bf16.mxu0 0
        %1495 = vmatpush1.bf16.xpose.msra.mxu0 0
        %1496 = vmatprep.subr.bf16.mxu0 0
        %1497 = vmatpush1.bf16.xpose.msra.mxu0 0
        %1498 = vmatprep.subr.bf16.mxu0 0
        %1499 = vmatpush1.bf16.xpose.msra.mxu0 0
        %1500 = vmatprep.subr.bf16.mxu0 0
        %1501 = vmatpush1.bf16.xpose.msra.mxu0 0
        %1502 = vmatprep.subr.bf16.mxu0 0
        %1503 = vmatpush1.bf16.xpose.msra.mxu0 0
        %1504 = vmatprep.subr.bf16.mxu0 0
        %1505 = vmatpush1.bf16.xpose.msra.mxu0 %v1173
        %1506 = vmatprep.subr.bf16.mxu0 0
        %1507 = vmatpush2.bf16.xpose.msra.mxu0 0
        %1508 = vmatprep.subr.bf16.mxu0 0
        %1509 = vmatpush2.bf16.xpose.msra.mxu0 0
        %1510 = vmatprep.subr.bf16.mxu0 0
        %1511 = vmatpush2.bf16.xpose.msra.mxu0 0
        %1512 = vmatprep.subr.bf16.mxu0 0
        %1513 = vmatpush2.bf16.xpose.msra.mxu0 0
        %1514 = vmatprep.subr.bf16.mxu0 0
        %1515 = vmatpush2.bf16.xpose.msra.mxu0 0
        %1516 = vmatprep.subr.bf16.mxu0 0
        %1517 = vmatpush2.bf16.xpose.msra.mxu0 0
        %1518 = vmatprep.subr.bf16.mxu0 0
        %1519 = vmatpush2.bf16.xpose.msra.mxu0 0
        %1520 = vmatprep.subr.bf16.mxu0 0
        %1521 = vmatpush2.bf16.xpose.msra.mxu0 0
        %1522 = vmatprep.mubr.bf16.mxu0 0
        %1523 = vmatmul.mubr.bf16.gmra.mxu0 %v1488
        %v1524 = vpop.f32.mrf.mxu0
        %v1525 = vadd.f32 0.0, %v1524
        %v1526 = vpop.f32.mrf.mxu0
        %v1527 = vpop.f32.mrf.mxu0
        %v1528 = vpop.f32.mrf.mxu0
        %1529 = vdwg.mxu0
        %v1530 = vpack.i.b16 %v1207, %v1207
        %v1531 = vlaneseq
        %v1532 = vshrl.u32 %v1531, 7
        %v1533 = vsub.s32 0, %v1532
        %v1534 = vrot.slane %v1530, %v1533
        %1536 = vmatprep.subr.bf16.mxu0 0
        %1537 = vmatpush1.bf16.xpose.msra.mxu0 0
        %1538 = vmatprep.subr.bf16.mxu0 0
        %1539 = vmatpush1.bf16.xpose.msra.mxu0 0
        %1540 = vmatprep.subr.bf16.mxu0 0
        %1541 = vmatpush1.bf16.xpose.msra.mxu0 0
        %1542 = vmatprep.subr.bf16.mxu0 0
        %1543 = vmatpush1.bf16.xpose.msra.mxu0 0
        %1544 = vmatprep.subr.bf16.mxu0 0
        %1545 = vmatpush1.bf16.xpose.msra.mxu0 0
        %1546 = vmatprep.subr.bf16.mxu0 0
        %1547 = vmatpush1.bf16.xpose.msra.mxu0 0
        %1548 = vmatprep.subr.bf16.mxu0 0
        %1549 = vmatpush1.bf16.xpose.msra.mxu0 0
        %1550 = vmatprep.subr.bf16.mxu0 0
        %1551 = vmatpush1.bf16.xpose.msra.mxu0 %v1174
        %1552 = vmatprep.subr.bf16.mxu0 0
        %1553 = vmatpush2.bf16.xpose.msra.mxu0 0
        %1554 = vmatprep.subr.bf16.mxu0 0
        %1555 = vmatpush2.bf16.xpose.msra.mxu0 0
        %1556 = vmatprep.subr.bf16.mxu0 0
        %1557 = vmatpush2.bf16.xpose.msra.mxu0 0
        %1558 = vmatprep.subr.bf16.mxu0 0
        %1559 = vmatpush2.bf16.xpose.msra.mxu0 0
        %1560 = vmatprep.subr.bf16.mxu0 0
        %1561 = vmatpush2.bf16.xpose.msra.mxu0 0
        %1562 = vmatprep.subr.bf16.mxu0 0
        %1563 = vmatpush2.bf16.xpose.msra.mxu0 0
        %1564 = vmatprep.subr.bf16.mxu0 0
        %1565 = vmatpush2.bf16.xpose.msra.mxu0 0
        %1566 = vmatprep.subr.bf16.mxu0 0
        %1567 = vmatpush2.bf16.xpose.msra.mxu0 0
        %1568 = vmatprep.mubr.bf16.mxu0 0
        %1569 = vmatmul.mubr.bf16.gmra.mxu0 %v1534
        %v1570 = vpop.f32.mrf.mxu0
        %v1571 = vadd.f32 0.0, %v1570
        %v1572 = vpop.f32.mrf.mxu0
        %v1573 = vpop.f32.mrf.mxu0
        %v1574 = vpop.f32.mrf.mxu0
        %1575 = vdwg.mxu0
        %v1576 = vld [vmem:[#allocation11] sm:$0xff]
        %v1578 = vrot.slane %v1576, 1
        %v1579 = vrot.slane %v1576, 2
        %v1580 = vrot.slane %v1576, 3
        %v1581 = vrot.slane %v1576, 4
        %v1582 = vrot.slane %v1576, 5
        %v1583 = vrot.slane %v1576, 6
        %v1584 = vrot.slane %v1576, 7
        %v1593 = vadd.f32 %v1249, %v1576
        %v1594 = vadd.f32 %v1295, %v1578
        %v1595 = vadd.f32 %v1341, %v1579
        %v1596 = vadd.f32 %v1387, %v1580
        %v1597 = vadd.f32 %v1433, %v1581
        %v1598 = vadd.f32 %v1479, %v1582
        %v1599 = vadd.f32 %v1525, %v1583
        %v1600 = vadd.f32 %v1571, %v1584
        %v1609 = vrot.slane %v1594, 7
        %vm1610 = vcmask 1041409
        %v1611 = vsel %vm1610, %v1609, %v1593
        %v1612 = vrot.slane %v1595, 6
        %vm1613 = vcmask 1042434
        %v1614 = vsel %vm1613, %v1612, %v1611
        %v1615 = vrot.slane %v1596, 5
        %vm1616 = vcmask 1043459
        %v1617 = vsel %vm1616, %v1615, %v1614
        %v1618 = vrot.slane %v1597, 4
        %vm1619 = vcmask 1044484
        %v1620 = vsel %vm1619, %v1618, %v1617
        %v1621 = vrot.slane %v1598, 3
        %vm1622 = vcmask 1045509
        %v1623 = vsel %vm1622, %v1621, %v1620
        %v1624 = vrot.slane %v1599, 2
        %vm1625 = vcmask 1046534
        %v1626 = vsel %vm1625, %v1624, %v1623
        %v1627 = vrot.slane %v1600, 1
        %vm1628 = vcmask 1047559
        %v1629 = vsel %vm1628, %v1627, %v1626
        %vm1631 = vcmask 64512
        %v1632 = vsel %vm1631, %v1629, -inf
        %1633 = vmax.xlane.f32.xlu0 %v1632
        %v1634 = vpop.xlane.xlu0 %1633
        %v1636 = vrot.slane %v1634, 1
        %v1637 = vrot.slane %v1634, 2
        %v1638 = vrot.slane %v1634, 3
        %v1639 = vrot.slane %v1634, 4
        %v1640 = vrot.slane %v1634, 5
        %v1641 = vrot.slane %v1634, 6
        %v1642 = vrot.slane %v1634, 7
        %v1651 = vsub.f32 %v1593, %v1634
        %v1652 = vsub.f32 %v1594, %v1636
        %v1653 = vsub.f32 %v1595, %v1637
        %v1654 = vsub.f32 %v1596, %v1638
        %v1655 = vsub.f32 %v1597, %v1639
        %v1656 = vsub.f32 %v1598, %v1640
        %v1657 = vsub.f32 %v1599, %v1641
        %v1658 = vsub.f32 %v1600, %v1642
        %v1659 = vmul.f32 %v1651, 1.442695
        %v1660 = vpow.pop %v1659
        %v1661 = vmul.f32 %v1652, 1.442695
        %v1662 = vpow.pop %v1661
        %v1663 = vmul.f32 %v1653, 1.442695
        %v1664 = vpow.pop %v1663
        %v1665 = vmul.f32 %v1654, 1.442695
        %v1666 = vpow.pop %v1665
        %v1667 = vmul.f32 %v1655, 1.442695
        %v1668 = vpow.pop %v1667
        %v1669 = vmul.f32 %v1656, 1.442695
        %v1670 = vpow.pop %v1669
        %v1671 = vmul.f32 %v1657, 1.442695
        %v1672 = vpow.pop %v1671
        %v1673 = vmul.f32 %v1658, 1.442695
        %v1674 = vpow.pop %v1673
        %v1683 = vrot.slane %v1662, 7
        %v1684 = vsel %vm1610, %v1683, %v1660
        %v1685 = vrot.slane %v1664, 6
        %v1686 = vsel %vm1613, %v1685, %v1684
        %v1687 = vrot.slane %v1666, 5
        %v1688 = vsel %vm1616, %v1687, %v1686
        %v1689 = vrot.slane %v1668, 4
        %v1690 = vsel %vm1619, %v1689, %v1688
        %v1691 = vrot.slane %v1670, 3
        %v1692 = vsel %vm1622, %v1691, %v1690
        %v1693 = vrot.slane %v1672, 2
        %v1694 = vsel %vm1625, %v1693, %v1692
        %v1695 = vrot.slane %v1674, 1
        %v1696 = vsel %vm1628, %v1695, %v1694
        %v1698 = vsel %vm1631, %v1696, 0.0
        %1699 = vadd.xlane.f32.xlu0 %v1698
        %v1700 = vpop.xlane.xlu0 %1699
        %v1701 = vrcp.pop %v1700
        %v1703 = vrot.slane %v1701, 1
        %v1704 = vrot.slane %v1701, 2
        %v1705 = vrot.slane %v1701, 3
        %v1706 = vrot.slane %v1701, 4
        %v1707 = vrot.slane %v1701, 5
        %v1708 = vrot.slane %v1701, 6
        %v1709 = vrot.slane %v1701, 7
        %v1718 = vmul.f32 %v1660, %v1701
        %v1719 = vmul.f32 %v1662, %v1703
        %v1720 = vmul.f32 %v1664, %v1704
        %v1721 = vmul.f32 %v1666, %v1705
        %v1722 = vmul.f32 %v1668, %v1706
        %v1723 = vmul.f32 %v1670, %v1707
        %v1724 = vmul.f32 %v1672, %v1708
        %v1725 = vmul.f32 %v1674, %v1709
        %v1726 = vpack.c.bf16 %v1718, %v1718
        %v1727 = vpack.c.bf16 %v1719, %v1719
        %v1728 = vpack.c.bf16 %v1720, %v1720
        %v1729 = vpack.c.bf16 %v1721, %v1721
        %v1730 = vpack.c.bf16 %v1722, %v1722
        %v1731 = vpack.c.bf16 %v1723, %v1723
        %v1732 = vpack.c.bf16 %v1724, %v1724
        %v1733 = vpack.c.bf16 %v1725, %v1725
        %v1734 = vld [vmem:[#allocation16] sm:$0xf]
        %v1735 = vld [vmem:[#allocation16 + $0x4] sm:$0xf]
        %v1736 = vld [vmem:[#allocation16 + $0x8] sm:$0xf]
        %v1737 = vld [vmem:[#allocation16 + $0xc] sm:$0xf]
        %v1738 = vld [vmem:[#allocation16 + $0x10] sm:$0xf]
        %v1739 = vld [vmem:[#allocation16 + $0x14] sm:$0xf]
        %v1740 = vld [vmem:[#allocation16 + $0x18] sm:$0xf]
        %v1741 = vld [vmem:[#allocation16 + $0x1c] sm:$0xf]
        %v1742 = vld [vmem:[#allocation16 + $0x20] sm:$0xf]
        %v1743 = vld [vmem:[#allocation16 + $0x24] sm:$0xf]
        %v1744 = vld [vmem:[#allocation16 + $0x28] sm:$0xf]
        %v1745 = vld [vmem:[#allocation16 + $0x2c] sm:$0xf]
        %v1746 = vld [vmem:[#allocation16 + $0x30] sm:$0xf]
        %v1747 = vld [vmem:[#allocation16 + $0x34] sm:$0xf]
        %v1748 = vld [vmem:[#allocation16 + $0x38] sm:$0xf]
        %v1749 = vld [vmem:[#allocation16 + $0x3c] sm:$0xf]
        %v1750 = vld [vmem:[%s7] sm:$0x1]
        %v1752 = vlaneseq
        %v1753 = vshrl.u32 %v1752, 7
        %v1754 = vsub.s32 0, %v1753
        %v1755 = vrot.slane %v1750, %v1754
        %v1773 = vunpack.c.l.b16 %v1734
        %v1774 = vunpack.c.l.b16 %v1735
        %v1775 = vunpack.c.l.b16 %v1736
        %v1776 = vunpack.c.l.b16 %v1737
        %v1777 = vunpack.c.l.b16 %v1738
        %v1778 = vunpack.c.l.b16 %v1739
        %v1779 = vunpack.c.l.b16 %v1740
        %v1780 = vunpack.c.l.b16 %v1741
        %v1781 = vunpack.c.l.b16 %v1742
        %v1782 = vunpack.c.l.b16 %v1743
        %v1783 = vunpack.c.l.b16 %v1744
        %v1784 = vunpack.c.l.b16 %v1745
        %v1785 = vunpack.c.l.b16 %v1746
        %v1786 = vunpack.c.l.b16 %v1747
        %v1787 = vunpack.c.l.b16 %v1748
        %v1788 = vunpack.c.l.b16 %v1749
        %v1789 = vpack.c.b16 %v1774, %v1773
        %v1790 = vpack.c.b16 %v1776, %v1775
        %v1791 = vpack.c.b16 %v1778, %v1777
        %v1792 = vpack.c.b16 %v1780, %v1779
        %v1793 = vpack.c.b16 %v1782, %v1781
        %v1794 = vpack.c.b16 %v1784, %v1783
        %v1795 = vpack.c.b16 %v1786, %v1785
        %v1796 = vpack.c.b16 %v1788, %v1787
        %1805 = vmatprep.subr.bf16.mxu0 0
        %1806 = vmatpush1.bf16.msra.mxu0 %v1796
        %1807 = vmatprep.subr.bf16.mxu0 0
        %1808 = vmatpush1.bf16.msra.mxu0 %v1795
        %1809 = vmatprep.subr.bf16.mxu0 0
        %1810 = vmatpush1.bf16.msra.mxu0 %v1794
        %1811 = vmatprep.subr.bf16.mxu0 0
        %1812 = vmatpush1.bf16.msra.mxu0 %v1793
        %1813 = vmatprep.subr.bf16.mxu0 0
        %1814 = vmatpush1.bf16.msra.mxu0 %v1792
        %1815 = vmatprep.subr.bf16.mxu0 0
        %1816 = vmatpush1.bf16.msra.mxu0 %v1791
        %1817 = vmatprep.subr.bf16.mxu0 0
        %1818 = vmatpush1.bf16.msra.mxu0 %v1790
        %1819 = vmatprep.subr.bf16.mxu0 0
        %1820 = vmatpush1.bf16.msra.mxu0 %v1789
        %1821 = vmatprep.subr.bf16.mxu0 0
        %1822 = vmatpush2.bf16.msra.mxu0 0
        %1823 = vmatprep.subr.bf16.mxu0 0
        %1824 = vmatpush2.bf16.msra.mxu0 0
        %1825 = vmatprep.subr.bf16.mxu0 0
        %1826 = vmatpush2.bf16.msra.mxu0 0
        %1827 = vmatprep.subr.bf16.mxu0 0
        %1828 = vmatpush2.bf16.msra.mxu0 0
        %1829 = vmatprep.subr.bf16.mxu0 0
        %1830 = vmatpush2.bf16.msra.mxu0 0
        %1831 = vmatprep.subr.bf16.mxu0 0
        %1832 = vmatpush2.bf16.msra.mxu0 0
        %1833 = vmatprep.subr.bf16.mxu0 0
        %1834 = vmatpush2.bf16.msra.mxu0 0
        %1835 = vmatprep.subr.bf16.mxu0 0
        %1836 = vmatpush2.bf16.msra.mxu0 0
        %1837 = vmatprep.mubr.bf16.mxu0 0
        %1838 = vmatmul.mubr.bf16.gmra.mxu0 %v1166
        %v1839 = vpop.f32.mrf.mxu0
        %v1840 = vadd.f32 %v1755, %v1839
        %v1841 = vpop.f32.mrf.mxu0
        %v1842 = vpop.f32.mrf.mxu0
        %v1843 = vpop.f32.mrf.mxu0
        %1844 = vdwg.mxu0
        %1845 = vmax.xlane.f32.xlu0 %v1840
        %v1846 = vpop.xlane.xlu0 %1845
        %v1847 = vsub.f32 %v1840, %v1846
        %v1848 = vmul.f32 %v1847, 1.442695
        %v1849 = vpow.pop %v1848
        %1850 = vadd.xlane.f32.xlu0 %v1849
        %v1851 = vpop.xlane.xlu0 %1850
        %v1852 = vrcp.pop %v1851
        %v1853 = vmul.f32 %v1849, %v1852
        %v1855 = vsel %vm1631, %v1726, 0
        %vm1857 = vcmask 1043456
        %v1859 = vsel %vm1857, %v1167, 0
        %1861 = vmatprep.subr.bf16.mxu0 0
        %1862 = vmatpush1.bf16.msra.mxu0 0
        %1863 = vmatprep.subr.bf16.mxu0 0
        %1864 = vmatpush1.bf16.msra.mxu0 0
        %1865 = vmatprep.subr.bf16.mxu0 0
        %1866 = vmatpush1.bf16.msra.mxu0 0
        %1867 = vmatprep.subr.bf16.mxu0 0
        %1868 = vmatpush1.bf16.msra.mxu0 0
        %1869 = vmatprep.subr.bf16.mxu0 0
        %1870 = vmatpush1.bf16.msra.mxu0 0
        %1871 = vmatprep.subr.bf16.mxu0 0
        %1872 = vmatpush1.bf16.msra.mxu0 0
        %1873 = vmatprep.subr.bf16.mxu0 0
        %1874 = vmatpush1.bf16.msra.mxu0 0
        %1875 = vmatprep.subr.bf16.mxu0 0
        %1876 = vmatpush1.bf16.msra.mxu0 %v1859
        %1877 = vmatprep.subr.bf16.mxu0 0
        %1878 = vmatpush2.bf16.msra.mxu0 0
        %1879 = vmatprep.subr.bf16.mxu0 0
        %1880 = vmatpush2.bf16.msra.mxu0 0
        %1881 = vmatprep.subr.bf16.mxu0 0
        %1882 = vmatpush2.bf16.msra.mxu0 0
        %1883 = vmatprep.subr.bf16.mxu0 0
        %1884 = vmatpush2.bf16.msra.mxu0 0
        %1885 = vmatprep.subr.bf16.mxu0 0
        %1886 = vmatpush2.bf16.msra.mxu0 0
        %1887 = vmatprep.subr.bf16.mxu0 0
        %1888 = vmatpush2.bf16.msra.mxu0 0
        %1889 = vmatprep.subr.bf16.mxu0 0
        %1890 = vmatpush2.bf16.msra.mxu0 0
        %1891 = vmatprep.subr.bf16.mxu0 0
        %1892 = vmatpush2.bf16.msra.mxu0 0
        %1893 = vmatprep.mubr.bf16.mxu0 0
        %1894 = vmatmul.mubr.bf16.gmra.mxu0 %v1855
        %v1895 = vpop.f32.mrf.mxu0
        %v1896 = vadd.f32 0.0, %v1895
        %v1897 = vpop.f32.mrf.mxu0
        %v1898 = vpop.f32.mrf.mxu0
        %v1899 = vpop.f32.mrf.mxu0
        %1900 = vdwg.mxu0
        %v1902 = vsel %vm1631, %v1727, 0
        %v1905 = vsel %vm1857, %v1168, 0
        %1907 = vmatprep.subr.bf16.mxu0 0
        %1908 = vmatpush1.bf16.msra.mxu0 0
        %1909 = vmatprep.subr.bf16.mxu0 0
        %1910 = vmatpush1.bf16.msra.mxu0 0
        %1911 = vmatprep.subr.bf16.mxu0 0
        %1912 = vmatpush1.bf16.msra.mxu0 0
        %1913 = vmatprep.subr.bf16.mxu0 0
        %1914 = vmatpush1.bf16.msra.mxu0 0
        %1915 = vmatprep.subr.bf16.mxu0 0
        %1916 = vmatpush1.bf16.msra.mxu0 0
        %1917 = vmatprep.subr.bf16.mxu0 0
        %1918 = vmatpush1.bf16.msra.mxu0 0
        %1919 = vmatprep.subr.bf16.mxu0 0
        %1920 = vmatpush1.bf16.msra.mxu0 0
        %1921 = vmatprep.subr.bf16.mxu0 0
        %1922 = vmatpush1.bf16.msra.mxu0 %v1905
        %1923 = vmatprep.subr.bf16.mxu0 0
        %1924 = vmatpush2.bf16.msra.mxu0 0
        %1925 = vmatprep.subr.bf16.mxu0 0
        %1926 = vmatpush2.bf16.msra.mxu0 0
        %1927 = vmatprep.subr.bf16.mxu0 0
        %1928 = vmatpush2.bf16.msra.mxu0 0
        %1929 = vmatprep.subr.bf16.mxu0 0
        %1930 = vmatpush2.bf16.msra.mxu0 0
        %1931 = vmatprep.subr.bf16.mxu0 0
        %1932 = vmatpush2.bf16.msra.mxu0 0
        %1933 = vmatprep.subr.bf16.mxu0 0
        %1934 = vmatpush2.bf16.msra.mxu0 0
        %1935 = vmatprep.subr.bf16.mxu0 0
        %1936 = vmatpush2.bf16.msra.mxu0 0
        %1937 = vmatprep.subr.bf16.mxu0 0
        %1938 = vmatpush2.bf16.msra.mxu0 0
        %1939 = vmatprep.mubr.bf16.mxu0 0
        %1940 = vmatmul.mubr.bf16.gmra.mxu0 %v1902
        %v1941 = vpop.f32.mrf.mxu0
        %v1942 = vadd.f32 0.0, %v1941
        %v1943 = vpop.f32.mrf.mxu0
        %v1944 = vpop.f32.mrf.mxu0
        %v1945 = vpop.f32.mrf.mxu0
        %1946 = vdwg.mxu0
        %v1948 = vsel %vm1631, %v1728, 0
        %v1951 = vsel %vm1857, %v1169, 0
        %1953 = vmatprep.subr.bf16.mxu0 0
        %1954 = vmatpush1.bf16.msra.mxu0 0
        %1955 = vmatprep.subr.bf16.mxu0 0
        %1956 = vmatpush1.bf16.msra.mxu0 0
        %1957 = vmatprep.subr.bf16.mxu0 0
        %1958 = vmatpush1.bf16.msra.mxu0 0
        %1959 = vmatprep.subr.bf16.mxu0 0
        %1960 = vmatpush1.bf16.msra.mxu0 0
        %1961 = vmatprep.subr.bf16.mxu0 0
        %1962 = vmatpush1.bf16.msra.mxu0 0
        %1963 = vmatprep.subr.bf16.mxu0 0
        %1964 = vmatpush1.bf16.msra.mxu0 0
        %1965 = vmatprep.subr.bf16.mxu0 0
        %1966 = vmatpush1.bf16.msra.mxu0 0
        %1967 = vmatprep.subr.bf16.mxu0 0
        %1968 = vmatpush1.bf16.msra.mxu0 %v1951
        %1969 = vmatprep.subr.bf16.mxu0 0
        %1970 = vmatpush2.bf16.msra.mxu0 0
        %1971 = vmatprep.subr.bf16.mxu0 0
        %1972 = vmatpush2.bf16.msra.mxu0 0
        %1973 = vmatprep.subr.bf16.mxu0 0
        %1974 = vmatpush2.bf16.msra.mxu0 0
        %1975 = vmatprep.subr.bf16.mxu0 0
        %1976 = vmatpush2.bf16.msra.mxu0 0
        %1977 = vmatprep.subr.bf16.mxu0 0
        %1978 = vmatpush2.bf16.msra.mxu0 0
        %1979 = vmatprep.subr.bf16.mxu0 0
        %1980 = vmatpush2.bf16.msra.mxu0 0
        %1981 = vmatprep.subr.bf16.mxu0 0
        %1982 = vmatpush2.bf16.msra.mxu0 0
        %1983 = vmatprep.subr.bf16.mxu0 0
        %1984 = vmatpush2.bf16.msra.mxu0 0
        %1985 = vmatprep.mubr.bf16.mxu0 0
        %1986 = vmatmul.mubr.bf16.gmra.mxu0 %v1948
        %v1987 = vpop.f32.mrf.mxu0
        %v1988 = vadd.f32 0.0, %v1987
        %v1989 = vpop.f32.mrf.mxu0
        %v1990 = vpop.f32.mrf.mxu0
        %v1991 = vpop.f32.mrf.mxu0
        %1992 = vdwg.mxu0
        %v1994 = vsel %vm1631, %v1729, 0
        %v1997 = vsel %vm1857, %v1170, 0
        %1999 = vmatprep.subr.bf16.mxu0 0
        %2000 = vmatpush1.bf16.msra.mxu0 0
        %2001 = vmatprep.subr.bf16.mxu0 0
        %2002 = vmatpush1.bf16.msra.mxu0 0
        %2003 = vmatprep.subr.bf16.mxu0 0
        %2004 = vmatpush1.bf16.msra.mxu0 0
        %2005 = vmatprep.subr.bf16.mxu0 0
        %2006 = vmatpush1.bf16.msra.mxu0 0
        %2007 = vmatprep.subr.bf16.mxu0 0
        %2008 = vmatpush1.bf16.msra.mxu0 0
        %2009 = vmatprep.subr.bf16.mxu0 0
        %2010 = vmatpush1.bf16.msra.mxu0 0
        %2011 = vmatprep.subr.bf16.mxu0 0
        %2012 = vmatpush1.bf16.msra.mxu0 0
        %2013 = vmatprep.subr.bf16.mxu0 0
        %2014 = vmatpush1.bf16.msra.mxu0 %v1997
        %2015 = vmatprep.subr.bf16.mxu0 0
        %2016 = vmatpush2.bf16.msra.mxu0 0
        %2017 = vmatprep.subr.bf16.mxu0 0
        %2018 = vmatpush2.bf16.msra.mxu0 0
        %2019 = vmatprep.subr.bf16.mxu0 0
        %2020 = vmatpush2.bf16.msra.mxu0 0
        %2021 = vmatprep.subr.bf16.mxu0 0
        %2022 = vmatpush2.bf16.msra.mxu0 0
        %2023 = vmatprep.subr.bf16.mxu0 0
        %2024 = vmatpush2.bf16.msra.mxu0 0
        %2025 = vmatprep.subr.bf16.mxu0 0
        %2026 = vmatpush2.bf16.msra.mxu0 0
        %2027 = vmatprep.subr.bf16.mxu0 0
        %2028 = vmatpush2.bf16.msra.mxu0 0
        %2029 = vmatprep.subr.bf16.mxu0 0
        %2030 = vmatpush2.bf16.msra.mxu0 0
        %2031 = vmatprep.mubr.bf16.mxu0 0
        %2032 = vmatmul.mubr.bf16.gmra.mxu0 %v1994
        %v2033 = vpop.f32.mrf.mxu0
        %v2034 = vadd.f32 0.0, %v2033
        %v2035 = vpop.f32.mrf.mxu0
        %v2036 = vpop.f32.mrf.mxu0
        %v2037 = vpop.f32.mrf.mxu0
        %2038 = vdwg.mxu0
        %v2040 = vsel %vm1631, %v1730, 0
        %v2043 = vsel %vm1857, %v1171, 0
        %2045 = vmatprep.subr.bf16.mxu0 0
        %2046 = vmatpush1.bf16.msra.mxu0 0
        %2047 = vmatprep.subr.bf16.mxu0 0
        %2048 = vmatpush1.bf16.msra.mxu0 0
        %2049 = vmatprep.subr.bf16.mxu0 0
        %2050 = vmatpush1.bf16.msra.mxu0 0
        %2051 = vmatprep.subr.bf16.mxu0 0
        %2052 = vmatpush1.bf16.msra.mxu0 0
        %2053 = vmatprep.subr.bf16.mxu0 0
        %2054 = vmatpush1.bf16.msra.mxu0 0
        %2055 = vmatprep.subr.bf16.mxu0 0
        %2056 = vmatpush1.bf16.msra.mxu0 0
        %2057 = vmatprep.subr.bf16.mxu0 0
        %2058 = vmatpush1.bf16.msra.mxu0 0
        %2059 = vmatprep.subr.bf16.mxu0 0
        %2060 = vmatpush1.bf16.msra.mxu0 %v2043
        %2061 = vmatprep.subr.bf16.mxu0 0
        %2062 = vmatpush2.bf16.msra.mxu0 0
        %2063 = vmatprep.subr.bf16.mxu0 0
        %2064 = vmatpush2.bf16.msra.mxu0 0
        %2065 = vmatprep.subr.bf16.mxu0 0
        %2066 = vmatpush2.bf16.msra.mxu0 0
        %2067 = vmatprep.subr.bf16.mxu0 0
        %2068 = vmatpush2.bf16.msra.mxu0 0
        %2069 = vmatprep.subr.bf16.mxu0 0
        %2070 = vmatpush2.bf16.msra.mxu0 0
        %2071 = vmatprep.subr.bf16.mxu0 0
        %2072 = vmatpush2.bf16.msra.mxu0 0
        %2073 = vmatprep.subr.bf16.mxu0 0
        %2074 = vmatpush2.bf16.msra.mxu0 0
        %2075 = vmatprep.subr.bf16.mxu0 0
        %2076 = vmatpush2.bf16.msra.mxu0 0
        %2077 = vmatprep.mubr.bf16.mxu0 0
        %2078 = vmatmul.mubr.bf16.gmra.mxu0 %v2040
        %v2079 = vpop.f32.mrf.mxu0
        %v2080 = vadd.f32 0.0, %v2079
        %v2081 = vpop.f32.mrf.mxu0
        %v2082 = vpop.f32.mrf.mxu0
        %v2083 = vpop.f32.mrf.mxu0
        %2084 = vdwg.mxu0
        %v2086 = vsel %vm1631, %v1731, 0
        %v2089 = vsel %vm1857, %v1172, 0
        %2091 = vmatprep.subr.bf16.mxu0 0
        %2092 = vmatpush1.bf16.msra.mxu0 0
        %2093 = vmatprep.subr.bf16.mxu0 0
        %2094 = vmatpush1.bf16.msra.mxu0 0
        %2095 = vmatprep.subr.bf16.mxu0 0
        %2096 = vmatpush1.bf16.msra.mxu0 0
        %2097 = vmatprep.subr.bf16.mxu0 0
        %2098 = vmatpush1.bf16.msra.mxu0 0
        %2099 = vmatprep.subr.bf16.mxu0 0
        %2100 = vmatpush1.bf16.msra.mxu0 0
        %2101 = vmatprep.subr.bf16.mxu0 0
        %2102 = vmatpush1.bf16.msra.mxu0 0
        %2103 = vmatprep.subr.bf16.mxu0 0
        %2104 = vmatpush1.bf16.msra.mxu0 0
        %2105 = vmatprep.subr.bf16.mxu0 0
        %2106 = vmatpush1.bf16.msra.mxu0 %v2089
        %2107 = vmatprep.subr.bf16.mxu0 0
        %2108 = vmatpush2.bf16.msra.mxu0 0
        %2109 = vmatprep.subr.bf16.mxu0 0
        %2110 = vmatpush2.bf16.msra.mxu0 0
        %2111 = vmatprep.subr.bf16.mxu0 0
        %2112 = vmatpush2.bf16.msra.mxu0 0
        %2113 = vmatprep.subr.bf16.mxu0 0
        %2114 = vmatpush2.bf16.msra.mxu0 0
        %2115 = vmatprep.subr.bf16.mxu0 0
        %2116 = vmatpush2.bf16.msra.mxu0 0
        %2117 = vmatprep.subr.bf16.mxu0 0
        %2118 = vmatpush2.bf16.msra.mxu0 0
        %2119 = vmatprep.subr.bf16.mxu0 0
        %2120 = vmatpush2.bf16.msra.mxu0 0
        %2121 = vmatprep.subr.bf16.mxu0 0
        %2122 = vmatpush2.bf16.msra.mxu0 0
        %2123 = vmatprep.mubr.bf16.mxu0 0
        %2124 = vmatmul.mubr.bf16.gmra.mxu0 %v2086
        %v2125 = vpop.f32.mrf.mxu0
        %v2126 = vadd.f32 0.0, %v2125
        %v2127 = vpop.f32.mrf.mxu0
        %v2128 = vpop.f32.mrf.mxu0
        %v2129 = vpop.f32.mrf.mxu0
        %2130 = vdwg.mxu0
        %v2132 = vsel %vm1631, %v1732, 0
        %v2135 = vsel %vm1857, %v1173, 0
        %2137 = vmatprep.subr.bf16.mxu0 0
        %2138 = vmatpush1.bf16.msra.mxu0 0
        %2139 = vmatprep.subr.bf16.mxu0 0
        %2140 = vmatpush1.bf16.msra.mxu0 0
        %2141 = vmatprep.subr.bf16.mxu0 0
        %2142 = vmatpush1.bf16.msra.mxu0 0
        %2143 = vmatprep.subr.bf16.mxu0 0
        %2144 = vmatpush1.bf16.msra.mxu0 0
        %2145 = vmatprep.subr.bf16.mxu0 0
        %2146 = vmatpush1.bf16.msra.mxu0 0
        %2147 = vmatprep.subr.bf16.mxu0 0
        %2148 = vmatpush1.bf16.msra.mxu0 0
        %2149 = vmatprep.subr.bf16.mxu0 0
        %2150 = vmatpush1.bf16.msra.mxu0 0
        %2151 = vmatprep.subr.bf16.mxu0 0
        %2152 = vmatpush1.bf16.msra.mxu0 %v2135
        %2153 = vmatprep.subr.bf16.mxu0 0
        %2154 = vmatpush2.bf16.msra.mxu0 0
        %2155 = vmatprep.subr.bf16.mxu0 0
        %2156 = vmatpush2.bf16.msra.mxu0 0
        %2157 = vmatprep.subr.bf16.mxu0 0
        %2158 = vmatpush2.bf16.msra.mxu0 0
        %2159 = vmatprep.subr.bf16.mxu0 0
        %2160 = vmatpush2.bf16.msra.mxu0 0
        %2161 = vmatprep.subr.bf16.mxu0 0
        %2162 = vmatpush2.bf16.msra.mxu0 0
        %2163 = vmatprep.subr.bf16.mxu0 0
        %2164 = vmatpush2.bf16.msra.mxu0 0
        %2165 = vmatprep.subr.bf16.mxu0 0
        %2166 = vmatpush2.bf16.msra.mxu0 0
        %2167 = vmatprep.subr.bf16.mxu0 0
        %2168 = vmatpush2.bf16.msra.mxu0 0
        %2169 = vmatprep.mubr.bf16.mxu0 0
        %2170 = vmatmul.mubr.bf16.gmra.mxu0 %v2132
        %v2171 = vpop.f32.mrf.mxu0
        %v2172 = vadd.f32 0.0, %v2171
        %v2173 = vpop.f32.mrf.mxu0
        %v2174 = vpop.f32.mrf.mxu0
        %v2175 = vpop.f32.mrf.mxu0
        %2176 = vdwg.mxu0
        %v2178 = vsel %vm1631, %v1733, 0
        %v2181 = vsel %vm1857, %v1174, 0
        %2183 = vmatprep.subr.bf16.mxu0 0
        %2184 = vmatpush1.bf16.msra.mxu0 0
        %2185 = vmatprep.subr.bf16.mxu0 0
        %2186 = vmatpush1.bf16.msra.mxu0 0
        %2187 = vmatprep.subr.bf16.mxu0 0
        %2188 = vmatpush1.bf16.msra.mxu0 0
        %2189 = vmatprep.subr.bf16.mxu0 0
        %2190 = vmatpush1.bf16.msra.mxu0 0
        %2191 = vmatprep.subr.bf16.mxu0 0
        %2192 = vmatpush1.bf16.msra.mxu0 0
        %2193 = vmatprep.subr.bf16.mxu0 0
        %2194 = vmatpush1.bf16.msra.mxu0 0
        %2195 = vmatprep.subr.bf16.mxu0 0
        %2196 = vmatpush1.bf16.msra.mxu0 0
        %2197 = vmatprep.subr.bf16.mxu0 0
        %2198 = vmatpush1.bf16.msra.mxu0 %v2181
        %2199 = vmatprep.subr.bf16.mxu0 0
        %2200 = vmatpush2.bf16.msra.mxu0 0
        %2201 = vmatprep.subr.bf16.mxu0 0
        %2202 = vmatpush2.bf16.msra.mxu0 0
        %2203 = vmatprep.subr.bf16.mxu0 0
        %2204 = vmatpush2.bf16.msra.mxu0 0
        %2205 = vmatprep.subr.bf16.mxu0 0
        %2206 = vmatpush2.bf16.msra.mxu0 0
        %2207 = vmatprep.subr.bf16.mxu0 0
        %2208 = vmatpush2.bf16.msra.mxu0 0
        %2209 = vmatprep.subr.bf16.mxu0 0
        %2210 = vmatpush2.bf16.msra.mxu0 0
        %2211 = vmatprep.subr.bf16.mxu0 0
        %2212 = vmatpush2.bf16.msra.mxu0 0
        %2213 = vmatprep.subr.bf16.mxu0 0
        %2214 = vmatpush2.bf16.msra.mxu0 0
        %2215 = vmatprep.mubr.bf16.mxu0 0
        %2216 = vmatmul.mubr.bf16.gmra.mxu0 %v2178
        %v2217 = vpop.f32.mrf.mxu0
        %v2218 = vadd.f32 0.0, %v2217
        %v2219 = vpop.f32.mrf.mxu0
        %v2220 = vpop.f32.mrf.mxu0
        %v2221 = vpop.f32.mrf.mxu0
        %2222 = vdwg.mxu0
        %v2223 = vld [vmem:[#allocation13] sm:$0xf]
        %v2224 = vld [vmem:[#allocation13 + $0x4] sm:$0xf]
        %v2225 = vld [vmem:[#allocation13 + $0x8] sm:$0xf]
        %v2226 = vld [vmem:[#allocation13 + $0xc] sm:$0xf]
        %v2227 = vld [vmem:[#allocation13 + $0x10] sm:$0xf]
        %v2228 = vld [vmem:[#allocation13 + $0x14] sm:$0xf]
        %v2229 = vld [vmem:[#allocation13 + $0x18] sm:$0xf]
        %v2230 = vld [vmem:[#allocation13 + $0x1c] sm:$0xf]
        %v2232 = vsel %vm1857, %v2223, 0
        %2234 = vmatprep.subr.bf16.mxu0 0
        %2235 = vmatpush1.bf16.msra.mxu0 0
        %2236 = vmatprep.subr.bf16.mxu0 0
        %2237 = vmatpush1.bf16.msra.mxu0 0
        %2238 = vmatprep.subr.bf16.mxu0 0
        %2239 = vmatpush1.bf16.msra.mxu0 0
        %2240 = vmatprep.subr.bf16.mxu0 0
        %2241 = vmatpush1.bf16.msra.mxu0 0
        %2242 = vmatprep.subr.bf16.mxu0 0
        %2243 = vmatpush1.bf16.msra.mxu0 0
        %2244 = vmatprep.subr.bf16.mxu0 0
        %2245 = vmatpush1.bf16.msra.mxu0 0
        %2246 = vmatprep.subr.bf16.mxu0 0
        %2247 = vmatpush1.bf16.msra.mxu0 0
        %2248 = vmatprep.subr.bf16.mxu0 0
        %2249 = vmatpush1.bf16.msra.mxu0 %v2232
        %2250 = vmatprep.subr.bf16.mxu0 0
        %2251 = vmatpush2.bf16.msra.mxu0 0
        %2252 = vmatprep.subr.bf16.mxu0 0
        %2253 = vmatpush2.bf16.msra.mxu0 0
        %2254 = vmatprep.subr.bf16.mxu0 0
        %2255 = vmatpush2.bf16.msra.mxu0 0
        %2256 = vmatprep.subr.bf16.mxu0 0
        %2257 = vmatpush2.bf16.msra.mxu0 0
        %2258 = vmatprep.subr.bf16.mxu0 0
        %2259 = vmatpush2.bf16.msra.mxu0 0
        %2260 = vmatprep.subr.bf16.mxu0 0
        %2261 = vmatpush2.bf16.msra.mxu0 0
        %2262 = vmatprep.subr.bf16.mxu0 0
        %2263 = vmatpush2.bf16.msra.mxu0 0
        %2264 = vmatprep.subr.bf16.mxu0 0
        %2265 = vmatpush2.bf16.msra.mxu0 0
        %2266 = vmatprep.mubr.bf16.mxu0 0
        %2267 = vmatmul.mubr.bf16.gmra.mxu0 %v1855
        %v2268 = vpop.f32.mrf.mxu0
        %v2269 = vadd.f32 0.0, %v2268
        %v2270 = vpop.f32.mrf.mxu0
        %v2271 = vpop.f32.mrf.mxu0
        %v2272 = vpop.f32.mrf.mxu0
        %2273 = vdwg.mxu0
        %v2275 = vsel %vm1857, %v2224, 0
        %2277 = vmatprep.subr.bf16.mxu0 0
        %2278 = vmatpush1.bf16.msra.mxu0 0
        %2279 = vmatprep.subr.bf16.mxu0 0
        %2280 = vmatpush1.bf16.msra.mxu0 0
        %2281 = vmatprep.subr.bf16.mxu0 0
        %2282 = vmatpush1.bf16.msra.mxu0 0
        %2283 = vmatprep.subr.bf16.mxu0 0
        %2284 = vmatpush1.bf16.msra.mxu0 0
        %2285 = vmatprep.subr.bf16.mxu0 0
        %2286 = vmatpush1.bf16.msra.mxu0 0
        %2287 = vmatprep.subr.bf16.mxu0 0
        %2288 = vmatpush1.bf16.msra.mxu0 0
        %2289 = vmatprep.subr.bf16.mxu0 0
        %2290 = vmatpush1.bf16.msra.mxu0 0
        %2291 = vmatprep.subr.bf16.mxu0 0
        %2292 = vmatpush1.bf16.msra.mxu0 %v2275
        %2293 = vmatprep.subr.bf16.mxu0 0
        %2294 = vmatpush2.bf16.msra.mxu0 0
        %2295 = vmatprep.subr.bf16.mxu0 0
        %2296 = vmatpush2.bf16.msra.mxu0 0
        %2297 = vmatprep.subr.bf16.mxu0 0
        %2298 = vmatpush2.bf16.msra.mxu0 0
        %2299 = vmatprep.subr.bf16.mxu0 0
        %2300 = vmatpush2.bf16.msra.mxu0 0
        %2301 = vmatprep.subr.bf16.mxu0 0
        %2302 = vmatpush2.bf16.msra.mxu0 0
        %2303 = vmatprep.subr.bf16.mxu0 0
        %2304 = vmatpush2.bf16.msra.mxu0 0
        %2305 = vmatprep.subr.bf16.mxu0 0
        %2306 = vmatpush2.bf16.msra.mxu0 0
        %2307 = vmatprep.subr.bf16.mxu0 0
        %2308 = vmatpush2.bf16.msra.mxu0 0
        %2309 = vmatprep.mubr.bf16.mxu0 0
        %2310 = vmatmul.mubr.bf16.gmra.mxu0 %v1902
        %v2311 = vpop.f32.mrf.mxu0
        %v2312 = vadd.f32 0.0, %v2311
        %v2313 = vpop.f32.mrf.mxu0
        %v2314 = vpop.f32.mrf.mxu0
        %v2315 = vpop.f32.mrf.mxu0
        %2316 = vdwg.mxu0
        %v2318 = vsel %vm1857, %v2225, 0
        %2320 = vmatprep.subr.bf16.mxu0 0
        %2321 = vmatpush1.bf16.msra.mxu0 0
        %2322 = vmatprep.subr.bf16.mxu0 0
        %2323 = vmatpush1.bf16.msra.mxu0 0
        %2324 = vmatprep.subr.bf16.mxu0 0
        %2325 = vmatpush1.bf16.msra.mxu0 0
        %2326 = vmatprep.subr.bf16.mxu0 0
        %2327 = vmatpush1.bf16.msra.mxu0 0
        %2328 = vmatprep.subr.bf16.mxu0 0
        %2329 = vmatpush1.bf16.msra.mxu0 0
        %2330 = vmatprep.subr.bf16.mxu0 0
        %2331 = vmatpush1.bf16.msra.mxu0 0
        %2332 = vmatprep.subr.bf16.mxu0 0
        %2333 = vmatpush1.bf16.msra.mxu0 0
        %2334 = vmatprep.subr.bf16.mxu0 0
        %2335 = vmatpush1.bf16.msra.mxu0 %v2318
        %2336 = vmatprep.subr.bf16.mxu0 0
        %2337 = vmatpush2.bf16.msra.mxu0 0
        %2338 = vmatprep.subr.bf16.mxu0 0
        %2339 = vmatpush2.bf16.msra.mxu0 0
        %2340 = vmatprep.subr.bf16.mxu0 0
        %2341 = vmatpush2.bf16.msra.mxu0 0
        %2342 = vmatprep.subr.bf16.mxu0 0
        %2343 = vmatpush2.bf16.msra.mxu0 0
        %2344 = vmatprep.subr.bf16.mxu0 0
        %2345 = vmatpush2.bf16.msra.mxu0 0
        %2346 = vmatprep.subr.bf16.mxu0 0
        %2347 = vmatpush2.bf16.msra.mxu0 0
        %2348 = vmatprep.subr.bf16.mxu0 0
        %2349 = vmatpush2.bf16.msra.mxu0 0
        %2350 = vmatprep.subr.bf16.mxu0 0
        %2351 = vmatpush2.bf16.msra.mxu0 0
        %2352 = vmatprep.mubr.bf16.mxu0 0
        %2353 = vmatmul.mubr.bf16.gmra.mxu0 %v1948
        %v2354 = vpop.f32.mrf.mxu0
        %v2355 = vadd.f32 0.0, %v2354
        %v2356 = vpop.f32.mrf.mxu0
        %v2357 = vpop.f32.mrf.mxu0
        %v2358 = vpop.f32.mrf.mxu0
        %2359 = vdwg.mxu0
        %v2361 = vsel %vm1857, %v2226, 0
        %2363 = vmatprep.subr.bf16.mxu0 0
        %2364 = vmatpush1.bf16.msra.mxu0 0
        %2365 = vmatprep.subr.bf16.mxu0 0
        %2366 = vmatpush1.bf16.msra.mxu0 0
        %2367 = vmatprep.subr.bf16.mxu0 0
        %2368 = vmatpush1.bf16.msra.mxu0 0
        %2369 = vmatprep.subr.bf16.mxu0 0
        %2370 = vmatpush1.bf16.msra.mxu0 0
        %2371 = vmatprep.subr.bf16.mxu0 0
        %2372 = vmatpush1.bf16.msra.mxu0 0
        %2373 = vmatprep.subr.bf16.mxu0 0
        %2374 = vmatpush1.bf16.msra.mxu0 0
        %2375 = vmatprep.subr.bf16.mxu0 0
        %2376 = vmatpush1.bf16.msra.mxu0 0
        %2377 = vmatprep.subr.bf16.mxu0 0
        %2378 = vmatpush1.bf16.msra.mxu0 %v2361
        %2379 = vmatprep.subr.bf16.mxu0 0
        %2380 = vmatpush2.bf16.msra.mxu0 0
        %2381 = vmatprep.subr.bf16.mxu0 0
        %2382 = vmatpush2.bf16.msra.mxu0 0
        %2383 = vmatprep.subr.bf16.mxu0 0
        %2384 = vmatpush2.bf16.msra.mxu0 0
        %2385 = vmatprep.subr.bf16.mxu0 0
        %2386 = vmatpush2.bf16.msra.mxu0 0
        %2387 = vmatprep.subr.bf16.mxu0 0
        %2388 = vmatpush2.bf16.msra.mxu0 0
        %2389 = vmatprep.subr.bf16.mxu0 0
        %2390 = vmatpush2.bf16.msra.mxu0 0
        %2391 = vmatprep.subr.bf16.mxu0 0
        %2392 = vmatpush2.bf16.msra.mxu0 0
        %2393 = vmatprep.subr.bf16.mxu0 0
        %2394 = vmatpush2.bf16.msra.mxu0 0
        %2395 = vmatprep.mubr.bf16.mxu0 0
        %2396 = vmatmul.mubr.bf16.gmra.mxu0 %v1994
        %v2397 = vpop.f32.mrf.mxu0
        %v2398 = vadd.f32 0.0, %v2397
        %v2399 = vpop.f32.mrf.mxu0
        %v2400 = vpop.f32.mrf.mxu0
        %v2401 = vpop.f32.mrf.mxu0
        %2402 = vdwg.mxu0
        %v2404 = vsel %vm1857, %v2227, 0
        %2406 = vmatprep.subr.bf16.mxu0 0
        %2407 = vmatpush1.bf16.msra.mxu0 0
        %2408 = vmatprep.subr.bf16.mxu0 0
        %2409 = vmatpush1.bf16.msra.mxu0 0
        %2410 = vmatprep.subr.bf16.mxu0 0
        %2411 = vmatpush1.bf16.msra.mxu0 0
        %2412 = vmatprep.subr.bf16.mxu0 0
        %2413 = vmatpush1.bf16.msra.mxu0 0
        %2414 = vmatprep.subr.bf16.mxu0 0
        %2415 = vmatpush1.bf16.msra.mxu0 0
        %2416 = vmatprep.subr.bf16.mxu0 0
        %2417 = vmatpush1.bf16.msra.mxu0 0
        %2418 = vmatprep.subr.bf16.mxu0 0
        %2419 = vmatpush1.bf16.msra.mxu0 0
        %2420 = vmatprep.subr.bf16.mxu0 0
        %2421 = vmatpush1.bf16.msra.mxu0 %v2404
        %2422 = vmatprep.subr.bf16.mxu0 0
        %2423 = vmatpush2.bf16.msra.mxu0 0
        %2424 = vmatprep.subr.bf16.mxu0 0
        %2425 = vmatpush2.bf16.msra.mxu0 0
        %2426 = vmatprep.subr.bf16.mxu0 0
        %2427 = vmatpush2.bf16.msra.mxu0 0
        %2428 = vmatprep.subr.bf16.mxu0 0
        %2429 = vmatpush2.bf16.msra.mxu0 0
        %2430 = vmatprep.subr.bf16.mxu0 0
        %2431 = vmatpush2.bf16.msra.mxu0 0
        %2432 = vmatprep.subr.bf16.mxu0 0
        %2433 = vmatpush2.bf16.msra.mxu0 0
        %2434 = vmatprep.subr.bf16.mxu0 0
        %2435 = vmatpush2.bf16.msra.mxu0 0
        %2436 = vmatprep.subr.bf16.mxu0 0
        %2437 = vmatpush2.bf16.msra.mxu0 0
        %2438 = vmatprep.mubr.bf16.mxu0 0
        %2439 = vmatmul.mubr.bf16.gmra.mxu0 %v2040
        %v2440 = vpop.f32.mrf.mxu0
        %v2441 = vadd.f32 0.0, %v2440
        %v2442 = vpop.f32.mrf.mxu0
        %v2443 = vpop.f32.mrf.mxu0
        %v2444 = vpop.f32.mrf.mxu0
        %2445 = vdwg.mxu0
        %v2447 = vsel %vm1857, %v2228, 0
        %2449 = vmatprep.subr.bf16.mxu0 0
        %2450 = vmatpush1.bf16.msra.mxu0 0
        %2451 = vmatprep.subr.bf16.mxu0 0
        %2452 = vmatpush1.bf16.msra.mxu0 0
        %2453 = vmatprep.subr.bf16.mxu0 0
        %2454 = vmatpush1.bf16.msra.mxu0 0
        %2455 = vmatprep.subr.bf16.mxu0 0
        %2456 = vmatpush1.bf16.msra.mxu0 0
        %2457 = vmatprep.subr.bf16.mxu0 0
        %2458 = vmatpush1.bf16.msra.mxu0 0
        %2459 = vmatprep.subr.bf16.mxu0 0
        %2460 = vmatpush1.bf16.msra.mxu0 0
        %2461 = vmatprep.subr.bf16.mxu0 0
        %2462 = vmatpush1.bf16.msra.mxu0 0
        %2463 = vmatprep.subr.bf16.mxu0 0
        %2464 = vmatpush1.bf16.msra.mxu0 %v2447
        %2465 = vmatprep.subr.bf16.mxu0 0
        %2466 = vmatpush2.bf16.msra.mxu0 0
        %2467 = vmatprep.subr.bf16.mxu0 0
        %2468 = vmatpush2.bf16.msra.mxu0 0
        %2469 = vmatprep.subr.bf16.mxu0 0
        %2470 = vmatpush2.bf16.msra.mxu0 0
        %2471 = vmatprep.subr.bf16.mxu0 0
        %2472 = vmatpush2.bf16.msra.mxu0 0
        %2473 = vmatprep.subr.bf16.mxu0 0
        %2474 = vmatpush2.bf16.msra.mxu0 0
        %2475 = vmatprep.subr.bf16.mxu0 0
        %2476 = vmatpush2.bf16.msra.mxu0 0
        %2477 = vmatprep.subr.bf16.mxu0 0
        %2478 = vmatpush2.bf16.msra.mxu0 0
        %2479 = vmatprep.subr.bf16.mxu0 0
        %2480 = vmatpush2.bf16.msra.mxu0 0
        %2481 = vmatprep.mubr.bf16.mxu0 0
        %2482 = vmatmul.mubr.bf16.gmra.mxu0 %v2086
        %v2483 = vpop.f32.mrf.mxu0
        %v2484 = vadd.f32 0.0, %v2483
        %v2485 = vpop.f32.mrf.mxu0
        %v2486 = vpop.f32.mrf.mxu0
        %v2487 = vpop.f32.mrf.mxu0
        %2488 = vdwg.mxu0
        %v2490 = vsel %vm1857, %v2229, 0
        %2492 = vmatprep.subr.bf16.mxu0 0
        %2493 = vmatpush1.bf16.msra.mxu0 0
        %2494 = vmatprep.subr.bf16.mxu0 0
        %2495 = vmatpush1.bf16.msra.mxu0 0
        %2496 = vmatprep.subr.bf16.mxu0 0
        %2497 = vmatpush1.bf16.msra.mxu0 0
        %2498 = vmatprep.subr.bf16.mxu0 0
        %2499 = vmatpush1.bf16.msra.mxu0 0
        %2500 = vmatprep.subr.bf16.mxu0 0
        %2501 = vmatpush1.bf16.msra.mxu0 0
        %2502 = vmatprep.subr.bf16.mxu0 0
        %2503 = vmatpush1.bf16.msra.mxu0 0
        %2504 = vmatprep.subr.bf16.mxu0 0
        %2505 = vmatpush1.bf16.msra.mxu0 0
        %2506 = vmatprep.subr.bf16.mxu0 0
        %2507 = vmatpush1.bf16.msra.mxu0 %v2490
        %2508 = vmatprep.subr.bf16.mxu0 0
        %2509 = vmatpush2.bf16.msra.mxu0 0
        %2510 = vmatprep.subr.bf16.mxu0 0
        %2511 = vmatpush2.bf16.msra.mxu0 0
        %2512 = vmatprep.subr.bf16.mxu0 0
        %2513 = vmatpush2.bf16.msra.mxu0 0
        %2514 = vmatprep.subr.bf16.mxu0 0
        %2515 = vmatpush2.bf16.msra.mxu0 0
        %2516 = vmatprep.subr.bf16.mxu0 0
        %2517 = vmatpush2.bf16.msra.mxu0 0
        %2518 = vmatprep.subr.bf16.mxu0 0
        %2519 = vmatpush2.bf16.msra.mxu0 0
        %2520 = vmatprep.subr.bf16.mxu0 0
        %2521 = vmatpush2.bf16.msra.mxu0 0
        %2522 = vmatprep.subr.bf16.mxu0 0
        %2523 = vmatpush2.bf16.msra.mxu0 0
        %2524 = vmatprep.mubr.bf16.mxu0 0
        %2525 = vmatmul.mubr.bf16.gmra.mxu0 %v2132
        %v2526 = vpop.f32.mrf.mxu0
        %v2527 = vadd.f32 0.0, %v2526
        %v2528 = vpop.f32.mrf.mxu0
        %v2529 = vpop.f32.mrf.mxu0
        %v2530 = vpop.f32.mrf.mxu0
        %2531 = vdwg.mxu0
        %v2533 = vsel %vm1857, %v2230, 0
        %2535 = vmatprep.subr.bf16.mxu0 0
        %2536 = vmatpush1.bf16.msra.mxu0 0
        %2537 = vmatprep.subr.bf16.mxu0 0
        %2538 = vmatpush1.bf16.msra.mxu0 0
        %2539 = vmatprep.subr.bf16.mxu0 0
        %2540 = vmatpush1.bf16.msra.mxu0 0
        %2541 = vmatprep.subr.bf16.mxu0 0
        %2542 = vmatpush1.bf16.msra.mxu0 0
        %2543 = vmatprep.subr.bf16.mxu0 0
        %2544 = vmatpush1.bf16.msra.mxu0 0
        %2545 = vmatprep.subr.bf16.mxu0 0
        %2546 = vmatpush1.bf16.msra.mxu0 0
        %2547 = vmatprep.subr.bf16.mxu0 0
        %2548 = vmatpush1.bf16.msra.mxu0 0
        %2549 = vmatprep.subr.bf16.mxu0 0
        %2550 = vmatpush1.bf16.msra.mxu0 %v2533
        %2551 = vmatprep.subr.bf16.mxu0 0
        %2552 = vmatpush2.bf16.msra.mxu0 0
        %2553 = vmatprep.subr.bf16.mxu0 0
        %2554 = vmatpush2.bf16.msra.mxu0 0
        %2555 = vmatprep.subr.bf16.mxu0 0
        %2556 = vmatpush2.bf16.msra.mxu0 0
        %2557 = vmatprep.subr.bf16.mxu0 0
        %2558 = vmatpush2.bf16.msra.mxu0 0
        %2559 = vmatprep.subr.bf16.mxu0 0
        %2560 = vmatpush2.bf16.msra.mxu0 0
        %2561 = vmatprep.subr.bf16.mxu0 0
        %2562 = vmatpush2.bf16.msra.mxu0 0
        %2563 = vmatprep.subr.bf16.mxu0 0
        %2564 = vmatpush2.bf16.msra.mxu0 0
        %2565 = vmatprep.subr.bf16.mxu0 0
        %2566 = vmatpush2.bf16.msra.mxu0 0
        %2567 = vmatprep.mubr.bf16.mxu0 0
        %2568 = vmatmul.mubr.bf16.gmra.mxu0 %v2178
        %v2569 = vpop.f32.mrf.mxu0
        %v2570 = vadd.f32 0.0, %v2569
        %v2571 = vpop.f32.mrf.mxu0
        %v2572 = vpop.f32.mrf.mxu0
        %v2573 = vpop.f32.mrf.mxu0
        %2574 = vdwg.mxu0
        %v2575 = vld [vmem:[%s12] sm:$0x7]
        %v2576 = vlaneseq
        %v2577 = vshrl.u32 %v2576, 7
        %v2578 = vsub.s32 0, %v2577
        %v2579 = vrot.slane %v2575, %v2578
        %v2580 = vmul.f32 %v625, %v2579
        %2581 = vadd.xlane.f32.xlu0 %v2580
        %v2582 = vpop.xlane.xlu0 %2581
        %v2583 = vlaneseq
        %v2584 = vshrl.u32 %v2583, 7
        %v2585 = vsub.s32 1, %v2584
        %v2586 = vrot.slane %v2575, %v2585
        %v2587 = vmul.f32 %v1165, %v2586
        %2588 = vadd.xlane.f32.xlu0 %v2587
        %v2589 = vpop.xlane.xlu0 %2588
        %v2590 = vadd.f32 %v2582, %v2589
        %v2591 = vlaneseq
        %v2592 = vshrl.u32 %v2591, 7
        %v2593 = vsub.s32 2, %v2592
        %v2594 = vrot.slane %v2575, %v2593
        %v2595 = vmul.f32 %v1896, %v2594
        %v2596 = vmul.f32 %v1942, %v2594
        %v2597 = vmul.f32 %v1988, %v2594
        %v2598 = vmul.f32 %v2034, %v2594
        %v2599 = vmul.f32 %v2080, %v2594
        %v2600 = vmul.f32 %v2126, %v2594
        %v2601 = vmul.f32 %v2172, %v2594
        %v2602 = vmul.f32 %v2218, %v2594
        %v2611 = vrot.slane %v2596, 7
        %v2612 = vsel %vm1610, %v2611, %v2595
        %v2613 = vrot.slane %v2597, 6
        %v2614 = vsel %vm1613, %v2613, %v2612
        %v2615 = vrot.slane %v2598, 5
        %v2616 = vsel %vm1616, %v2615, %v2614
        %v2617 = vrot.slane %v2599, 4
        %v2618 = vsel %vm1619, %v2617, %v2616
        %v2619 = vrot.slane %v2600, 3
        %v2620 = vsel %vm1622, %v2619, %v2618
        %v2621 = vrot.slane %v2601, 2
        %v2622 = vsel %vm1625, %v2621, %v2620
        %v2623 = vrot.slane %v2602, 1
        %v2624 = vsel %vm1628, %v2623, %v2622
        %2626 = vadd.xlane.f32.xlu0 %v2624
        %v2627 = vpop.xlane.xlu0 %2626
        %v2628 = vadd.f32 %v2590, %v2627
        %v2629 = vld [vmem:[#allocation4] sm:$0x1]
        %s2630 = vtos %v2629
        %v2631 = vstv %s2630
        %v2632 = vadd.f32 %v2628, %v2631
        %v2633 = vxor.u32 %v2632, 2147483648
        %v2634 = vmul.f32 %v2633, 1.442695
        %v2635 = vpow.pop %v2634
        %v2636 = vadd.f32 %v2635, 1.0
        %v2637 = vrcp.pop %v2636
        %v2638 = vmul.f32 1.0, %v2637
        %v2639 = vmul.f32 %v2638, %v1853
        %v2640 = vsub.f32 1.0, %v2638
        %v2649 = vrot.slane %v2312, 7
        %v2650 = vsel %vm1610, %v2649, %v2269
        %v2651 = vrot.slane %v2355, 6
        %v2652 = vsel %vm1613, %v2651, %v2650
        %v2653 = vrot.slane %v2398, 5
        %v2654 = vsel %vm1616, %v2653, %v2652
        %v2655 = vrot.slane %v2441, 4
        %v2656 = vsel %vm1619, %v2655, %v2654
        %v2657 = vrot.slane %v2484, 3
        %v2658 = vsel %vm1622, %v2657, %v2656
        %v2659 = vrot.slane %v2527, 2
        %v2660 = vsel %vm1625, %v2659, %v2658
        %v2661 = vrot.slane %v2570, 1
        %v2662 = vsel %vm1628, %v2661, %v2660
        %v2664 = vmul.f32 %v2640, %v2662
        %v2665 = vadd.f32 %v2639, %v2664
        %2666 = vst [vmem:[%s610] sm:$0xff] %v2665
        %v2667 = vlaneseq
        %v2668 = vand.u32 %v2667, 127
        %2669 = vmax.xlane.f32.xlu0 %v2665
        %v2670 = vpop.xlane.xlu0 %2669
        %vm2671 = vcmp.eq.f32.partialorder %v2665, %v2670
        %v2672 = vsel %vm2671, %v2668, 128
        %v2673 = vand.u32 %v2672, 65535
        %v2674 = vshra.s32 %v2672, 16
        %v2675 = vcvt.s32.f32 %v2673
        %v2676 = vcvt.s32.f32 %v2674
        %2677 = vmin.xlane.f32.xlu0 %v2676
        %v2678 = vpop.xlane.xlu0 %2677
        %vm2679 = vcmp.eq.f32.partialorder %v2676, %v2678
        %v2680 = vsel %vm2679, %v2675, inf
        %2681 = vmin.xlane.f32.xlu0 %v2680
        %v2682 = vpop.xlane.xlu0 %2681
        %v2683 = vcvt.f32.s32 %v2682
        %v2684 = vcvt.f32.s32 %v2678
        %v2685 = vshll.u32 %v2684, 16
        %v2686 = vadd.s32 %v2685, %v2683
        %vm2687 = vcmp.eq.s32.totalorder %v2668, %v2686
        %v2688 = vsel %vm2687, 1, 0
        %v2689 = vcvt.s32.f32 %v2688
        %v2690 = vpack.c.bf16 %v2689, %v2689
        %v2691 = vld [vmem:[#allocation14] sm:$0xf]
        %v2692 = vld [vmem:[#allocation14 + $0x4] sm:$0xf]
        %v2693 = vld [vmem:[#allocation14 + $0x8] sm:$0xf]
        %v2694 = vld [vmem:[#allocation14 + $0xc] sm:$0xf]
        %v2695 = vld [vmem:[#allocation14 + $0x10] sm:$0xf]
        %v2696 = vld [vmem:[#allocation14 + $0x14] sm:$0xf]
        %v2697 = vld [vmem:[#allocation14 + $0x18] sm:$0xf]
        %v2698 = vld [vmem:[#allocation14 + $0x1c] sm:$0xf]
        %v2699 = vld [vmem:[#allocation14 + $0x20] sm:$0xf]
        %v2700 = vld [vmem:[#allocation14 + $0x24] sm:$0xf]
        %v2701 = vld [vmem:[#allocation14 + $0x28] sm:$0xf]
        %v2702 = vld [vmem:[#allocation14 + $0x2c] sm:$0xf]
        %v2703 = vld [vmem:[#allocation14 + $0x30] sm:$0xf]
        %v2704 = vld [vmem:[#allocation14 + $0x34] sm:$0xf]
        %v2705 = vld [vmem:[#allocation14 + $0x38] sm:$0xf]
        %v2706 = vld [vmem:[#allocation14 + $0x3c] sm:$0xf]
        %v2723 = vunpack.c.l.b16 %v2691
        %v2724 = vunpack.c.l.b16 %v2692
        %v2725 = vunpack.c.l.b16 %v2693
        %v2726 = vunpack.c.l.b16 %v2694
        %v2727 = vunpack.c.l.b16 %v2695
        %v2728 = vunpack.c.l.b16 %v2696
        %v2729 = vunpack.c.l.b16 %v2697
        %v2730 = vunpack.c.l.b16 %v2698
        %v2731 = vunpack.c.l.b16 %v2699
        %v2732 = vunpack.c.l.b16 %v2700
        %v2733 = vunpack.c.l.b16 %v2701
        %v2734 = vunpack.c.l.b16 %v2702
        %v2735 = vunpack.c.l.b16 %v2703
        %v2736 = vunpack.c.l.b16 %v2704
        %v2737 = vunpack.c.l.b16 %v2705
        %v2738 = vunpack.c.l.b16 %v2706
        %v2739 = vpack.c.b16 %v2724, %v2723
        %v2740 = vpack.c.b16 %v2726, %v2725
        %v2741 = vpack.c.b16 %v2728, %v2727
        %v2742 = vpack.c.b16 %v2730, %v2729
        %v2743 = vpack.c.b16 %v2732, %v2731
        %v2744 = vpack.c.b16 %v2734, %v2733
        %v2745 = vpack.c.b16 %v2736, %v2735
        %v2746 = vpack.c.b16 %v2738, %v2737
        %2755 = vmatprep.subr.bf16.mxu0 0
        %2756 = vmatpush1.bf16.msra.mxu0 %v2746
        %2757 = vmatprep.subr.bf16.mxu0 0
        %2758 = vmatpush1.bf16.msra.mxu0 %v2745
        %2759 = vmatprep.subr.bf16.mxu0 0
        %2760 = vmatpush1.bf16.msra.mxu0 %v2744
        %2761 = vmatprep.subr.bf16.mxu0 0
        %2762 = vmatpush1.bf16.msra.mxu0 %v2743
        %2763 = vmatprep.subr.bf16.mxu0 0
        %2764 = vmatpush1.bf16.msra.mxu0 %v2742
        %2765 = vmatprep.subr.bf16.mxu0 0
        %2766 = vmatpush1.bf16.msra.mxu0 %v2741
        %2767 = vmatprep.subr.bf16.mxu0 0
        %2768 = vmatpush1.bf16.msra.mxu0 %v2740
        %2769 = vmatprep.subr.bf16.mxu0 0
        %2770 = vmatpush1.bf16.msra.mxu0 %v2739
        %2771 = vmatprep.subr.bf16.mxu0 0
        %2772 = vmatpush2.bf16.msra.mxu0 0
        %2773 = vmatprep.subr.bf16.mxu0 0
        %2774 = vmatpush2.bf16.msra.mxu0 0
        %2775 = vmatprep.subr.bf16.mxu0 0
        %2776 = vmatpush2.bf16.msra.mxu0 0
        %2777 = vmatprep.subr.bf16.mxu0 0
        %2778 = vmatpush2.bf16.msra.mxu0 0
        %2779 = vmatprep.subr.bf16.mxu0 0
        %2780 = vmatpush2.bf16.msra.mxu0 0
        %2781 = vmatprep.subr.bf16.mxu0 0
        %2782 = vmatpush2.bf16.msra.mxu0 0
        %2783 = vmatprep.subr.bf16.mxu0 0
        %2784 = vmatpush2.bf16.msra.mxu0 0
        %2785 = vmatprep.subr.bf16.mxu0 0
        %2786 = vmatpush2.bf16.msra.mxu0 0
        %2787 = vmatprep.mubr.bf16.mxu0 0
        %2788 = vmatmul.mubr.bf16.gmra.mxu0 %v2690
        %v2789 = vpop.f32.mrf.mxu0
        %v2790 = vadd.f32 0.0, %v2789
        %v2791 = vpop.f32.mrf.mxu0
        %v2792 = vpop.f32.mrf.mxu0
        %v2793 = vpop.f32.mrf.mxu0
        %2794 = vdwg.mxu0
        %2795 = vst [vmem:[#allocation2] sm:$0xff] %v1165
        %2796 = vst [vmem:[#allocation3] sm:$0xff] %v2790
        %s2797 = sand.u32 %s358, 1
        %s2798 = scalar_lea.sflag [#allocation7], %s2797
        %s2799 = sand.u32 %s358, 1
        %s2800 = smul.addr %s2799, 8
        %s2801 = scalar_lea.vmem [#allocation20], %s2800
        // Predicated region
        $region121: #{tpu_custom_call.1} parent=75 // pred_check
          %p2802 = pneg %p368
        $region122: #{tpu_custom_call.1} parent=75 // pred_check_branch
          %2804 = sbr.rel (%p2802) target = $region124
        $region123: #{tpu_custom_call.1} parent=75 // pred_region
          %s2806 = ssub.s32 128, 128
          %2807 = vsyncadd %s2798, %s2806
          %s2808 = smul.addr %s41, 4
          %s2809 = sadd.s32 %s42, %s2808
          %s2810 = smul.addr %s2809, 128
          %s2811 = scalar_lea.hbm %s14, %s2810
          %s2813 = sshll.u32 %s2801, 4
          %s2814 = int_to_ptr.vmem [resolvable:$true] %s2813
          %2816 = dma.vmem_to_hbm [thread:$0]  %s2814, 128, %s2811, %s2798
        $region124: #{tpu_custom_call.1} parent=75 // pred_fallthru
          _
      $region76: #{tpu_custom_call.1} parent=5 // pred_fallthru
        _
      %p2817 = scmp.le.s32.totalorder 2, %s32
      // Predicated region
      $region125: #{tpu_custom_call.1} parent=5 // pred_check
        %p2818 = pneg %p2817
      $region126: #{tpu_custom_call.1} parent=5 // pred_check_branch
        %2820 = sbr.rel (%p2818) target = $region128
      $region127: #{tpu_custom_call.1} parent=5 // pred_region
        %s2821 = ssub.s32 %s32, 2
        // Predicated region
        $region129: #{tpu_custom_call.1} parent=127 // pred_check
          %p2822 = pneg %p374
        $region130: #{tpu_custom_call.1} parent=127 // pred_check_branch
          %2824 = sbr.rel (%p2822) target = $region132
        $region131: #{tpu_custom_call.1} parent=127 // pred_region
          %s2825 = sand.u32 %s359, 1
          %s2826 = scalar_lea.sflag [#allocation7], %s2825
          %s2827 = sand.u32 %s359, 1
          %s2828 = smul.addr %s2827, 8
          %s2829 = scalar_lea.vmem [#allocation20], %s2828
          %2830 = dma.done %s2826, 128
        $region132: #{tpu_custom_call.1} parent=127 // pred_fallthru
          _
      $region128: #{tpu_custom_call.1} parent=5 // pred_fallthru
        _
    $region6: #{tpu_custom_call.1} parent=1 // loop_footer
      %s36 = sadd.s32 1, %s32
    $region7: #{tpu_custom_call.1} parent=1 // loop_footer_branch
      %31 = sbr.rel target = $region3
    $region8: #{tpu_custom_call.1} parent=1 // loop_exit
      _
    %2831 = vsyncpa [#allocation6], 1
    %s2832 = scalar_lea.sflag [#allocation6], 1
    %2833 = vsyncpa %s2832, 1
    %2834 = vsyncpa [#allocation9], 1
    %2835 = vsyncpa [#allocation12], 1
    %2836 = vsyncpa [#allocation15], 1
    %2837 = vsyncpa [#allocation18], 1
    %2838 = vsyncpa [#allocation7], 1
    %s2839 = scalar_lea.sflag [#allocation7], 1
    %2840 = vsyncpa %s2839, 1

// kernel: tpu_custom_call.1
$region0: #{tpu_custom_call.1}
  #allocation0 [shape = 'u32[]', space=smem, size = 0x4, offset = 0x4, fixed_abs, tag = 'smem constant byte address 0x4 - core index']
  #allocation1 [shape = 'u32[144,128]{1,0:T(1,128)}', space=vmem, size = 0x12000, scoped, tag = 'internal scratch']
  #allocation2 [shape = 'f32[8,128]{1,0:T(8,128)}', space=vmem, size = 0x1000, scoped, tag = 'scratch operand']
  #allocation3 [shape = 'f32[8,128]{1,0:T(8,128)}', space=vmem, size = 0x1000, scoped, tag = 'scratch operand']
  #allocation4 [shape = 'f32[1,1]{1,0:T(1,128)S(1)}', space=vmem, size = 0x200, scoped, tag = 'scoped memory for tpu_custom_call.1']
  %s0 = inlined_call_operand.hbm [shape: f32[3,8,128], index: 0, kind: input, shape index: {}]
  %s1 = inlined_call_operand.hbm [shape: f32[8,128], index: 1, kind: input, shape index: {}]
  %s2 = inlined_call_operand.hbm [shape: bf16[8,8,128], index: 2, kind: input, shape index: {}]
  %s3 = inlined_call_operand.hbm [shape: f32[8,8], index: 3, kind: input, shape index: {}]
  %s4 = inlined_call_operand.hbm [shape: bf16[8,8,128], index: 4, kind: input, shape index: {}]
  %s5 = inlined_call_operand.hbm [shape: bf16[128,128], index: 5, kind: input, shape index: {}]
  %s6 = inlined_call_operand.hbm [shape: bf16[128,128], index: 6, kind: input, shape index: {}]
  %s7 = inlined_call_operand.vmem [shape: f32[1,128], index: 7, kind: input, shape index: {}]
  %s8 = inlined_call_operand.hbm [shape: bf16[128,384], index: 8, kind: input, shape index: {}]
  %s9 = inlined_call_operand.hbm [shape: bf16[128,384], index: 9, kind: input, shape index: {}]
  %s10 = inlined_call_operand.vmem [shape: f32[1,384], index: 10, kind: input, shape index: {}]
  %s11 = inlined_call_operand.vmem [shape: f32[1,384], index: 11, kind: input, shape index: {}]
  %s12 = inlined_call_operand.vmem [shape: f32[3,128], index: 12, kind: input, shape index: {}]
  %s13 = inlined_call_operand.<no memory space> [shape: f32[1,1], index: 13, kind: input, shape index: {}]
  %s14 = inlined_call_operand.hbm [shape: f32[3,4,8,128], index: 14, kind: output, shape index: {}]
  %s15 = sld [smem:[#allocation0]]
  $region133: #{tpu_custom_call.1} parent=0
    _
  %s17 = ssub.s32 1, %s15
  %s18 = scalar_select 0, %s17, %s15
  %v19 = vstv %s13
  %20 = vst [vmem:[#allocation4] sm:$0x1] %v19
  $region1: #{tpu_custom_call.1} parent=0
    #allocation5 [shape = 'u8[8192]{0}', space=vmem, size = 0x2000, scoped, tag = 'input window, operand 0']
    #allocation6 [shape = 's32[2]{0}', space=sflag, size = 0x8, scoped, tag = 'scoped memory for tpu_custom_call.1']
    #allocation7 [shape = 's32[2]{0}', space=sflag, size = 0x8, scoped, tag = 'scoped memory for tpu_custom_call.1']
    #allocation8 [shape = 'u8[4096]{0}', space=vmem, size = 0x1000, scoped, tag = 'input window, operand 1, single buffered']
    #allocation9 [shape = 's32[1]{0}', space=sflag, size = 0x4, scoped, tag = 'scoped memory for tpu_custom_call.1']
    #allocation10 [shape = 'u8[16384]{0}', space=vmem, size = 0x4000, scoped, tag = 'input window, operand 2, single buffered']
    #allocation11 [shape = 'u8[4096]{0}', space=vmem, size = 0x1000, scoped, tag = 'input window, operand 3, single buffered']
    #allocation12 [shape = 's32[1]{0}', space=sflag, size = 0x4, scoped, tag = 'scoped memory for tpu_custom_call.1']
    #allocation13 [shape = 'u8[16384]{0}', space=vmem, size = 0x4000, scoped, tag = 'input window, operand 4, single buffered']
    #allocation14 [shape = 'u8[32768]{0}', space=vmem, size = 0x8000, scoped, tag = 'input window, operand 5, single buffered']
    #allocation15 [shape = 's32[1]{0}', space=sflag, size = 0x4, scoped, tag = 'scoped memory for tpu_custom_call.1']
    #allocation16 [shape = 'u8[32768]{0}', space=vmem, size = 0x8000, scoped, tag = 'input window, operand 6, single buffered']
    #allocation17 [shape = 'u8[98304]{0}', space=vmem, size = 0x18000, scoped, tag = 'input window, operand 8, single buffered']
    #allocation18 [shape = 's32[1]{0}', space=sflag, size = 0x4, scoped, tag = 'scoped memory for tpu_custom_call.1']
    #allocation19 [shape = 'u8[98304]{0}', space=vmem, size = 0x18000, scoped, tag = 'input window, operand 9, single buffered']
    #allocation20 [shape = 'u8[8192]{0}', space=vmem, size = 0x2000, scoped, tag = 'output window, operand 0']
    %21 = vsyncpa [#allocation6], 0
    %s22 = scalar_lea.sflag [#allocation6], 1
    %23 = vsyncpa %s22, 0
    %24 = vsyncpa [#allocation9], 0
    %25 = vsyncpa [#allocation12], 0
    %26 = vsyncpa [#allocation15], 0
    %27 = vsyncpa [#allocation18], 0
    %28 = vsyncpa [#allocation7], 0
    %s29 = scalar_lea.sflag [#allocation7], 1
    %30 = vsyncpa %s29, 0
    loop: start=0, step=1, limit=14
    $region2: #{tpu_custom_call.1} parent=1 // loop_pre_header
      _
    $region3: #{tpu_custom_call.1} parent=1 // loop_header
      %s32 = sphi 0, %s36
      %p33 = scmp.ge.s32.totalorder %s32, 14
      %s39 = sphi 0, %s51
      %s40 = sphi 0, %s47
      %s41 = sphi 0, %s39
      %s42 = sphi 0, %s40
      %s43 = sphi 0, %s41
      %s44 = sphi 0, %s42
      %s54 = sphi 0, %s56
      %s57 = sphi 0, %s54
      %s58 = sphi 0, %s57
      %s74 = sphi 0, %s58
      %s78 = sphi 0, %s78
      %s80 = sphi 0, %s78
      %s81 = sphi 0, %s80
      %s95 = sphi 0, %s81
      %s99 = sphi 0, %s99
      %s101 = sphi 0, %s99
      %s102 = sphi 0, %s101
      %s116 = sphi 0, %s102
      %s120 = sphi 0, %s120
      %s122 = sphi 0, %s120
      %s123 = sphi 0, %s122
      %s137 = sphi 0, %s123
      %s141 = sphi 0, %s141
      %s143 = sphi 0, %s141
      %s144 = sphi 0, %s143
      %s158 = sphi 0, %s144
      %s162 = sphi 0, %s162
      %s164 = sphi 0, %s162
      %s165 = sphi 0, %s164
      %s179 = sphi 0, %s165
      %s183 = sphi 0, %s183
      %s185 = sphi 0, %s183
      %s186 = sphi 0, %s185
      %s200 = sphi 0, %s186
      %s204 = sphi 0, %s204
      %s206 = sphi 0, %s204
      %s207 = sphi 0, %s206
      %s221 = sphi 0, %s207
      %s225 = sphi 0, %s225
      %s227 = sphi 0, %s225
      %s228 = sphi 0, %s227
      %s242 = sphi 0, %s228
      %s246 = sphi 0, %s246
      %s248 = sphi 0, %s246
      %s249 = sphi 0, %s248
      %s263 = sphi 0, %s249
      %s267 = sphi 0, %s267
      %s269 = sphi 0, %s267
      %s270 = sphi 0, %s269
      %s284 = sphi 0, %s270
      %s288 = sphi 0, %s288
      %s290 = sphi 0, %s288
      %s291 = sphi 0, %s290
      %s305 = sphi 0, %s291
      %s309 = sphi 0, %s309
      %s311 = sphi 0, %s309
      %s312 = sphi 0, %s311
      %s326 = sphi 0, %s312
      %s330 = sphi 0, %s330
      %s332 = sphi 0, %s330
      %s333 = sphi 0, %s332
      %s347 = sphi 0, %s333
      %s355 = sphi 0, %s357
      %s358 = sphi 0, %s355
      %s359 = sphi 0, %s358
      %s375 = sphi 0, %s359
    $region4: #{tpu_custom_call.1} parent=1 // loop_header_branch
      %35 = sbr.rel (%p33) target = $region8
    $region5: #{tpu_custom_call.1} parent=1 // loop_body
      %s37 = ssub.s32 %s32, 1
      %s38 = ssub.s32 %s32, 2
      %s45 = sadd.s32 1, %s40
      %p46 = scmp.ge.s32.totalorder %s45, 4
      %s47 = scalar_select %p46, 0, %s45
      %s48 = sadd.s32 1, %s39
      %s49 = scalar_select %p46, %s48, %s39
      %p50 = scmp.ge.s32.totalorder %s49, 3
      %s51 = scalar_select %p50, 0, %s49
      %s52 = ssub.s32 %s39, %s51
      %p53 = scmp.eq.s32.totalorder %s52, 0
      %s55 = sadd.s32 %s54, 1
      %s56 = scalar_select %p53, %s54, %s55
      %p59 = pneg %p53
      %p60 = scmp.eq.s32.totalorder %s32, 11
      %p61 = por %p59, %p60
      %p62 = scmp.ne.s32.totalorder %s54, %s57
      %p63 = scmp.eq.s32.totalorder %s32, 0
      %p64 = por %p62, %p63
      %p65 = scmp.ne.s32.totalorder %s54, %s57
      %p66 = scmp.eq.s32.totalorder %s37, 11
      %p67 = por %p65, %p66
      %p68 = scmp.ne.s32.totalorder %s57, %s58
      %p69 = scmp.eq.s32.totalorder %s37, 0
      %p70 = por %p68, %p69
      %p71 = scmp.ne.s32.totalorder %s57, %s58
      %p72 = scmp.eq.s32.totalorder %s38, 11
      %p73 = por %p71, %p72
      %p75 = scmp.ne.s32.totalorder %s58, %s74
      %p76 = scmp.eq.s32.totalorder %s38, 0
      %p77 = por %p75, %p76
      %s79 = sadd.s32 %s78, 1
      %p82 = scmp.eq.s32.totalorder %s32, 11
      %p83 = scmp.ne.s32.totalorder %s78, %s80
      %p84 = scmp.eq.s32.totalorder %s32, 0
      %p85 = por %p83, %p84
      %p86 = scmp.ne.s32.totalorder %s78, %s80
      %p87 = scmp.eq.s32.totalorder %s37, 11
      %p88 = por %p86, %p87
      %p89 = scmp.ne.s32.totalorder %s80, %s81
      %p90 = scmp.eq.s32.totalorder %s37, 0
      %p91 = por %p89, %p90
      %p92 = scmp.ne.s32.totalorder %s80, %s81
      %p93 = scmp.eq.s32.totalorder %s38, 11
      %p94 = por %p92, %p93
      %p96 = scmp.ne.s32.totalorder %s81, %s95
      %p97 = scmp.eq.s32.totalorder %s38, 0
      %p98 = por %p96, %p97
      %s100 = sadd.s32 %s99, 1
      %p103 = scmp.eq.s32.totalorder %s32, 11
      %p104 = scmp.ne.s32.totalorder %s99, %s101
      %p105 = scmp.eq.s32.totalorder %s32, 0
      %p106 = por %p104, %p105
      %p107 = scmp.ne.s32.totalorder %s99, %s101
      %p108 = scmp.eq.s32.totalorder %s37, 11
      %p109 = por %p107, %p108
      %p110 = scmp.ne.s32.totalorder %s101, %s102
      %p111 = scmp.eq.s32.totalorder %s37, 0
      %p112 = por %p110, %p111
      %p113 = scmp.ne.s32.totalorder %s101, %s102
      %p114 = scmp.eq.s32.totalorder %s38, 11
      %p115 = por %p113, %p114
      %p117 = scmp.ne.s32.totalorder %s102, %s116
      %p118 = scmp.eq.s32.totalorder %s38, 0
      %p119 = por %p117, %p118
      %s121 = sadd.s32 %s120, 1
      %p124 = scmp.eq.s32.totalorder %s32, 11
      %p125 = scmp.ne.s32.totalorder %s120, %s122
      %p126 = scmp.eq.s32.totalorder %s32, 0
      %p127 = por %p125, %p126
      %p128 = scmp.ne.s32.totalorder %s120, %s122
      %p129 = scmp.eq.s32.totalorder %s37, 11
      %p130 = por %p128, %p129
      %p131 = scmp.ne.s32.totalorder %s122, %s123
      %p132 = scmp.eq.s32.totalorder %s37, 0
      %p133 = por %p131, %p132
      %p134 = scmp.ne.s32.totalorder %s122, %s123
      %p135 = scmp.eq.s32.totalorder %s38, 11
      %p136 = por %p134, %p135
      %p138 = scmp.ne.s32.totalorder %s123, %s137
      %p139 = scmp.eq.s32.totalorder %s38, 0
      %p140 = por %p138, %p139
      %s142 = sadd.s32 %s141, 1
      %p145 = scmp.eq.s32.totalorder %s32, 11
      %p146 = scmp.ne.s32.totalorder %s141, %s143
      %p147 = scmp.eq.s32.totalorder %s32, 0
      %p148 = por %p146, %p147
      %p149 = scmp.ne.s32.totalorder %s141, %s143
      %p150 = scmp.eq.s32.totalorder %s37, 11
      %p151 = por %p149, %p150
      %p152 = scmp.ne.s32.totalorder %s143, %s144
      %p153 = scmp.eq.s32.totalorder %s37, 0
      %p154 = por %p152, %p153
      %p155 = scmp.ne.s32.totalorder %s143, %s144
      %p156 = scmp.eq.s32.totalorder %s38, 11
      %p157 = por %p155, %p156
      %p159 = scmp.ne.s32.totalorder %s144, %s158
      %p160 = scmp.eq.s32.totalorder %s38, 0
      %p161 = por %p159, %p160
      %s163 = sadd.s32 %s162, 1
      %p166 = scmp.eq.s32.totalorder %s32, 11
      %p167 = scmp.ne.s32.totalorder %s162, %s164
      %p168 = scmp.eq.s32.totalorder %s32, 0
      %p169 = por %p167, %p168
      %p170 = scmp.ne.s32.totalorder %s162, %s164
      %p171 = scmp.eq.s32.totalorder %s37, 11
      %p172 = por %p170, %p171
      %p173 = scmp.ne.s32.totalorder %s164, %s165
      %p174 = scmp.eq.s32.totalorder %s37, 0
      %p175 = por %p173, %p174
      %p176 = scmp.ne.s32.totalorder %s164, %s165
      %p177 = scmp.eq.s32.totalorder %s38, 11
      %p178 = por %p176, %p177
      %p180 = scmp.ne.s32.totalorder %s165, %s179
      %p181 = scmp.eq.s32.totalorder %s38, 0
      %p182 = por %p180, %p181
      %s184 = sadd.s32 %s183, 1
      %p187 = scmp.eq.s32.totalorder %s32, 11
      %p188 = scmp.ne.s32.totalorder %s183, %s185
      %p189 = scmp.eq.s32.totalorder %s32, 0
      %p190 = por %p188, %p189
      %p191 = scmp.ne.s32.totalorder %s183, %s185
      %p192 = scmp.eq.s32.totalorder %s37, 11
      %p193 = por %p191, %p192
      %p194 = scmp.ne.s32.totalorder %s185, %s186
      %p195 = scmp.eq.s32.totalorder %s37, 0
      %p196 = por %p194, %p195
      %p197 = scmp.ne.s32.totalorder %s185, %s186
      %p198 = scmp.eq.s32.totalorder %s38, 11
      %p199 = por %p197, %p198
      %p201 = scmp.ne.s32.totalorder %s186, %s200
      %p202 = scmp.eq.s32.totalorder %s38, 0
      %p203 = por %p201, %p202
      %s205 = sadd.s32 %s204, 1
      %p208 = scmp.eq.s32.totalorder %s32, 11
      %p209 = scmp.ne.s32.totalorder %s204, %s206
      %p210 = scmp.eq.s32.totalorder %s32, 0
      %p211 = por %p209, %p210
      %p212 = scmp.ne.s32.totalorder %s204, %s206
      %p213 = scmp.eq.s32.totalorder %s37, 11
      %p214 = por %p212, %p213
      %p215 = scmp.ne.s32.totalorder %s206, %s207
      %p216 = scmp.eq.s32.totalorder %s37, 0
      %p217 = por %p215, %p216
      %p218 = scmp.ne.s32.totalorder %s206, %s207
      %p219 = scmp.eq.s32.totalorder %s38, 11
      %p220 = por %p218, %p219
      %p222 = scmp.ne.s32.totalorder %s207, %s221
      %p223 = scmp.eq.s32.totalorder %s38, 0
      %p224 = por %p222, %p223
      %s226 = sadd.s32 %s225, 1
      %p229 = scmp.eq.s32.totalorder %s32, 11
      %p230 = scmp.ne.s32.totalorder %s225, %s227
      %p231 = scmp.eq.s32.totalorder %s32, 0
      %p232 = por %p230, %p231
      %p233 = scmp.ne.s32.totalorder %s225, %s227
      %p234 = scmp.eq.s32.totalorder %s37, 11
      %p235 = por %p233, %p234
      %p236 = scmp.ne.s32.totalorder %s227, %s228
      %p237 = scmp.eq.s32.totalorder %s37, 0
      %p238 = por %p236, %p237
      %p239 = scmp.ne.s32.totalorder %s227, %s228
      %p240 = scmp.eq.s32.totalorder %s38, 11
      %p241 = por %p239, %p240
      %p243 = scmp.ne.s32.totalorder %s228, %s242
      %p244 = scmp.eq.s32.totalorder %s38, 0
      %p245 = por %p243, %p244
      %s247 = sadd.s32 %s246, 1
      %p250 = scmp.eq.s32.totalorder %s32, 11
      %p251 = scmp.ne.s32.totalorder %s246, %s248
      %p252 = scmp.eq.s32.totalorder %s32, 0
      %p253 = por %p251, %p252
      %p254 = scmp.ne.s32.totalorder %s246, %s248
      %p255 = scmp.eq.s32.totalorder %s37, 11
      %p256 = por %p254, %p255
      %p257 = scmp.ne.s32.totalorder %s248, %s249
      %p258 = scmp.eq.s32.totalorder %s37, 0
      %p259 = por %p257, %p258
      %p260 = scmp.ne.s32.totalorder %s248, %s249
      %p261 = scmp.eq.s32.totalorder %s38, 11
      %p262 = por %p260, %p261
      %p264 = scmp.ne.s32.totalorder %s249, %s263
      %p265 = scmp.eq.s32.totalorder %s38, 0
      %p266 = por %p264, %p265
      %s268 = sadd.s32 %s267, 1
      %p271 = scmp.eq.s32.totalorder %s32, 11
      %p272 = scmp.ne.s32.totalorder %s267, %s269
      %p273 = scmp.eq.s32.totalorder %s32, 0
      %p274 = por %p272, %p273
      %p275 = scmp.ne.s32.totalorder %s267, %s269
      %p276 = scmp.eq.s32.totalorder %s37, 11
      %p277 = por %p275, %p276
      %p278 = scmp.ne.s32.totalorder %s269, %s270
      %p279 = scmp.eq.s32.totalorder %s37, 0
      %p280 = por %p278, %p279
      %p281 = scmp.ne.s32.totalorder %s269, %s270
      %p282 = scmp.eq.s32.totalorder %s38, 11
      %p283 = por %p281, %p282
      %p285 = scmp.ne.s32.totalorder %s270, %s284
      %p286 = scmp.eq.s32.totalorder %s38, 0
      %p287 = por %p285, %p286
      %s289 = sadd.s32 %s288, 1
      %p292 = scmp.eq.s32.totalorder %s32, 11
      %p293 = scmp.ne.s32.totalorder %s288, %s290
      %p294 = scmp.eq.s32.totalorder %s32, 0
      %p295 = por %p293, %p294
      %p296 = scmp.ne.s32.totalorder %s288, %s290
      %p297 = scmp.eq.s32.totalorder %s37, 11
      %p298 = por %p296, %p297
      %p299 = scmp.ne.s32.totalorder %s290, %s291
      %p300 = scmp.eq.s32.totalorder %s37, 0
      %p301 = por %p299, %p300
      %p302 = scmp.ne.s32.totalorder %s290, %s291
      %p303 = scmp.eq.s32.totalorder %s38, 11
      %p304 = por %p302, %p303
      %p306 = scmp.ne.s32.totalorder %s291, %s305
      %p307 = scmp.eq.s32.totalorder %s38, 0
      %p308 = por %p306, %p307
      %s310 = sadd.s32 %s309, 1
      %p313 = scmp.eq.s32.totalorder %s32, 11
      %p314 = scmp.ne.s32.totalorder %s309, %s311
      %p315 = scmp.eq.s32.totalorder %s32, 0
      %p316 = por %p314, %p315
      %p317 = scmp.ne.s32.totalorder %s309, %s311
      %p318 = scmp.eq.s32.totalorder %s37, 11
      %p319 = por %p317, %p318
      %p320 = scmp.ne.s32.totalorder %s311, %s312
      %p321 = scmp.eq.s32.totalorder %s37, 0
      %p322 = por %p320, %p321
      %p323 = scmp.ne.s32.totalorder %s311, %s312
      %p324 = scmp.eq.s32.totalorder %s38, 11
      %p325 = por %p323, %p324
      %p327 = scmp.ne.s32.totalorder %s312, %s326
      %p328 = scmp.eq.s32.totalorder %s38, 0
      %p329 = por %p327, %p328
      %s331 = sadd.s32 %s330, 1
      %p334 = scmp.eq.s32.totalorder %s32, 11
      %p335 = scmp.ne.s32.totalorder %s330, %s332
      %p336 = scmp.eq.s32.totalorder %s32, 0
      %p337 = por %p335, %p336
      %p338 = scmp.ne.s32.totalorder %s330, %s332
      %p339 = scmp.eq.s32.totalorder %s37, 11
      %p340 = por %p338, %p339
      %p341 = scmp.ne.s32.totalorder %s332, %s333
      %p342 = scmp.eq.s32.totalorder %s37, 0
      %p343 = por %p341, %p342
      %p344 = scmp.ne.s32.totalorder %s332, %s333
      %p345 = scmp.eq.s32.totalorder %s38, 11
      %p346 = por %p344, %p345
      %p348 = scmp.ne.s32.totalorder %s333, %s347
      %p349 = scmp.eq.s32.totalorder %s38, 0
      %p350 = por %p348, %p349
      %s351 = ssub.s32 %s39, %s51
      %s352 = ssub.s32 %s40, %s47
      %s353 = sor.u32 %s351, %s352
      %p354 = scmp.eq.s32.totalorder %s353, 0
      %s356 = sadd.s32 %s355, 1
      %s357 = scalar_select %p354, %s355, %s356
      %p360 = pneg %p354
      %p361 = scmp.eq.s32.totalorder %s32, 11
      %p362 = por %p360, %p361
      %p363 = scmp.ne.s32.totalorder %s355, %s358
      %p364 = scmp.eq.s32.totalorder %s32, 0
      %p365 = por %p363, %p364
      %p366 = scmp.ne.s32.totalorder %s355, %s358
      %p367 = scmp.eq.s32.totalorder %s37, 11
      %p368 = por %p366, %p367
      %p369 = scmp.ne.s32.totalorder %s358, %s359
      %p370 = scmp.eq.s32.totalorder %s37, 0
      %p371 = por %p369, %p370
      %p372 = scmp.ne.s32.totalorder %s358, %s359
      %p373 = scmp.eq.s32.totalorder %s38, 11
      %p374 = por %p372, %p373
      %p376 = scmp.ne.s32.totalorder %s359, %s375
      %p377 = scmp.eq.s32.totalorder %s38, 0
      %p378 = por %p376, %p377
      %p379 = scmp.le.s32.totalorder 1, %s32
      %p380 = scmp.lt.s32.totalorder %s32, 13
      %p381 = pnand %p379, %p380
      %p382 = pneg %p381
      // Predicated region
      $region9: #{tpu_custom_call.1} parent=5 // pred_check
        _
      $region10: #{tpu_custom_call.1} parent=5 // pred_check_branch
        %384 = sbr.rel (%p381) target = $region12
      $region11: #{tpu_custom_call.1} parent=5 // pred_region
        %s385 = ssub.s32 %s32, 1
        // Predicated region
        $region13: #{tpu_custom_call.1} parent=11 // pred_check
          %p386 = pneg %p91
        $region14: #{tpu_custom_call.1} parent=11 // pred_check_branch
          %388 = sbr.rel (%p386) target = $region16
        $region15: #{tpu_custom_call.1} parent=11 // pred_region
          %s390 = ssub.s32 128, 128
          %391 = vsyncadd [#allocation9], %s390
          %s393 = sshll.u32 [#allocation8], 4
          %s394 = int_to_ptr.vmem [resolvable:$true] %s393
          %396 = dma.hbm_to_vmem [thread:$0]  %s1, 128, %s394, [#allocation9]
        $region16: #{tpu_custom_call.1} parent=11 // pred_fallthru
          _
        // Predicated region
        $region17: #{tpu_custom_call.1} parent=11 // pred_check
          %p397 = pneg %p112
        $region18: #{tpu_custom_call.1} parent=11 // pred_check_branch
          %399 = sbr.rel (%p397) target = $region20
        $region19: #{tpu_custom_call.1} parent=11 // pred_region
          %s401 = ssub.s32 512, 512
          %402 = vsyncadd [#allocation9], %s401
          %s403 = sshll.u32 [#allocation10], 4
          %s404 = int_to_ptr.vmem [resolvable:$true] %s403
          %409 = dma.hbm_to_vmem [thread:$0]  %s2, 512, %s404, [#allocation9], 64, 64, 4
        $region20: #{tpu_custom_call.1} parent=11 // pred_fallthru
          _
        // Predicated region
        $region21: #{tpu_custom_call.1} parent=11 // pred_check
          %p410 = pneg %p133
        $region22: #{tpu_custom_call.1} parent=11 // pred_check_branch
          %412 = sbr.rel (%p410) target = $region24
        $region23: #{tpu_custom_call.1} parent=11 // pred_region
          %s414 = ssub.s32 128, 128
          %415 = vsyncadd [#allocation12], %s414
          %s417 = sshll.u32 [#allocation11], 4
          %s418 = int_to_ptr.vmem [resolvable:$true] %s417
          %420 = dma.hbm_to_vmem [thread:$0]  %s3, 128, %s418, [#allocation12]
        $region24: #{tpu_custom_call.1} parent=11 // pred_fallthru
          _
        // Predicated region
        $region25: #{tpu_custom_call.1} parent=11 // pred_check
          %p421 = pneg %p154
        $region26: #{tpu_custom_call.1} parent=11 // pred_check_branch
          %423 = sbr.rel (%p421) target = $region28
        $region27: #{tpu_custom_call.1} parent=11 // pred_region
          %s425 = ssub.s32 512, 512
          %426 = vsyncadd [#allocation12], %s425
          %s427 = sshll.u32 [#allocation13], 4
          %s428 = int_to_ptr.vmem [resolvable:$true] %s427
          %433 = dma.hbm_to_vmem [thread:$0]  %s4, 512, %s428, [#allocation12], 64, 64, 4
        $region28: #{tpu_custom_call.1} parent=11 // pred_fallthru
          _
        // Predicated region
        $region29: #{tpu_custom_call.1} parent=11 // pred_check
          %p434 = pneg %p175
        $region30: #{tpu_custom_call.1} parent=11 // pred_check_branch
          %436 = sbr.rel (%p434) target = $region32
        $region31: #{tpu_custom_call.1} parent=11 // pred_region
          %s438 = ssub.s32 1024, 1024
          %439 = vsyncadd [#allocation15], %s438
          %s440 = sshll.u32 [#allocation14], 4
          %s441 = int_to_ptr.vmem [resolvable:$true] %s440
          %446 = dma.hbm_to_vmem [thread:$0]  %s5, 1024, %s441, [#allocation15], 64, 64, 4
        $region32: #{tpu_custom_call.1} parent=11 // pred_fallthru
          _
        // Predicated region
        $region33: #{tpu_custom_call.1} parent=11 // pred_check
          %p447 = pneg %p196
        $region34: #{tpu_custom_call.1} parent=11 // pred_check_branch
          %449 = sbr.rel (%p447) target = $region36
        $region35: #{tpu_custom_call.1} parent=11 // pred_region
          %s451 = ssub.s32 1024, 1024
          %452 = vsyncadd [#allocation15], %s451
          %s453 = sshll.u32 [#allocation16], 4
          %s454 = int_to_ptr.vmem [resolvable:$true] %s453
          %459 = dma.hbm_to_vmem [thread:$0]  %s6, 1024, %s454, [#allocation15], 64, 64, 4
        $region36: #{tpu_custom_call.1} parent=11 // pred_fallthru
          _
        // Predicated region
        $region37: #{tpu_custom_call.1} parent=11 // pred_check
          %p460 = pneg %p217
        $region38: #{tpu_custom_call.1} parent=11 // pred_check_branch
          %462 = sbr.rel (%p460) target = $region40
        $region39: #{tpu_custom_call.1} parent=11 // pred_region
          _
        $region40: #{tpu_custom_call.1} parent=11 // pred_fallthru
          _
        // Predicated region
        $region41: #{tpu_custom_call.1} parent=11 // pred_check
          %p463 = pneg %p238
        $region42: #{tpu_custom_call.1} parent=11 // pred_check_branch
          %465 = sbr.rel (%p463) target = $region44
        $region43: #{tpu_custom_call.1} parent=11 // pred_region
          %s467 = ssub.s32 3072, 3072
          %468 = vsyncadd [#allocation18], %s467
          %s469 = sshll.u32 [#allocation17], 4
          %s470 = int_to_ptr.vmem [resolvable:$true] %s469
          %475 = dma.hbm_to_vmem [thread:$0]  %s8, 3072, %s470, [#allocation18], 192, 192, 12
        $region44: #{tpu_custom_call.1} parent=11 // pred_fallthru
          _
        // Predicated region
        $region45: #{tpu_custom_call.1} parent=11 // pred_check
          %p476 = pneg %p259
        $region46: #{tpu_custom_call.1} parent=11 // pred_check_branch
          %478 = sbr.rel (%p476) target = $region48
        $region47: #{tpu_custom_call.1} parent=11 // pred_region
          %s480 = ssub.s32 3072, 3072
          %481 = vsyncadd [#allocation18], %s480
          %s482 = sshll.u32 [#allocation19], 4
          %s483 = int_to_ptr.vmem [resolvable:$true] %s482
          %488 = dma.hbm_to_vmem [thread:$0]  %s9, 3072, %s483, [#allocation18], 192, 192, 12
        $region48: #{tpu_custom_call.1} parent=11 // pred_fallthru
          _
        // Predicated region
        $region49: #{tpu_custom_call.1} parent=11 // pred_check
          %p489 = pneg %p280
        $region50: #{tpu_custom_call.1} parent=11 // pred_check_branch
          %491 = sbr.rel (%p489) target = $region52
        $region51: #{tpu_custom_call.1} parent=11 // pred_region
          _
        $region52: #{tpu_custom_call.1} parent=11 // pred_fallthru
          _
        // Predicated region
        $region53: #{tpu_custom_call.1} parent=11 // pred_check
          %p492 = pneg %p301
        $region54: #{tpu_custom_call.1} parent=11 // pred_check_branch
          %494 = sbr.rel (%p492) target = $region56
        $region55: #{tpu_custom_call.1} parent=11 // pred_region
          _
        $region56: #{tpu_custom_call.1} parent=11 // pred_fallthru
          _
        // Predicated region
        $region57: #{tpu_custom_call.1} parent=11 // pred_check
          %p495 = pneg %p322
        $region58: #{tpu_custom_call.1} parent=11 // pred_check_branch
          %497 = sbr.rel (%p495) target = $region60
        $region59: #{tpu_custom_call.1} parent=11 // pred_region
          _
        $region60: #{tpu_custom_call.1} parent=11 // pred_fallthru
          _
        // Predicated region
        $region61: #{tpu_custom_call.1} parent=11 // pred_check
          %p498 = pneg %p343
        $region62: #{tpu_custom_call.1} parent=11 // pred_check_branch
          %500 = sbr.rel (%p498) target = $region64
        $region63: #{tpu_custom_call.1} parent=11 // pred_region
          _
        $region64: #{tpu_custom_call.1} parent=11 // pred_fallthru
          _
      $region12: #{tpu_custom_call.1} parent=5 // pred_fallthru
        _
      %p501 = scmp.lt.s32.totalorder %s32, 12
      // Predicated region
      $region65: #{tpu_custom_call.1} parent=5 // pred_check
        %p502 = pneg %p501
      $region66: #{tpu_custom_call.1} parent=5 // pred_check_branch
        %504 = sbr.rel (%p502) target = $region68
      $region67: #{tpu_custom_call.1} parent=5 // pred_region
        // Predicated region
        $region69: #{tpu_custom_call.1} parent=67 // pred_check
          %p505 = pneg %p64
        $region70: #{tpu_custom_call.1} parent=67 // pred_check_branch
          %507 = sbr.rel (%p505) target = $region72
        $region71: #{tpu_custom_call.1} parent=67 // pred_region
          %s508 = sand.u32 %s54, 1
          %s509 = scalar_lea.sflag [#allocation6], %s508
          %s510 = sand.u32 %s54, 1
          %s511 = smul.addr %s510, 8
          %s512 = scalar_lea.vmem [#allocation5], %s511
          %s514 = ssub.s32 128, 128
          %515 = vsyncadd %s509, %s514
          %s516 = smul.addr %s39, 128
          %s517 = scalar_lea.hbm %s0, %s516
          %s519 = sshll.u32 %s512, 4
          %s520 = int_to_ptr.vmem [resolvable:$true] %s519
          %522 = dma.hbm_to_vmem [thread:$0]  %s517, 128, %s520, %s509
        $region72: #{tpu_custom_call.1} parent=67 // pred_fallthru
          _
      $region68: #{tpu_custom_call.1} parent=5 // pred_fallthru
        _
      %p523 = scmp.le.s32.totalorder 1, %s32
      %p524 = scmp.lt.s32.totalorder %s32, 13
      %p525 = pnand %p523, %p524
      %p526 = pneg %p525
      // Predicated region
      $region73: #{tpu_custom_call.1} parent=5 // pred_check
        _
      $region74: #{tpu_custom_call.1} parent=5 // pred_check_branch
        %528 = sbr.rel (%p525) target = $region76
      $region75: #{tpu_custom_call.1} parent=5 // pred_region
        %s529 = ssub.s32 %s32, 1
        %s530 = sand.u32 %s57, 1
        %s531 = scalar_lea.sflag [#allocation6], %s530
        %s532 = sand.u32 %s57, 1
        %s533 = smul.addr %s532, 8
        %s534 = scalar_lea.vmem [#allocation5], %s533
        // Predicated region
        $region77: #{tpu_custom_call.1} parent=75 // pred_check
          %p535 = pneg %p70
        $region78: #{tpu_custom_call.1} parent=75 // pred_check_branch
          %537 = sbr.rel (%p535) target = $region80
        $region79: #{tpu_custom_call.1} parent=75 // pred_region
          %538 = dma.done %s531, 128
        $region80: #{tpu_custom_call.1} parent=75 // pred_fallthru
          _
        // Predicated region
        $region81: #{tpu_custom_call.1} parent=75 // pred_check
          %p539 = pneg %p91
        $region82: #{tpu_custom_call.1} parent=75 // pred_check_branch
          %541 = sbr.rel (%p539) target = $region84
        $region83: #{tpu_custom_call.1} parent=75 // pred_region
          %542 = dma.done [#allocation9], 128
        $region84: #{tpu_custom_call.1} parent=75 // pred_fallthru
          _
        // Predicated region
        $region85: #{tpu_custom_call.1} parent=75 // pred_check
          %p543 = pneg %p112
        $region86: #{tpu_custom_call.1} parent=75 // pred_check_branch
          %545 = sbr.rel (%p543) target = $region88
        $region87: #{tpu_custom_call.1} parent=75 // pred_region
          %546 = dma.done [#allocation9], 512
        $region88: #{tpu_custom_call.1} parent=75 // pred_fallthru
          _
        // Predicated region
        $region89: #{tpu_custom_call.1} parent=75 // pred_check
          %p547 = pneg %p133
        $region90: #{tpu_custom_call.1} parent=75 // pred_check_branch
          %549 = sbr.rel (%p547) target = $region92
        $region91: #{tpu_custom_call.1} parent=75 // pred_region
          %550 = dma.done [#allocation12], 128
        $region92: #{tpu_custom_call.1} parent=75 // pred_fallthru
          _
        // Predicated region
        $region93: #{tpu_custom_call.1} parent=75 // pred_check
          %p551 = pneg %p154
        $region94: #{tpu_custom_call.1} parent=75 // pred_check_branch
          %553 = sbr.rel (%p551) target = $region96
        $region95: #{tpu_custom_call.1} parent=75 // pred_region
          %554 = dma.done [#allocation12], 512
        $region96: #{tpu_custom_call.1} parent=75 // pred_fallthru
          _
        // Predicated region
        $region97: #{tpu_custom_call.1} parent=75 // pred_check
          %p555 = pneg %p175
        $region98: #{tpu_custom_call.1} parent=75 // pred_check_branch
          %557 = sbr.rel (%p555) target = $region100
        $region99: #{tpu_custom_call.1} parent=75 // pred_region
          %558 = dma.done [#allocation15], 1024
        $region100: #{tpu_custom_call.1} parent=75 // pred_fallthru
          _
        // Predicated region
        $region101: #{tpu_custom_call.1} parent=75 // pred_check
          %p559 = pneg %p196
        $region102: #{tpu_custom_call.1} parent=75 // pred_check_branch
          %561 = sbr.rel (%p559) target = $region104
        $region103: #{tpu_custom_call.1} parent=75 // pred_region
          %562 = dma.done [#allocation15], 1024
        $region104: #{tpu_custom_call.1} parent=75 // pred_fallthru
          _
        // Predicated region
        $region105: #{tpu_custom_call.1} parent=75 // pred_check
          %p563 = pneg %p238
        $region106: #{tpu_custom_call.1} parent=75 // pred_check_branch
          %565 = sbr.rel (%p563) target = $region108
        $region107: #{tpu_custom_call.1} parent=75 // pred_region
          %566 = dma.done [#allocation18], 3072
        $region108: #{tpu_custom_call.1} parent=75 // pred_fallthru
          _
        // Predicated region
        $region109: #{tpu_custom_call.1} parent=75 // pred_check
          %p567 = pneg %p259
        $region110: #{tpu_custom_call.1} parent=75 // pred_check_branch
          %569 = sbr.rel (%p567) target = $region112
        $region111: #{tpu_custom_call.1} parent=75 // pred_region
          %570 = dma.done [#allocation18], 3072
        $region112: #{tpu_custom_call.1} parent=75 // pred_fallthru
          _
        %s571 = sand.u32 %s57, 1
        %s572 = scalar_lea.sflag [#allocation6], %s571
        %s573 = sand.u32 %s57, 1
        %s574 = smul.addr %s573, 8
        %s575 = scalar_lea.vmem [#allocation5], %s574
        %p576 = pneg %p70
        %p577 = pneg %p67
        %p578 = pneg %p91
        %p579 = pneg %p88
        %p580 = pneg %p112
        %p581 = pneg %p109
        %p582 = pneg %p133
        %p583 = pneg %p130
        %p584 = pneg %p154
        %p585 = pneg %p151
        %p586 = pneg %p175
        %p587 = pneg %p172
        %p588 = pneg %p196
        %p589 = pneg %p193
        %p590 = pneg %p217
        %p591 = pneg %p214
        %p592 = pneg %p238
        %p593 = pneg %p235
        %p594 = pneg %p259
        %p595 = pneg %p256
        %p596 = pneg %p280
        %p597 = pneg %p277
        %p598 = pneg %p301
        %p599 = pneg %p298
        %p600 = pneg %p322
        %p601 = pneg %p319
        %p602 = pneg %p343
        %p603 = pneg %p340
        %p604 = pneg %p371
        %p605 = pneg %p368
        %s606 = sand.u32 %s358, 1
        %s607 = scalar_lea.sflag [#allocation7], %s606
        %s608 = sand.u32 %s358, 1
        %s609 = smul.addr %s608, 8
        %s610 = scalar_lea.vmem [#allocation20], %s609
        %p612 = scmp.eq.s32.totalorder %s41, 0
        %p613 = scmp.eq.s32.totalorder %s42, 0
        %p614 = pnand %p612, %p613
        %p615 = pneg %p614
        // Predicated region
        $region113: #{tpu_custom_call.1} parent=75 // pred_check
          _
        $region114: #{tpu_custom_call.1} parent=75 // pred_check_branch
          %617 = sbr.rel (%p614) target = $region116
        $region115: #{tpu_custom_call.1} parent=75 // pred_region
          %v618 = vld [vmem:[#allocation8] sm:$0xff]
          %619 = vst [vmem:[#allocation2] sm:$0xff] %v618
        $region116: #{tpu_custom_call.1} parent=75 // pred_fallthru
          _
        // Predicated region
        $region117: #{tpu_custom_call.1} parent=75 // pred_check
          %p620 = pneg %p613
        $region118: #{tpu_custom_call.1} parent=75 // pred_check_branch
          %622 = sbr.rel (%p620) target = $region120
        $region119: #{tpu_custom_call.1} parent=75 // pred_region
          %v623 = vld [vmem:[%s534] sm:$0xff]
          %624 = vst [vmem:[#allocation3] sm:$0xff] %v623
        $region120: #{tpu_custom_call.1} parent=75 // pred_fallthru
          _
        %v625 = vld [vmem:[#allocation3] sm:$0xff]
        %v626 = vld [vmem:[#allocation2] sm:$0xff]
        %v627 = vpack.c.bf16 %v625, %v625
        %v628 = vpack.c.bf16 %v626, %v626
        %v629 = vld [vmem:[#allocation17] sm:$0xff]
        %v630 = vld [vmem:[#allocation17 + $0x8] sm:$0xf]
        %v631 = vld [vmem:[#allocation17 + $0xc] sm:$0xff]
        %v632 = vld [vmem:[#allocation17 + $0x14] sm:$0xf]
        %v633 = vld [vmem:[#allocation17 + $0x18] sm:$0xff]
        %v634 = vld [vmem:[#allocation17 + $0x20] sm:$0xf]
        %v635 = vld [vmem:[#allocation17 + $0x24] sm:$0xff]
        %v636 = vld [vmem:[#allocation17 + $0x2c] sm:$0xf]
        %v637 = vld [vmem:[#allocation17 + $0x30] sm:$0xff]
        %v638 = vld [vmem:[#allocation17 + $0x38] sm:$0xf]
        %v639 = vld [vmem:[#allocation17 + $0x3c] sm:$0xff]
        %v640 = vld [vmem:[#allocation17 + $0x44] sm:$0xf]
        %v641 = vld [vmem:[#allocation17 + $0x48] sm:$0xff]
        %v642 = vld [vmem:[#allocation17 + $0x50] sm:$0xf]
        %v643 = vld [vmem:[#allocation17 + $0x54] sm:$0xff]
        %v644 = vld [vmem:[#allocation17 + $0x5c] sm:$0xf]
        %v645 = vld [vmem:[#allocation17 + $0x60] sm:$0xff]
        %v646 = vld [vmem:[#allocation17 + $0x68] sm:$0xf]
        %v647 = vld [vmem:[#allocation17 + $0x6c] sm:$0xff]
        %v648 = vld [vmem:[#allocation17 + $0x74] sm:$0xf]
        %v649 = vld [vmem:[#allocation17 + $0x78] sm:$0xff]
        %v650 = vld [vmem:[#allocation17 + $0x80] sm:$0xf]
        %v651 = vld [vmem:[#allocation17 + $0x84] sm:$0xff]
        %v652 = vld [vmem:[#allocation17 + $0x8c] sm:$0xf]
        %v653 = vld [vmem:[#allocation17 + $0x90] sm:$0xff]
        %v654 = vld [vmem:[#allocation17 + $0x98] sm:$0xf]
        %v655 = vld [vmem:[#allocation17 + $0x9c] sm:$0xff]
        %v656 = vld [vmem:[#allocation17 + $0xa4] sm:$0xf]
        %v657 = vld [vmem:[#allocation17 + $0xa8] sm:$0xff]
        %v658 = vld [vmem:[#allocation17 + $0xb0] sm:$0xf]
        %v659 = vld [vmem:[#allocation17 + $0xb4] sm:$0xff]
        %v660 = vld [vmem:[#allocation17 + $0xbc] sm:$0xf]
        %v661 = vld [vmem:[%s10] sm:$0x7]
        %v663 = vlaneseq
        %v664 = vshrl.u32 %v663, 7
        %v665 = vsub.s32 0, %v664
        %v666 = vrot.slane %v661, %v665
        %v667 = vlaneseq
        %v668 = vshrl.u32 %v667, 7
        %v669 = vsub.s32 1, %v668
        %v670 = vrot.slane %v661, %v669
        %v671 = vlaneseq
        %v672 = vshrl.u32 %v671, 7
        %v673 = vsub.s32 2, %v672
        %v674 = vrot.slane %v661, %v673
        %v710 = vunpack.c.l.b16 %v629
        %v711 = vunpack.c.h.b16 %v629
        %v712 = vunpack.c.l.b16 %v630
        %v713 = vunpack.c.l.b16 %v631
        %v714 = vunpack.c.h.b16 %v631
        %v715 = vunpack.c.l.b16 %v632
        %v716 = vunpack.c.l.b16 %v633
        %v717 = vunpack.c.h.b16 %v633
        %v718 = vunpack.c.l.b16 %v634
        %v719 = vunpack.c.l.b16 %v635
        %v720 = vunpack.c.h.b16 %v635
        %v721 = vunpack.c.l.b16 %v636
        %v722 = vunpack.c.l.b16 %v637
        %v723 = vunpack.c.h.b16 %v637
        %v724 = vunpack.c.l.b16 %v638
        %v725 = vunpack.c.l.b16 %v639
        %v726 = vunpack.c.h.b16 %v639
        %v727 = vunpack.c.l.b16 %v640
        %v728 = vunpack.c.l.b16 %v641
        %v729 = vunpack.c.h.b16 %v641
        %v730 = vunpack.c.l.b16 %v642
        %v731 = vunpack.c.l.b16 %v643
        %v732 = vunpack.c.h.b16 %v643
        %v733 = vunpack.c.l.b16 %v644
        %v734 = vunpack.c.l.b16 %v645
        %v735 = vunpack.c.h.b16 %v645
        %v736 = vunpack.c.l.b16 %v646
        %v737 = vunpack.c.l.b16 %v647
        %v738 = vunpack.c.h.b16 %v647
        %v739 = vunpack.c.l.b16 %v648
        %v740 = vunpack.c.l.b16 %v649
        %v741 = vunpack.c.h.b16 %v649
        %v742 = vunpack.c.l.b16 %v650
        %v743 = vunpack.c.l.b16 %v651
        %v744 = vunpack.c.h.b16 %v651
        %v745 = vunpack.c.l.b16 %v652
        %v746 = vunpack.c.l.b16 %v653
        %v747 = vunpack.c.h.b16 %v653
        %v748 = vunpack.c.l.b16 %v654
        %v749 = vunpack.c.l.b16 %v655
        %v750 = vunpack.c.h.b16 %v655
        %v751 = vunpack.c.l.b16 %v656
        %v752 = vunpack.c.l.b16 %v657
        %v753 = vunpack.c.h.b16 %v657
        %v754 = vunpack.c.l.b16 %v658
        %v755 = vunpack.c.l.b16 %v659
        %v756 = vunpack.c.h.b16 %v659
        %v757 = vunpack.c.l.b16 %v660
        %v758 = vpack.c.b16 %v713, %v710
        %v759 = vpack.c.b16 %v714, %v711
        %v760 = vpack.c.b16 %v715, %v712
        %v761 = vpack.c.b16 %v719, %v716
        %v762 = vpack.c.b16 %v720, %v717
        %v763 = vpack.c.b16 %v721, %v718
        %v764 = vpack.c.b16 %v725, %v722
        %v765 = vpack.c.b16 %v726, %v723
        %v766 = vpack.c.b16 %v727, %v724
        %v767 = vpack.c.b16 %v731, %v728
        %v768 = vpack.c.b16 %v732, %v729
        %v769 = vpack.c.b16 %v733, %v730
        %v770 = vpack.c.b16 %v737, %v734
        %v771 = vpack.c.b16 %v738, %v735
        %v772 = vpack.c.b16 %v739, %v736
        %v773 = vpack.c.b16 %v743, %v740
        %v774 = vpack.c.b16 %v744, %v741
        %v775 = vpack.c.b16 %v745, %v742
        %v776 = vpack.c.b16 %v749, %v746
        %v777 = vpack.c.b16 %v750, %v747
        %v778 = vpack.c.b16 %v751, %v748
        %v779 = vpack.c.b16 %v755, %v752
        %v780 = vpack.c.b16 %v756, %v753
        %v781 = vpack.c.b16 %v757, %v754
        %806 = vmatprep.subr.bf16.mxu0 %v780
        %807 = vmatpush1.bf16.msra.mxu0 %v779
        %808 = vmatprep.subr.bf16.mxu0 %v777
        %809 = vmatpush1.bf16.msra.mxu0 %v776
        %810 = vmatprep.subr.bf16.mxu0 %v774
        %811 = vmatpush1.bf16.msra.mxu0 %v773
        %812 = vmatprep.subr.bf16.mxu0 %v771
        %813 = vmatpush1.bf16.msra.mxu0 %v770
        %814 = vmatprep.subr.bf16.mxu0 %v768
        %815 = vmatpush1.bf16.msra.mxu0 %v767
        %816 = vmatprep.subr.bf16.mxu0 %v765
        %817 = vmatpush1.bf16.msra.mxu0 %v764
        %818 = vmatprep.subr.bf16.mxu0 %v762
        %819 = vmatpush1.bf16.msra.mxu0 %v761
        %820 = vmatprep.subr.bf16.mxu0 %v759
        %821 = vmatpush1.bf16.msra.mxu0 %v758
        %822 = vmatprep.subr.bf16.mxu0 0
        %823 = vmatpush2.bf16.msra.mxu0 0
        %824 = vmatprep.subr.bf16.mxu0 0
        %825 = vmatpush2.bf16.msra.mxu0 0
        %826 = vmatprep.subr.bf16.mxu0 0
        %827 = vmatpush2.bf16.msra.mxu0 0
        %828 = vmatprep.subr.bf16.mxu0 0
        %829 = vmatpush2.bf16.msra.mxu0 0
        %830 = vmatprep.subr.bf16.mxu0 0
        %831 = vmatpush2.bf16.msra.mxu0 0
        %832 = vmatprep.subr.bf16.mxu0 0
        %833 = vmatpush2.bf16.msra.mxu0 0
        %834 = vmatprep.subr.bf16.mxu0 0
        %835 = vmatpush2.bf16.msra.mxu0 0
        %836 = vmatprep.subr.bf16.mxu0 0
        %837 = vmatpush2.bf16.msra.mxu0 0
        %838 = vmatprep.mubr.bf16.mxu0 0
        %839 = vmatmul.mubr.bf16.gmra.mxu0 %v627
        %v840 = vpop.f32.mrf.mxu0
        %v841 = vadd.f32 %v666, %v840
        %v842 = vpop.f32.mrf.mxu0
        %v843 = vadd.f32 %v670, %v842
        %v844 = vpop.f32.mrf.mxu0
        %v845 = vpop.f32.mrf.mxu0
        %846 = vdwg.mxu0
        %847 = vmatprep.subr.bf16.mxu0 0
        %848 = vmatpush1.bf16.msra.mxu0 %v781
        %849 = vmatprep.subr.bf16.mxu0 0
        %850 = vmatpush1.bf16.msra.mxu0 %v778
        %851 = vmatprep.subr.bf16.mxu0 0
        %852 = vmatpush1.bf16.msra.mxu0 %v775
        %853 = vmatprep.subr.bf16.mxu0 0
        %854 = vmatpush1.bf16.msra.mxu0 %v772
        %855 = vmatprep.subr.bf16.mxu0 0
        %856 = vmatpush1.bf16.msra.mxu0 %v769
        %857 = vmatprep.subr.bf16.mxu0 0
        %858 = vmatpush1.bf16.msra.mxu0 %v766
        %859 = vmatprep.subr.bf16.mxu0 0
        %860 = vmatpush1.bf16.msra.mxu0 %v763
        %861 = vmatprep.subr.bf16.mxu0 0
        %862 = vmatpush1.bf16.msra.mxu0 %v760
        %863 = vmatprep.subr.bf16.mxu0 0
        %864 = vmatpush2.bf16.msra.mxu0 0
        %865 = vmatprep.subr.bf16.mxu0 0
        %866 = vmatpush2.bf16.msra.mxu0 0
        %867 = vmatprep.subr.bf16.mxu0 0
        %868 = vmatpush2.bf16.msra.mxu0 0
        %869 = vmatprep.subr.bf16.mxu0 0
        %870 = vmatpush2.bf16.msra.mxu0 0
        %871 = vmatprep.subr.bf16.mxu0 0
        %872 = vmatpush2.bf16.msra.mxu0 0
        %873 = vmatprep.subr.bf16.mxu0 0
        %874 = vmatpush2.bf16.msra.mxu0 0
        %875 = vmatprep.subr.bf16.mxu0 0
        %876 = vmatpush2.bf16.msra.mxu0 0
        %877 = vmatprep.subr.bf16.mxu0 0
        %878 = vmatpush2.bf16.msra.mxu0 0
        %879 = vmatprep.mubr.bf16.mxu0 0
        %880 = vmatmul.mubr.bf16.gmra.mxu0 %v627
        %v881 = vpop.f32.mrf.mxu0
        %v882 = vadd.f32 %v674, %v881
        %v883 = vpop.f32.mrf.mxu0
        %v884 = vpop.f32.mrf.mxu0
        %v885 = vpop.f32.mrf.mxu0
        %886 = vdwg.mxu0
        %v887 = vld [vmem:[#allocation19] sm:$0xff]
        %v888 = vld [vmem:[#allocation19 + $0x8] sm:$0xf]
        %v889 = vld [vmem:[#allocation19 + $0xc] sm:$0xff]
        %v890 = vld [vmem:[#allocation19 + $0x14] sm:$0xf]
        %v891 = vld [vmem:[#allocation19 + $0x18] sm:$0xff]
        %v892 = vld [vmem:[#allocation19 + $0x20] sm:$0xf]
        %v893 = vld [vmem:[#allocation19 + $0x24] sm:$0xff]
        %v894 = vld [vmem:[#allocation19 + $0x2c] sm:$0xf]
        %v895 = vld [vmem:[#allocation19 + $0x30] sm:$0xff]
        %v896 = vld [vmem:[#allocation19 + $0x38] sm:$0xf]
        %v897 = vld [vmem:[#allocation19 + $0x3c] sm:$0xff]
        %v898 = vld [vmem:[#allocation19 + $0x44] sm:$0xf]
        %v899 = vld [vmem:[#allocation19 + $0x48] sm:$0xff]
        %v900 = vld [vmem:[#allocation19 + $0x50] sm:$0xf]
        %v901 = vld [vmem:[#allocation19 + $0x54] sm:$0xff]
        %v902 = vld [vmem:[#allocation19 + $0x5c] sm:$0xf]
        %v903 = vld [vmem:[#allocation19 + $0x60] sm:$0xff]
        %v904 = vld [vmem:[#allocation19 + $0x68] sm:$0xf]
        %v905 = vld [vmem:[#allocation19 + $0x6c] sm:$0xff]
        %v906 = vld [vmem:[#allocation19 + $0x74] sm:$0xf]
        %v907 = vld [vmem:[#allocation19 + $0x78] sm:$0xff]
        %v908 = vld [vmem:[#allocation19 + $0x80] sm:$0xf]
        %v909 = vld [vmem:[#allocation19 + $0x84] sm:$0xff]
        %v910 = vld [vmem:[#allocation19 + $0x8c] sm:$0xf]
        %v911 = vld [vmem:[#allocation19 + $0x90] sm:$0xff]
        %v912 = vld [vmem:[#allocation19 + $0x98] sm:$0xf]
        %v913 = vld [vmem:[#allocation19 + $0x9c] sm:$0xff]
        %v914 = vld [vmem:[#allocation19 + $0xa4] sm:$0xf]
        %v915 = vld [vmem:[#allocation19 + $0xa8] sm:$0xff]
        %v916 = vld [vmem:[#allocation19 + $0xb0] sm:$0xf]
        %v917 = vld [vmem:[#allocation19 + $0xb4] sm:$0xff]
        %v918 = vld [vmem:[#allocation19 + $0xbc] sm:$0xf]
        %v919 = vld [vmem:[%s11] sm:$0x7]
        %v921 = vlaneseq
        %v922 = vshrl.u32 %v921, 7
        %v923 = vsub.s32 0, %v922
        %v924 = vrot.slane %v919, %v923
        %v925 = vlaneseq
        %v926 = vshrl.u32 %v925, 7
        %v927 = vsub.s32 1, %v926
        %v928 = vrot.slane %v919, %v927
        %v929 = vlaneseq
        %v930 = vshrl.u32 %v929, 7
        %v931 = vsub.s32 2, %v930
        %v932 = vrot.slane %v919, %v931
        %v968 = vunpack.c.l.b16 %v887
        %v969 = vunpack.c.h.b16 %v887
        %v970 = vunpack.c.l.b16 %v888
        %v971 = vunpack.c.l.b16 %v889
        %v972 = vunpack.c.h.b16 %v889
        %v973 = vunpack.c.l.b16 %v890
        %v974 = vunpack.c.l.b16 %v891
        %v975 = vunpack.c.h.b16 %v891
        %v976 = vunpack.c.l.b16 %v892
        %v977 = vunpack.c.l.b16 %v893
        %v978 = vunpack.c.h.b16 %v893
        %v979 = vunpack.c.l.b16 %v894
        %v980 = vunpack.c.l.b16 %v895
        %v981 = vunpack.c.h.b16 %v895
        %v982 = vunpack.c.l.b16 %v896
        %v983 = vunpack.c.l.b16 %v897
        %v984 = vunpack.c.h.b16 %v897
        %v985 = vunpack.c.l.b16 %v898
        %v986 = vunpack.c.l.b16 %v899
        %v987 = vunpack.c.h.b16 %v899
        %v988 = vunpack.c.l.b16 %v900
        %v989 = vunpack.c.l.b16 %v901
        %v990 = vunpack.c.h.b16 %v901
        %v991 = vunpack.c.l.b16 %v902
        %v992 = vunpack.c.l.b16 %v903
        %v993 = vunpack.c.h.b16 %v903
        %v994 = vunpack.c.l.b16 %v904
        %v995 = vunpack.c.l.b16 %v905
        %v996 = vunpack.c.h.b16 %v905
        %v997 = vunpack.c.l.b16 %v906
        %v998 = vunpack.c.l.b16 %v907
        %v999 = vunpack.c.h.b16 %v907
        %v1000 = vunpack.c.l.b16 %v908
        %v1001 = vunpack.c.l.b16 %v909
        %v1002 = vunpack.c.h.b16 %v909
        %v1003 = vunpack.c.l.b16 %v910
        %v1004 = vunpack.c.l.b16 %v911
        %v1005 = vunpack.c.h.b16 %v911
        %v1006 = vunpack.c.l.b16 %v912
        %v1007 = vunpack.c.l.b16 %v913
        %v1008 = vunpack.c.h.b16 %v913
        %v1009 = vunpack.c.l.b16 %v914
        %v1010 = vunpack.c.l.b16 %v915
        %v1011 = vunpack.c.h.b16 %v915
        %v1012 = vunpack.c.l.b16 %v916
        %v1013 = vunpack.c.l.b16 %v917
        %v1014 = vunpack.c.h.b16 %v917
        %v1015 = vunpack.c.l.b16 %v918
        %v1016 = vpack.c.b16 %v971, %v968
        %v1017 = vpack.c.b16 %v972, %v969
        %v1018 = vpack.c.b16 %v973, %v970
        %v1019 = vpack.c.b16 %v977, %v974
        %v1020 = vpack.c.b16 %v978, %v975
        %v1021 = vpack.c.b16 %v979, %v976
        %v1022 = vpack.c.b16 %v983, %v980
        %v1023 = vpack.c.b16 %v984, %v981
        %v1024 = vpack.c.b16 %v985, %v982
        %v1025 = vpack.c.b16 %v989, %v986
        %v1026 = vpack.c.b16 %v990, %v987
        %v1027 = vpack.c.b16 %v991, %v988
        %v1028 = vpack.c.b16 %v995, %v992
        %v1029 = vpack.c.b16 %v996, %v993
        %v1030 = vpack.c.b16 %v997, %v994
        %v1031 = vpack.c.b16 %v1001, %v998
        %v1032 = vpack.c.b16 %v1002, %v999
        %v1033 = vpack.c.b16 %v1003, %v1000
        %v1034 = vpack.c.b16 %v1007, %v1004
        %v1035 = vpack.c.b16 %v1008, %v1005
        %v1036 = vpack.c.b16 %v1009, %v1006
        %v1037 = vpack.c.b16 %v1013, %v1010
        %v1038 = vpack.c.b16 %v1014, %v1011
        %v1039 = vpack.c.b16 %v1015, %v1012
        %1064 = vmatprep.subr.bf16.mxu0 %v1038
        %1065 = vmatpush1.bf16.msra.mxu0 %v1037
        %1066 = vmatprep.subr.bf16.mxu0 %v1035
        %1067 = vmatpush1.bf16.msra.mxu0 %v1034
        %1068 = vmatprep.subr.bf16.mxu0 %v1032
        %1069 = vmatpush1.bf16.msra.mxu0 %v1031
        %1070 = vmatprep.subr.bf16.mxu0 %v1029
        %1071 = vmatpush1.bf16.msra.mxu0 %v1028
        %1072 = vmatprep.subr.bf16.mxu0 %v1026
        %1073 = vmatpush1.bf16.msra.mxu0 %v1025
        %1074 = vmatprep.subr.bf16.mxu0 %v1023
        %1075 = vmatpush1.bf16.msra.mxu0 %v1022
        %1076 = vmatprep.subr.bf16.mxu0 %v1020
        %1077 = vmatpush1.bf16.msra.mxu0 %v1019
        %1078 = vmatprep.subr.bf16.mxu0 %v1017
        %1079 = vmatpush1.bf16.msra.mxu0 %v1016
        %1080 = vmatprep.subr.bf16.mxu0 0
        %1081 = vmatpush2.bf16.msra.mxu0 0
        %1082 = vmatprep.subr.bf16.mxu0 0
        %1083 = vmatpush2.bf16.msra.mxu0 0
        %1084 = vmatprep.subr.bf16.mxu0 0
        %1085 = vmatpush2.bf16.msra.mxu0 0
        %1086 = vmatprep.subr.bf16.mxu0 0
        %1087 = vmatpush2.bf16.msra.mxu0 0
        %1088 = vmatprep.subr.bf16.mxu0 0
        %1089 = vmatpush2.bf16.msra.mxu0 0
        %1090 = vmatprep.subr.bf16.mxu0 0
        %1091 = vmatpush2.bf16.msra.mxu0 0
        %1092 = vmatprep.subr.bf16.mxu0 0
        %1093 = vmatpush2.bf16.msra.mxu0 0
        %1094 = vmatprep.subr.bf16.mxu0 0
        %1095 = vmatpush2.bf16.msra.mxu0 0
        %1096 = vmatprep.mubr.bf16.mxu0 0
        %1097 = vmatmul.mubr.bf16.gmra.mxu0 %v628
        %v1098 = vpop.f32.mrf.mxu0
        %v1099 = vadd.f32 %v924, %v1098
        %v1100 = vpop.f32.mrf.mxu0
        %v1101 = vadd.f32 %v928, %v1100
        %v1102 = vpop.f32.mrf.mxu0
        %v1103 = vpop.f32.mrf.mxu0
        %1104 = vdwg.mxu0
        %1105 = vmatprep.subr.bf16.mxu0 0
        %1106 = vmatpush1.bf16.msra.mxu0 %v1039
        %1107 = vmatprep.subr.bf16.mxu0 0
        %1108 = vmatpush1.bf16.msra.mxu0 %v1036
        %1109 = vmatprep.subr.bf16.mxu0 0
        %1110 = vmatpush1.bf16.msra.mxu0 %v1033
        %1111 = vmatprep.subr.bf16.mxu0 0
        %1112 = vmatpush1.bf16.msra.mxu0 %v1030
        %1113 = vmatprep.subr.bf16.mxu0 0
        %1114 = vmatpush1.bf16.msra.mxu0 %v1027
        %1115 = vmatprep.subr.bf16.mxu0 0
        %1116 = vmatpush1.bf16.msra.mxu0 %v1024
        %1117 = vmatprep.subr.bf16.mxu0 0
        %1118 = vmatpush1.bf16.msra.mxu0 %v1021
        %1119 = vmatprep.subr.bf16.mxu0 0
        %1120 = vmatpush1.bf16.msra.mxu0 %v1018
        %1121 = vmatprep.subr.bf16.mxu0 0
        %1122 = vmatpush2.bf16.msra.mxu0 0
        %1123 = vmatprep.subr.bf16.mxu0 0
        %1124 = vmatpush2.bf16.msra.mxu0 0
        %1125 = vmatprep.subr.bf16.mxu0 0
        %1126 = vmatpush2.bf16.msra.mxu0 0
        %1127 = vmatprep.subr.bf16.mxu0 0
        %1128 = vmatpush2.bf16.msra.mxu0 0
        %1129 = vmatprep.subr.bf16.mxu0 0
        %1130 = vmatpush2.bf16.msra.mxu0 0
        %1131 = vmatprep.subr.bf16.mxu0 0
        %1132 = vmatpush2.bf16.msra.mxu0 0
        %1133 = vmatprep.subr.bf16.mxu0 0
        %1134 = vmatpush2.bf16.msra.mxu0 0
        %1135 = vmatprep.subr.bf16.mxu0 0
        %1136 = vmatpush2.bf16.msra.mxu0 0
        %1137 = vmatprep.mubr.bf16.mxu0 0
        %1138 = vmatmul.mubr.bf16.gmra.mxu0 %v628
        %v1139 = vpop.f32.mrf.mxu0
        %v1140 = vadd.f32 %v932, %v1139
        %v1141 = vpop.f32.mrf.mxu0
        %v1142 = vpop.f32.mrf.mxu0
        %v1143 = vpop.f32.mrf.mxu0
        %1144 = vdwg.mxu0
        %v1145 = vadd.f32 %v841, %v1099
        %v1146 = vxor.u32 %v1145, 2147483648
        %v1147 = vmul.f32 %v1146, 1.442695
        %v1148 = vpow.pop %v1147
        %v1149 = vadd.f32 %v1148, 1.0
        %v1150 = vrcp.pop %v1149
        %v1151 = vmul.f32 1.0, %v1150
        %v1152 = vadd.f32 %v843, %v1101
        %v1153 = vxor.u32 %v1152, 2147483648
        %v1154 = vmul.f32 %v1153, 1.442695
        %v1155 = vpow.pop %v1154
        %v1156 = vadd.f32 %v1155, 1.0
        %v1157 = vrcp.pop %v1156
        %v1158 = vmul.f32 1.0, %v1157
        %v1159 = vmul.f32 %v1151, %v1140
        %v1160 = vadd.f32 %v882, %v1159
        %v1161 = vtanh.pop %v1160
        %v1162 = vsub.f32 1.0, %v1158
        %v1163 = vmul.f32 %v1162, %v1161
        %v1164 = vmul.f32 %v1158, %v626
        %v1165 = vadd.f32 %v1163, %v1164
        %v1166 = vpack.c.bf16 %v1165, %v1165
        %v1167 = vld [vmem:[#allocation10] sm:$0xf]
        %v1168 = vld [vmem:[#allocation10 + $0x4] sm:$0xf]
        %v1169 = vld [vmem:[#allocation10 + $0x8] sm:$0xf]
        %v1170 = vld [vmem:[#allocation10 + $0xc] sm:$0xf]
        %v1171 = vld [vmem:[#allocation10 + $0x10] sm:$0xf]
        %v1172 = vld [vmem:[#allocation10 + $0x14] sm:$0xf]
        %v1173 = vld [vmem:[#allocation10 + $0x18] sm:$0xf]
        %v1174 = vld [vmem:[#allocation10 + $0x1c] sm:$0xf]
        %v1177 = vunpack.c.l.s4 1966171168
        %v1178 = vunpack.c.0.s8 %v1177
        %v1179 = vlaneseq
        %v1180 = vshrl.u32 %v1179, 7
        %v1181 = vsub.s32 %v1178, %v1180
        %v1182 = vrot.slane %v1166, %v1181
        %v1183 = vcombine.high %v1182, %v1182
        %v1185 = vunpack.c.l.s4 1966171168
        %v1186 = vunpack.c.0.s8 %v1185
        %v1187 = vlaneseq
        %v1188 = vshrl.u32 %v1187, 7
        %v1189 = vsub.s32 %v1186, %v1188
        %v1190 = vrot.slane %v1182, %v1189
        %v1192 = vunpack.c.l.s4 1966171168
        %v1193 = vunpack.c.0.s8 %v1192
        %v1194 = vlaneseq
        %v1195 = vshrl.u32 %v1194, 7
        %v1196 = vsub.s32 %v1193, %v1195
        %v1197 = vrot.slane %v1183, %v1196
        %v1198 = vcombine.high %v1190, %v1190
        %v1199 = vcombine.high %v1197, %v1197
        %v1200 = vunpack.i.l.s16 %v1190
        %v1201 = vunpack.i.h.s16 %v1190
        %v1202 = vunpack.i.l.s16 %v1197
        %v1203 = vunpack.i.h.s16 %v1197
        %v1204 = vunpack.i.l.s16 %v1198
        %v1205 = vunpack.i.h.s16 %v1198
        %v1206 = vunpack.i.l.s16 %v1199
        %v1207 = vunpack.i.h.s16 %v1199
        %v1208 = vpack.i.b16 %v1200, %v1200
        %v1209 = vlaneseq
        %v1210 = vshrl.u32 %v1209, 7
        %v1211 = vsub.s32 0, %v1210
        %v1212 = vrot.slane %v1208, %v1211
        %1214 = vmatprep.subr.bf16.mxu0 0
        %1215 = vmatpush1.bf16.xpose.msra.mxu0 0
        %1216 = vmatprep.subr.bf16.mxu0 0
        %1217 = vmatpush1.bf16.xpose.msra.mxu0 0
        %1218 = vmatprep.subr.bf16.mxu0 0
        %1219 = vmatpush1.bf16.xpose.msra.mxu0 0
        %1220 = vmatprep.subr.bf16.mxu0 0
        %1221 = vmatpush1.bf16.xpose.msra.mxu0 0
        %1222 = vmatprep.subr.bf16.mxu0 0
        %1223 = vmatpush1.bf16.xpose.msra.mxu0 0
        %1224 = vmatprep.subr.bf16.mxu0 0
        %1225 = vmatpush1.bf16.xpose.msra.mxu0 0
        %1226 = vmatprep.subr.bf16.mxu0 0
        %1227 = vmatpush1.bf16.xpose.msra.mxu0 0
        %1228 = vmatprep.subr.bf16.mxu0 0
        %1229 = vmatpush1.bf16.xpose.msra.mxu0 %v1167
        %1230 = vmatprep.subr.bf16.mxu0 0
        %1231 = vmatpush2.bf16.xpose.msra.mxu0 0
        %1232 = vmatprep.subr.bf16.mxu0 0
        %1233 = vmatpush2.bf16.xpose.msra.mxu0 0
        %1234 = vmatprep.subr.bf16.mxu0 0
        %1235 = vmatpush2.bf16.xpose.msra.mxu0 0
        %1236 = vmatprep.subr.bf16.mxu0 0
        %1237 = vmatpush2.bf16.xpose.msra.mxu0 0
        %1238 = vmatprep.subr.bf16.mxu0 0
        %1239 = vmatpush2.bf16.xpose.msra.mxu0 0
        %1240 = vmatprep.subr.bf16.mxu0 0
        %1241 = vmatpush2.bf16.xpose.msra.mxu0 0
        %1242 = vmatprep.subr.bf16.mxu0 0
        %1243 = vmatpush2.bf16.xpose.msra.mxu0 0
        %1244 = vmatprep.subr.bf16.mxu0 0
        %1245 = vmatpush2.bf16.xpose.msra.mxu0 0
        %1246 = vmatprep.mubr.bf16.mxu0 0
        %1247 = vmatmul.mubr.bf16.gmra.mxu0 %v1212
        %v1248 = vpop.f32.mrf.mxu0
        %v1249 = vadd.f32 0.0, %v1248
        %v1250 = vpop.f32.mrf.mxu0
        %v1251 = vpop.f32.mrf.mxu0
        %v1252 = vpop.f32.mrf.mxu0
        %1253 = vdwg.mxu0
        %v1254 = vpack.i.b16 %v1201, %v1201
        %v1255 = vlaneseq
        %v1256 = vshrl.u32 %v1255, 7
        %v1257 = vsub.s32 0, %v1256
        %v1258 = vrot.slane %v1254, %v1257
        %1260 = vmatprep.subr.bf16.mxu0 0
        %1261 = vmatpush1.bf16.xpose.msra.mxu0 0
        %1262 = vmatprep.subr.bf16.mxu0 0
        %1263 = vmatpush1.bf16.xpose.msra.mxu0 0
        %1264 = vmatprep.subr.bf16.mxu0 0
        %1265 = vmatpush1.bf16.xpose.msra.mxu0 0
        %1266 = vmatprep.subr.bf16.mxu0 0
        %1267 = vmatpush1.bf16.xpose.msra.mxu0 0
        %1268 = vmatprep.subr.bf16.mxu0 0
        %1269 = vmatpush1.bf16.xpose.msra.mxu0 0
        %1270 = vmatprep.subr.bf16.mxu0 0
        %1271 = vmatpush1.bf16.xpose.msra.mxu0 0
        %1272 = vmatprep.subr.bf16.mxu0 0
        %1273 = vmatpush1.bf16.xpose.msra.mxu0 0
        %1274 = vmatprep.subr.bf16.mxu0 0
        %1275 = vmatpush1.bf16.xpose.msra.mxu0 %v1168
        %1276 = vmatprep.subr.bf16.mxu0 0
        %1277 = vmatpush2.bf16.xpose.msra.mxu0 0
        %1278 = vmatprep.subr.bf16.mxu0 0
        %1279 = vmatpush2.bf16.xpose.msra.mxu0 0
        %1280 = vmatprep.subr.bf16.mxu0 0
        %1281 = vmatpush2.bf16.xpose.msra.mxu0 0
        %1282 = vmatprep.subr.bf16.mxu0 0
        %1283 = vmatpush2.bf16.xpose.msra.mxu0 0
        %1284 = vmatprep.subr.bf16.mxu0 0
        %1285 = vmatpush2.bf16.xpose.msra.mxu0 0
        %1286 = vmatprep.subr.bf16.mxu0 0
        %1287 = vmatpush2.bf16.xpose.msra.mxu0 0
        %1288 = vmatprep.subr.bf16.mxu0 0
        %1289 = vmatpush2.bf16.xpose.msra.mxu0 0
        %1290 = vmatprep.subr.bf16.mxu0 0
        %1291 = vmatpush2.bf16.xpose.msra.mxu0 0
        %1292 = vmatprep.mubr.bf16.mxu0 0
        %1293 = vmatmul.mubr.bf16.gmra.mxu0 %v1258
        %v1294 = vpop.f32.mrf.mxu0
        %v1295 = vadd.f32 0.0, %v1294
        %v1296 = vpop.f32.mrf.mxu0
        %v1297 = vpop.f32.mrf.mxu0
        %v1298 = vpop.f32.mrf.mxu0
        %1299 = vdwg.mxu0
        %v1300 = vpack.i.b16 %v1202, %v1202
        %v1301 = vlaneseq
        %v1302 = vshrl.u32 %v1301, 7
        %v1303 = vsub.s32 0, %v1302
        %v1304 = vrot.slane %v1300, %v1303
        %1306 = vmatprep.subr.bf16.mxu0 0
        %1307 = vmatpush1.bf16.xpose.msra.mxu0 0
        %1308 = vmatprep.subr.bf16.mxu0 0
        %1309 = vmatpush1.bf16.xpose.msra.mxu0 0
        %1310 = vmatprep.subr.bf16.mxu0 0
        %1311 = vmatpush1.bf16.xpose.msra.mxu0 0
        %1312 = vmatprep.subr.bf16.mxu0 0
        %1313 = vmatpush1.bf16.xpose.msra.mxu0 0
        %1314 = vmatprep.subr.bf16.mxu0 0
        %1315 = vmatpush1.bf16.xpose.msra.mxu0 0
        %1316 = vmatprep.subr.bf16.mxu0 0
        %1317 = vmatpush1.bf16.xpose.msra.mxu0 0
        %1318 = vmatprep.subr.bf16.mxu0 0
        %1319 = vmatpush1.bf16.xpose.msra.mxu0 0
        %1320 = vmatprep.subr.bf16.mxu0 0
        %1321 = vmatpush1.bf16.xpose.msra.mxu0 %v1169
        %1322 = vmatprep.subr.bf16.mxu0 0
        %1323 = vmatpush2.bf16.xpose.msra.mxu0 0
        %1324 = vmatprep.subr.bf16.mxu0 0
        %1325 = vmatpush2.bf16.xpose.msra.mxu0 0
        %1326 = vmatprep.subr.bf16.mxu0 0
        %1327 = vmatpush2.bf16.xpose.msra.mxu0 0
        %1328 = vmatprep.subr.bf16.mxu0 0
        %1329 = vmatpush2.bf16.xpose.msra.mxu0 0
        %1330 = vmatprep.subr.bf16.mxu0 0
        %1331 = vmatpush2.bf16.xpose.msra.mxu0 0
        %1332 = vmatprep.subr.bf16.mxu0 0
        %1333 = vmatpush2.bf16.xpose.msra.mxu0 0
        %1334 = vmatprep.subr.bf16.mxu0 0
        %1335 = vmatpush2.bf16.xpose.msra.mxu0 0
        %1336 = vmatprep.subr.bf16.mxu0 0
        %1337 = vmatpush2.bf16.xpose.msra.mxu0 0
        %1338 = vmatprep.mubr.bf16.mxu0 0
        %1339 = vmatmul.mubr.bf16.gmra.mxu0 %v1304
        %v1340 = vpop.f32.mrf.mxu0
        %v1341 = vadd.f32 0.0, %v1340
        %v1342 = vpop.f32.mrf.mxu0
        %v1343 = vpop.f32.mrf.mxu0
        %v1344 = vpop.f32.mrf.mxu0
        %1345 = vdwg.mxu0
        %v1346 = vpack.i.b16 %v1203, %v1203
        %v1347 = vlaneseq
        %v1348 = vshrl.u32 %v1347, 7
        %v1349 = vsub.s32 0, %v1348
        %v1350 = vrot.slane %v1346, %v1349
        %1352 = vmatprep.subr.bf16.mxu0 0
        %1353 = vmatpush1.bf16.xpose.msra.mxu0 0
        %1354 = vmatprep.subr.bf16.mxu0 0
        %1355 = vmatpush1.bf16.xpose.msra.mxu0 0
        %1356 = vmatprep.subr.bf16.mxu0 0
        %1357 = vmatpush1.bf16.xpose.msra.mxu0 0
        %1358 = vmatprep.subr.bf16.mxu0 0
        %1359 = vmatpush1.bf16.xpose.msra.mxu0 0
        %1360 = vmatprep.subr.bf16.mxu0 0
        %1361 = vmatpush1.bf16.xpose.msra.mxu0 0
        %1362 = vmatprep.subr.bf16.mxu0 0
        %1363 = vmatpush1.bf16.xpose.msra.mxu0 0
        %1364 = vmatprep.subr.bf16.mxu0 0
        %1365 = vmatpush1.bf16.xpose.msra.mxu0 0
        %1366 = vmatprep.subr.bf16.mxu0 0
        %1367 = vmatpush1.bf16.xpose.msra.mxu0 %v1170
        %1368 = vmatprep.subr.bf16.mxu0 0
        %1369 = vmatpush2.bf16.xpose.msra.mxu0 0
        %1370 = vmatprep.subr.bf16.mxu0 0
        %1371 = vmatpush2.bf16.xpose.msra.mxu0 0
        %1372 = vmatprep.subr.bf16.mxu0 0
        %1373 = vmatpush2.bf16.xpose.msra.mxu0 0
        %1374 = vmatprep.subr.bf16.mxu0 0
        %1375 = vmatpush2.bf16.xpose.msra.mxu0 0
        %1376 = vmatprep.subr.bf16.mxu0 0
        %1377 = vmatpush2.bf16.xpose.msra.mxu0 0
        %1378 = vmatprep.subr.bf16.mxu0 0
        %1379 = vmatpush2.bf16.xpose.msra.mxu0 0
        %1380 = vmatprep.subr.bf16.mxu0 0
        %1381 = vmatpush2.bf16.xpose.msra.mxu0 0
        %1382 = vmatprep.subr.bf16.mxu0 0
        %1383 = vmatpush2.bf16.xpose.msra.mxu0 0
        %1384 = vmatprep.mubr.bf16.mxu0 0
        %1385 = vmatmul.mubr.bf16.gmra.mxu0 %v1350
        %v1386 = vpop.f32.mrf.mxu0
        %v1387 = vadd.f32 0.0, %v1386
        %v1388 = vpop.f32.mrf.mxu0
        %v1389 = vpop.f32.mrf.mxu0
        %v1390 = vpop.f32.mrf.mxu0
        %1391 = vdwg.mxu0
        %v1392 = vpack.i.b16 %v1204, %v1204
        %v1393 = vlaneseq
        %v1394 = vshrl.u32 %v1393, 7
        %v1395 = vsub.s32 0, %v1394
        %v1396 = vrot.slane %v1392, %v1395
        %1398 = vmatprep.subr.bf16.mxu0 0
        %1399 = vmatpush1.bf16.xpose.msra.mxu0 0
        %1400 = vmatprep.subr.bf16.mxu0 0
        %1401 = vmatpush1.bf16.xpose.msra.mxu0 0
        %1402 = vmatprep.subr.bf16.mxu0 0
        %1403 = vmatpush1.bf16.xpose.msra.mxu0 0
        %1404 = vmatprep.subr.bf16.mxu0 0
        %1405 = vmatpush1.bf16.xpose.msra.mxu0 0
        %1406 = vmatprep.subr.bf16.mxu0 0
        %1407 = vmatpush1.bf16.xpose.msra.mxu0 0
        %1408 = vmatprep.subr.bf16.mxu0 0
        %1409 = vmatpush1.bf16.xpose.msra.mxu0 0
        %1410 = vmatprep.subr.bf16.mxu0 0
        %1411 = vmatpush1.bf16.xpose.msra.mxu0 0
        %1412 = vmatprep.subr.bf16.mxu0 0
        %1413 = vmatpush1.bf16.xpose.msra.mxu0 %v1171
        %1414 = vmatprep.subr.bf16.mxu0 0
        %1415 = vmatpush2.bf16.xpose.msra.mxu0 0
        %1416 = vmatprep.subr.bf16.mxu0 0
        %1417 = vmatpush2.bf16.xpose.msra.mxu0 0
        %1418 = vmatprep.subr.bf16.mxu0 0
        %1419 = vmatpush2.bf16.xpose.msra.mxu0 0
        %1420 = vmatprep.subr.bf16.mxu0 0
        %1421 = vmatpush2.bf16.xpose.msra.mxu0 0
        %1422 = vmatprep.subr.bf16.mxu0 0
        %1423 = vmatpush2.bf16.xpose.msra.mxu0 0
        %1424 = vmatprep.subr.bf16.mxu0 0
        %1425 = vmatpush2.bf16.xpose.msra.mxu0 0
        %1426 = vmatprep.subr.bf16.mxu0 0
        %1427 = vmatpush2.bf16.xpose.msra.mxu0 0
        %1428 = vmatprep.subr.bf16.mxu0 0
        %1429 = vmatpush2.bf16.xpose.msra.mxu0 0
        %1430 = vmatprep.mubr.bf16.mxu0 0
        %1431 = vmatmul.mubr.bf16.gmra.mxu0 %v1396
        %v1432 = vpop.f32.mrf.mxu0
        %v1433 = vadd.f32 0.0, %v1432
        %v1434 = vpop.f32.mrf.mxu0
        %v1435 = vpop.f32.mrf.mxu0
        %v1436 = vpop.f32.mrf.mxu0
        %1437 = vdwg.mxu0
        %v1438 = vpack.i.b16 %v1205, %v1205
        %v1439 = vlaneseq
        %v1440 = vshrl.u32 %v1439, 7
        %v1441 = vsub.s32 0, %v1440
        %v1442 = vrot.slane %v1438, %v1441
        %1444 = vmatprep.subr.bf16.mxu0 0
        %1445 = vmatpush1.bf16.xpose.msra.mxu0 0
        %1446 = vmatprep.subr.bf16.mxu0 0
        %1447 = vmatpush1.bf16.xpose.msra.mxu0 0
        %1448 = vmatprep.subr.bf16.mxu0 0
        %1449 = vmatpush1.bf16.xpose.msra.mxu0 0
        %1450 = vmatprep.subr.bf16.mxu0 0
        %1451 = vmatpush1.bf16.xpose.msra.mxu0 0
        %1452 = vmatprep.subr.bf16.mxu0 0
        %1453 = vmatpush1.bf16.xpose.msra.mxu0 0
        %1454 = vmatprep.subr.bf16.mxu0 0
        %1455 = vmatpush1.bf16.xpose.msra.mxu0 0
        %1456 = vmatprep.subr.bf16.mxu0 0
        %1457 = vmatpush1.bf16.xpose.msra.mxu0 0
        %1458 = vmatprep.subr.bf16.mxu0 0
        %1459 = vmatpush1.bf16.xpose.msra.mxu0 %v1172
        %1460 = vmatprep.subr.bf16.mxu0 0
        %1461 = vmatpush2.bf16.xpose.msra.mxu0 0
        %1462 = vmatprep.subr.bf16.mxu0 0
        %1463 = vmatpush2.bf16.xpose.msra.mxu0 0
        %1464 = vmatprep.subr.bf16.mxu0 0
        %1465 = vmatpush2.bf16.xpose.msra.mxu0 0
        %1466 = vmatprep.subr.bf16.mxu0 0
        %1467 = vmatpush2.bf16.xpose.msra.mxu0 0
        %1468 = vmatprep.subr.bf16.mxu0 0
        %1469 = vmatpush2.bf16.xpose.msra.mxu0 0
        %1470 = vmatprep.subr.bf16.mxu0 0
        %1471 = vmatpush2.bf16.xpose.msra.mxu0 0
        %1472 = vmatprep.subr.bf16.mxu0 0
        %1473 = vmatpush2.bf16.xpose.msra.mxu0 0
        %1474 = vmatprep.subr.bf16.mxu0 0
        %1475 = vmatpush2.bf16.xpose.msra.mxu0 0
        %1476 = vmatprep.mubr.bf16.mxu0 0
        %1477 = vmatmul.mubr.bf16.gmra.mxu0 %v1442
        %v1478 = vpop.f32.mrf.mxu0
        %v1479 = vadd.f32 0.0, %v1478
        %v1480 = vpop.f32.mrf.mxu0
        %v1481 = vpop.f32.mrf.mxu0
        %v1482 = vpop.f32.mrf.mxu0
        %1483 = vdwg.mxu0
        %v1484 = vpack.i.b16 %v1206, %v1206
        %v1485 = vlaneseq
        %v1486 = vshrl.u32 %v1485, 7
        %v1487 = vsub.s32 0, %v1486
        %v1488 = vrot.slane %v1484, %v1487
        %1490 = vmatprep.subr.bf16.mxu0 0
        %1491 = vmatpush1.bf16.xpose.msra.mxu0 0
        %1492 = vmatprep.subr.bf16.mxu0 0
        %1493 = vmatpush1.bf16.xpose.msra.mxu0 0
        %1494 = vmatprep.subr.bf16.mxu0 0
        %1495 = vmatpush1.bf16.xpose.msra.mxu0 0
        %1496 = vmatprep.subr.bf16.mxu0 0
        %1497 = vmatpush1.bf16.xpose.msra.mxu0 0
        %1498 = vmatprep.subr.bf16.mxu0 0
        %1499 = vmatpush1.bf16.xpose.msra.mxu0 0
        %1500 = vmatprep.subr.bf16.mxu0 0
        %1501 = vmatpush1.bf16.xpose.msra.mxu0 0
        %1502 = vmatprep.subr.bf16.mxu0 0
        %1503 = vmatpush1.bf16.xpose.msra.mxu0 0
        %1504 = vmatprep.subr.bf16.mxu0 0
        %1505 = vmatpush1.bf16.xpose.msra.mxu0 %v1173
        %1506 = vmatprep.subr.bf16.mxu0 0
        %1507 = vmatpush2.bf16.xpose.msra.mxu0 0
        %1508 = vmatprep.subr.bf16.mxu0 0
        %1509 = vmatpush2.bf16.xpose.msra.mxu0 0
        %1510 = vmatprep.subr.bf16.mxu0 0
        %1511 = vmatpush2.bf16.xpose.msra.mxu0 0
        %1512 = vmatprep.subr.bf16.mxu0 0
        %1513 = vmatpush2.bf16.xpose.msra.mxu0 0
        %1514 = vmatprep.subr.bf16.mxu0 0
        %1515 = vmatpush2.bf16.xpose.msra.mxu0 0
        %1516 = vmatprep.subr.bf16.mxu0 0
        %1517 = vmatpush2.bf16.xpose.msra.mxu0 0
        %1518 = vmatprep.subr.bf16.mxu0 0
        %1519 = vmatpush2.bf16.xpose.msra.mxu0 0
        %1520 = vmatprep.subr.bf16.mxu0 0
        %1521 = vmatpush2.bf16.xpose.msra.mxu0 0
        %1522 = vmatprep.mubr.bf16.mxu0 0
        %1523 = vmatmul.mubr.bf16.gmra.mxu0 %v1488
        %v1524 = vpop.f32.mrf.mxu0
        %v1525 = vadd.f32 0.0, %v1524
        %v1526 = vpop.f32.mrf.mxu0
        %v1527 = vpop.f32.mrf.mxu0
        %v1528 = vpop.f32.mrf.mxu0
        %1529 = vdwg.mxu0
        %v1530 = vpack.i.b16 %v1207, %v1207
        %v1531 = vlaneseq
        %v1532 = vshrl.u32 %v1531, 7
        %v1533 = vsub.s32 0, %v1532
        %v1534 = vrot.slane %v1530, %v1533
        %1536 = vmatprep.subr.bf16.mxu0 0
        %1537 = vmatpush1.bf16.xpose.msra.mxu0 0
        %1538 = vmatprep.subr.bf16.mxu0 0
        %1539 = vmatpush1.bf16.xpose.msra.mxu0 0
        %1540 = vmatprep.subr.bf16.mxu0 0
        %1541 = vmatpush1.bf16.xpose.msra.mxu0 0
        %1542 = vmatprep.subr.bf16.mxu0 0
        %1543 = vmatpush1.bf16.xpose.msra.mxu0 0
        %1544 = vmatprep.subr.bf16.mxu0 0
        %1545 = vmatpush1.bf16.xpose.msra.mxu0 0
        %1546 = vmatprep.subr.bf16.mxu0 0
        %1547 = vmatpush1.bf16.xpose.msra.mxu0 0
        %1548 = vmatprep.subr.bf16.mxu0 0
        %1549 = vmatpush1.bf16.xpose.msra.mxu0 0
        %1550 = vmatprep.subr.bf16.mxu0 0
        %1551 = vmatpush1.bf16.xpose.msra.mxu0 %v1174
        %1552 = vmatprep.subr.bf16.mxu0 0
        %1553 = vmatpush2.bf16.xpose.msra.mxu0 0
        %1554 = vmatprep.subr.bf16.mxu0 0
        %1555 = vmatpush2.bf16.xpose.msra.mxu0 0
        %1556 = vmatprep.subr.bf16.mxu0 0
        %1557 = vmatpush2.bf16.xpose.msra.mxu0 0
        %1558 = vmatprep.subr.bf16.mxu0 0
        %1559 = vmatpush2.bf16.xpose.msra.mxu0 0
        %1560 = vmatprep.subr.bf16.mxu0 0
        %1561 = vmatpush2.bf16.xpose.msra.mxu0 0
        %1562 = vmatprep.subr.bf16.mxu0 0
        %1563 = vmatpush2.bf16.xpose.msra.mxu0 0
        %1564 = vmatprep.subr.bf16.mxu0 0
        %1565 = vmatpush2.bf16.xpose.msra.mxu0 0
        %1566 = vmatprep.subr.bf16.mxu0 0
        %1567 = vmatpush2.bf16.xpose.msra.mxu0 0
        %1568 = vmatprep.mubr.bf16.mxu0 0
        %1569 = vmatmul.mubr.bf16.gmra.mxu0 %v1534
        %v1570 = vpop.f32.mrf.mxu0
        %v1571 = vadd.f32 0.0, %v1570
        %v1572 = vpop.f32.mrf.mxu0
        %v1573 = vpop.f32.mrf.mxu0
        %v1574 = vpop.f32.mrf.mxu0
        %1575 = vdwg.mxu0
        %v1576 = vld [vmem:[#allocation11] sm:$0xff]
        %v1578 = vrot.slane %v1576, 1
        %v1579 = vrot.slane %v1576, 2
        %v1580 = vrot.slane %v1576, 3
        %v1581 = vrot.slane %v1576, 4
        %v1582 = vrot.slane %v1576, 5
        %v1583 = vrot.slane %v1576, 6
        %v1584 = vrot.slane %v1576, 7
        %v1593 = vadd.f32 %v1249, %v1576
        %v1594 = vadd.f32 %v1295, %v1578
        %v1595 = vadd.f32 %v1341, %v1579
        %v1596 = vadd.f32 %v1387, %v1580
        %v1597 = vadd.f32 %v1433, %v1581
        %v1598 = vadd.f32 %v1479, %v1582
        %v1599 = vadd.f32 %v1525, %v1583
        %v1600 = vadd.f32 %v1571, %v1584
        %v1609 = vrot.slane %v1594, 7
        %vm1610 = vcmask 1041409
        %v1611 = vsel %vm1610, %v1609, %v1593
        %v1612 = vrot.slane %v1595, 6
        %vm1613 = vcmask 1042434
        %v1614 = vsel %vm1613, %v1612, %v1611
        %v1615 = vrot.slane %v1596, 5
        %vm1616 = vcmask 1043459
        %v1617 = vsel %vm1616, %v1615, %v1614
        %v1618 = vrot.slane %v1597, 4
        %vm1619 = vcmask 1044484
        %v1620 = vsel %vm1619, %v1618, %v1617
        %v1621 = vrot.slane %v1598, 3
        %vm1622 = vcmask 1045509
        %v1623 = vsel %vm1622, %v1621, %v1620
        %v1624 = vrot.slane %v1599, 2
        %vm1625 = vcmask 1046534
        %v1626 = vsel %vm1625, %v1624, %v1623
        %v1627 = vrot.slane %v1600, 1
        %vm1628 = vcmask 1047559
        %v1629 = vsel %vm1628, %v1627, %v1626
        %vm1631 = vcmask 64512
        %v1632 = vsel %vm1631, %v1629, -inf
        %1633 = vmax.xlane.f32.xlu0 %v1632
        %v1634 = vpop.xlane.xlu0 %1633
        %v1636 = vrot.slane %v1634, 1
        %v1637 = vrot.slane %v1634, 2
        %v1638 = vrot.slane %v1634, 3
        %v1639 = vrot.slane %v1634, 4
        %v1640 = vrot.slane %v1634, 5
        %v1641 = vrot.slane %v1634, 6
        %v1642 = vrot.slane %v1634, 7
        %v1651 = vsub.f32 %v1593, %v1634
        %v1652 = vsub.f32 %v1594, %v1636
        %v1653 = vsub.f32 %v1595, %v1637
        %v1654 = vsub.f32 %v1596, %v1638
        %v1655 = vsub.f32 %v1597, %v1639
        %v1656 = vsub.f32 %v1598, %v1640
        %v1657 = vsub.f32 %v1599, %v1641
        %v1658 = vsub.f32 %v1600, %v1642
        %v1659 = vmul.f32 %v1651, 1.442695
        %v1660 = vpow.pop %v1659
        %v1661 = vmul.f32 %v1652, 1.442695
        %v1662 = vpow.pop %v1661
        %v1663 = vmul.f32 %v1653, 1.442695
        %v1664 = vpow.pop %v1663
        %v1665 = vmul.f32 %v1654, 1.442695
        %v1666 = vpow.pop %v1665
        %v1667 = vmul.f32 %v1655, 1.442695
        %v1668 = vpow.pop %v1667
        %v1669 = vmul.f32 %v1656, 1.442695
        %v1670 = vpow.pop %v1669
        %v1671 = vmul.f32 %v1657, 1.442695
        %v1672 = vpow.pop %v1671
        %v1673 = vmul.f32 %v1658, 1.442695
        %v1674 = vpow.pop %v1673
        %v1683 = vrot.slane %v1662, 7
        %v1684 = vsel %vm1610, %v1683, %v1660
        %v1685 = vrot.slane %v1664, 6
        %v1686 = vsel %vm1613, %v1685, %v1684
        %v1687 = vrot.slane %v1666, 5
        %v1688 = vsel %vm1616, %v1687, %v1686
        %v1689 = vrot.slane %v1668, 4
        %v1690 = vsel %vm1619, %v1689, %v1688
        %v1691 = vrot.slane %v1670, 3
        %v1692 = vsel %vm1622, %v1691, %v1690
        %v1693 = vrot.slane %v1672, 2
        %v1694 = vsel %vm1625, %v1693, %v1692
        %v1695 = vrot.slane %v1674, 1
        %v1696 = vsel %vm1628, %v1695, %v1694
        %v1698 = vsel %vm1631, %v1696, 0.0
        %1699 = vadd.xlane.f32.xlu0 %v1698
        %v1700 = vpop.xlane.xlu0 %1699
        %v1701 = vrcp.pop %v1700
        %v1703 = vrot.slane %v1701, 1
        %v1704 = vrot.slane %v1701, 2
        %v1705 = vrot.slane %v1701, 3
        %v1706 = vrot.slane %v1701, 4
        %v1707 = vrot.slane %v1701, 5
        %v1708 = vrot.slane %v1701, 6
        %v1709 = vrot.slane %v1701, 7
        %v1718 = vmul.f32 %v1660, %v1701
        %v1719 = vmul.f32 %v1662, %v1703
        %v1720 = vmul.f32 %v1664, %v1704
        %v1721 = vmul.f32 %v1666, %v1705
        %v1722 = vmul.f32 %v1668, %v1706
        %v1723 = vmul.f32 %v1670, %v1707
        %v1724 = vmul.f32 %v1672, %v1708
        %v1725 = vmul.f32 %v1674, %v1709
        %v1726 = vpack.c.bf16 %v1718, %v1718
        %v1727 = vpack.c.bf16 %v1719, %v1719
        %v1728 = vpack.c.bf16 %v1720, %v1720
        %v1729 = vpack.c.bf16 %v1721, %v1721
        %v1730 = vpack.c.bf16 %v1722, %v1722
        %v1731 = vpack.c.bf16 %v1723, %v1723
        %v1732 = vpack.c.bf16 %v1724, %v1724
        %v1733 = vpack.c.bf16 %v1725, %v1725
        %v1734 = vld [vmem:[#allocation16] sm:$0xf]
        %v1735 = vld [vmem:[#allocation16 + $0x4] sm:$0xf]
        %v1736 = vld [vmem:[#allocation16 + $0x8] sm:$0xf]
        %v1737 = vld [vmem:[#allocation16 + $0xc] sm:$0xf]
        %v1738 = vld [vmem:[#allocation16 + $0x10] sm:$0xf]
        %v1739 = vld [vmem:[#allocation16 + $0x14] sm:$0xf]
        %v1740 = vld [vmem:[#allocation16 + $0x18] sm:$0xf]
        %v1741 = vld [vmem:[#allocation16 + $0x1c] sm:$0xf]
        %v1742 = vld [vmem:[#allocation16 + $0x20] sm:$0xf]
        %v1743 = vld [vmem:[#allocation16 + $0x24] sm:$0xf]
        %v1744 = vld [vmem:[#allocation16 + $0x28] sm:$0xf]
        %v1745 = vld [vmem:[#allocation16 + $0x2c] sm:$0xf]
        %v1746 = vld [vmem:[#allocation16 + $0x30] sm:$0xf]
        %v1747 = vld [vmem:[#allocation16 + $0x34] sm:$0xf]
        %v1748 = vld [vmem:[#allocation16 + $0x38] sm:$0xf]
        %v1749 = vld [vmem:[#allocation16 + $0x3c] sm:$0xf]
        %v1750 = vld [vmem:[%s7] sm:$0x1]
        %v1752 = vlaneseq
        %v1753 = vshrl.u32 %v1752, 7
        %v1754 = vsub.s32 0, %v1753
        %v1755 = vrot.slane %v1750, %v1754
        %v1773 = vunpack.c.l.b16 %v1734
        %v1774 = vunpack.c.l.b16 %v1735
        %v1775 = vunpack.c.l.b16 %v1736
        %v1776 = vunpack.c.l.b16 %v1737
        %v1777 = vunpack.c.l.b16 %v1738
        %v1778 = vunpack.c.l.b16 %v1739
        %v1779 = vunpack.c.l.b16 %v1740
        %v1780 = vunpack.c.l.b16 %v1741
        %v1781 = vunpack.c.l.b16 %v1742
        %v1782 = vunpack.c.l.b16 %v1743
        %v1783 = vunpack.c.l.b16 %v1744
        %v1784 = vunpack.c.l.b16 %v1745
        %v1785 = vunpack.c.l.b16 %v1746
        %v1786 = vunpack.c.l.b16 %v1747
        %v1787 = vunpack.c.l.b16 %v1748
        %v1788 = vunpack.c.l.b16 %v1749
        %v1789 = vpack.c.b16 %v1774, %v1773
        %v1790 = vpack.c.b16 %v1776, %v1775
        %v1791 = vpack.c.b16 %v1778, %v1777
        %v1792 = vpack.c.b16 %v1780, %v1779
        %v1793 = vpack.c.b16 %v1782, %v1781
        %v1794 = vpack.c.b16 %v1784, %v1783
        %v1795 = vpack.c.b16 %v1786, %v1785
        %v1796 = vpack.c.b16 %v1788, %v1787
        %1805 = vmatprep.subr.bf16.mxu0 0
        %1806 = vmatpush1.bf16.msra.mxu0 %v1796
        %1807 = vmatprep.subr.bf16.mxu0 0
        %1808 = vmatpush1.bf16.msra.mxu0 %v1795
        %1809 = vmatprep.subr.bf16.mxu0 0
        %1810 = vmatpush1.bf16.msra.mxu0 %v1794
        %1811 = vmatprep.subr.bf16.mxu0 0
        %1812 = vmatpush1.bf16.msra.mxu0 %v1793
        %1813 = vmatprep.subr.bf16.mxu0 0
        %1814 = vmatpush1.bf16.msra.mxu0 %v1792
        %1815 = vmatprep.subr.bf16.mxu0 0
        %1816 = vmatpush1.bf16.msra.mxu0 %v1791
        %1817 = vmatprep.subr.bf16.mxu0 0
        %1818 = vmatpush1.bf16.msra.mxu0 %v1790
        %1819 = vmatprep.subr.bf16.mxu0 0
        %1820 = vmatpush1.bf16.msra.mxu0 %v1789
        %1821 = vmatprep.subr.bf16.mxu0 0
        %1822 = vmatpush2.bf16.msra.mxu0 0
        %1823 = vmatprep.subr.bf16.mxu0 0
        %1824 = vmatpush2.bf16.msra.mxu0 0
        %1825 = vmatprep.subr.bf16.mxu0 0
        %1826 = vmatpush2.bf16.msra.mxu0 0
        %1827 = vmatprep.subr.bf16.mxu0 0
        %1828 = vmatpush2.bf16.msra.mxu0 0
        %1829 = vmatprep.subr.bf16.mxu0 0
        %1830 = vmatpush2.bf16.msra.mxu0 0
        %1831 = vmatprep.subr.bf16.mxu0 0
        %1832 = vmatpush2.bf16.msra.mxu0 0
        %1833 = vmatprep.subr.bf16.mxu0 0
        %1834 = vmatpush2.bf16.msra.mxu0 0
        %1835 = vmatprep.subr.bf16.mxu0 0
        %1836 = vmatpush2.bf16.msra.mxu0 0
        %1837 = vmatprep.mubr.bf16.mxu0 0
        %1838 = vmatmul.mubr.bf16.gmra.mxu0 %v1166
        %v1839 = vpop.f32.mrf.mxu0
        %v1840 = vadd.f32 %v1755, %v1839
        %v1841 = vpop.f32.mrf.mxu0
        %v1842 = vpop.f32.mrf.mxu0
        %v1843 = vpop.f32.mrf.mxu0
        %1844 = vdwg.mxu0
        %1845 = vmax.xlane.f32.xlu0 %v1840
        %v1846 = vpop.xlane.xlu0 %1845
        %v1847 = vsub.f32 %v1840, %v1846
        %v1848 = vmul.f32 %v1847, 1.442695
        %v1849 = vpow.pop %v1848
        %1850 = vadd.xlane.f32.xlu0 %v1849
        %v1851 = vpop.xlane.xlu0 %1850
        %v1852 = vrcp.pop %v1851
        %v1853 = vmul.f32 %v1849, %v1852
        %v1855 = vsel %vm1631, %v1726, 0
        %vm1857 = vcmask 1043456
        %v1859 = vsel %vm1857, %v1167, 0
        %1861 = vmatprep.subr.bf16.mxu0 0
        %1862 = vmatpush1.bf16.msra.mxu0 0
        %1863 = vmatprep.subr.bf16.mxu0 0
        %1864 = vmatpush1.bf16.msra.mxu0 0
        %1865 = vmatprep.subr.bf16.mxu0 0
        %1866 = vmatpush1.bf16.msra.mxu0 0
        %1867 = vmatprep.subr.bf16.mxu0 0
        %1868 = vmatpush1.bf16.msra.mxu0 0
        %1869 = vmatprep.subr.bf16.mxu0 0
        %1870 = vmatpush1.bf16.msra.mxu0 0
        %1871 = vmatprep.subr.bf16.mxu0 0
        %1872 = vmatpush1.bf16.msra.mxu0 0
        %1873 = vmatprep.subr.bf16.mxu0 0
        %1874 = vmatpush1.bf16.msra.mxu0 0
        %1875 = vmatprep.subr.bf16.mxu0 0
        %1876 = vmatpush1.bf16.msra.mxu0 %v1859
        %1877 = vmatprep.subr.bf16.mxu0 0
        %1878 = vmatpush2.bf16.msra.mxu0 0
        %1879 = vmatprep.subr.bf16.mxu0 0
        %1880 = vmatpush2.bf16.msra.mxu0 0
        %1881 = vmatprep.subr.bf16.mxu0 0
        %1882 = vmatpush2.bf16.msra.mxu0 0
        %1883 = vmatprep.subr.bf16.mxu0 0
        %1884 = vmatpush2.bf16.msra.mxu0 0
        %1885 = vmatprep.subr.bf16.mxu0 0
        %1886 = vmatpush2.bf16.msra.mxu0 0
        %1887 = vmatprep.subr.bf16.mxu0 0
        %1888 = vmatpush2.bf16.msra.mxu0 0
        %1889 = vmatprep.subr.bf16.mxu0 0
        %1890 = vmatpush2.bf16.msra.mxu0 0
        %1891 = vmatprep.subr.bf16.mxu0 0
        %1892 = vmatpush2.bf16.msra.mxu0 0
        %1893 = vmatprep.mubr.bf16.mxu0 0
        %1894 = vmatmul.mubr.bf16.gmra.mxu0 %v1855
        %v1895 = vpop.f32.mrf.mxu0
        %v1896 = vadd.f32 0.0, %v1895
        %v1897 = vpop.f32.mrf.mxu0
        %v1898 = vpop.f32.mrf.mxu0
        %v1899 = vpop.f32.mrf.mxu0
        %1900 = vdwg.mxu0
        %v1902 = vsel %vm1631, %v1727, 0
        %v1905 = vsel %vm1857, %v1168, 0
        %1907 = vmatprep.subr.bf16.mxu0 0
        %1908 = vmatpush1.bf16.msra.mxu0 0
        %1909 = vmatprep.subr.bf16.mxu0 0
        %1910 = vmatpush1.bf16.msra.mxu0 0
        %1911 = vmatprep.subr.bf16.mxu0 0
        %1912 = vmatpush1.bf16.msra.mxu0 0
        %1913 = vmatprep.subr.bf16.mxu0 0
        %1914 = vmatpush1.bf16.msra.mxu0 0
        %1915 = vmatprep.subr.bf16.mxu0 0
        %1916 = vmatpush1.bf16.msra.mxu0 0
        %1917 = vmatprep.subr.bf16.mxu0 0
        %1918 = vmatpush1.bf16.msra.mxu0 0
        %1919 = vmatprep.subr.bf16.mxu0 0
        %1920 = vmatpush1.bf16.msra.mxu0 0
        %1921 = vmatprep.subr.bf16.mxu0 0
        %1922 = vmatpush1.bf16.msra.mxu0 %v1905
        %1923 = vmatprep.subr.bf16.mxu0 0
        %1924 = vmatpush2.bf16.msra.mxu0 0
        %1925 = vmatprep.subr.bf16.mxu0 0
        %1926 = vmatpush2.bf16.msra.mxu0 0
        %1927 = vmatprep.subr.bf16.mxu0 0
        %1928 = vmatpush2.bf16.msra.mxu0 0
        %1929 = vmatprep.subr.bf16.mxu0 0
        %1930 = vmatpush2.bf16.msra.mxu0 0
        %1931 = vmatprep.subr.bf16.mxu0 0
        %1932 = vmatpush2.bf16.msra.mxu0 0
        %1933 = vmatprep.subr.bf16.mxu0 0
        %1934 = vmatpush2.bf16.msra.mxu0 0
        %1935 = vmatprep.subr.bf16.mxu0 0
        %1936 = vmatpush2.bf16.msra.mxu0 0
        %1937 = vmatprep.subr.bf16.mxu0 0
        %1938 = vmatpush2.bf16.msra.mxu0 0
        %1939 = vmatprep.mubr.bf16.mxu0 0
        %1940 = vmatmul.mubr.bf16.gmra.mxu0 %v1902
        %v1941 = vpop.f32.mrf.mxu0
        %v1942 = vadd.f32 0.0, %v1941
        %v1943 = vpop.f32.mrf.mxu0
        %v1944 = vpop.f32.mrf.mxu0
        %v1945 = vpop.f32.mrf.mxu0
        %1946 = vdwg.mxu0
        %v1948 = vsel %vm1631, %v1728, 0
        %v1951 = vsel %vm1857, %v1169, 0
        %1953 = vmatprep.subr.bf16.mxu0 0
        %1954 = vmatpush1.bf16.msra.mxu0 0
        %1955 = vmatprep.subr.bf16.mxu0 0
        %1956 = vmatpush1.bf16.msra.mxu0 0
        %1957 = vmatprep.subr.bf16.mxu0 0
        %1958 = vmatpush1.bf16.msra.mxu0 0
        %1959 = vmatprep.subr.bf16.mxu0 0
        %1960 = vmatpush1.bf16.msra.mxu0 0
        %1961 = vmatprep.subr.bf16.mxu0 0
        %1962 = vmatpush1.bf16.msra.mxu0 0
        %1963 = vmatprep.subr.bf16.mxu0 0
        %1964 = vmatpush1.bf16.msra.mxu0 0
        %1965 = vmatprep.subr.bf16.mxu0 0
        %1966 = vmatpush1.bf16.msra.mxu0 0
        %1967 = vmatprep.subr.bf16.mxu0 0
        %1968 = vmatpush1.bf16.msra.mxu0 %v1951
        %1969 = vmatprep.subr.bf16.mxu0 0
        %1970 = vmatpush2.bf16.msra.mxu0 0
        %1971 = vmatprep.subr.bf16.mxu0 0
        %1972 = vmatpush2.bf16.msra.mxu0 0
        %1973 = vmatprep.subr.bf16.mxu0 0
        %1974 = vmatpush2.bf16.msra.mxu0 0
        %1975 = vmatprep.subr.bf16.mxu0 0
        %1976 = vmatpush2.bf16.msra.mxu0 0
        %1977 = vmatprep.subr.bf16.mxu0 0
        %1978 = vmatpush2.bf16.msra.mxu0 0
        %1979 = vmatprep.subr.bf16.mxu0 0
        %1980 = vmatpush2.bf16.msra.mxu0 0
        %1981 = vmatprep.subr.bf16.mxu0 0
        %1982 = vmatpush2.bf16.msra.mxu0 0
        %1983 = vmatprep.subr.bf16.mxu0 0
        %1984 = vmatpush2.bf16.msra.mxu0 0
        %1985 = vmatprep.mubr.bf16.mxu0 0
        %1986 = vmatmul.mubr.bf16.gmra.mxu0 %v1948
        %v1987 = vpop.f32.mrf.mxu0
        %v1988 = vadd.f32 0.0, %v1987
        %v1989 = vpop.f32.mrf.mxu0
        %v1990 = vpop.f32.mrf.mxu0
        %v1991 = vpop.f32.mrf.mxu0
        %1992 = vdwg.mxu0
        %v1994 = vsel %vm1631, %v1729, 0
        %v1997 = vsel %vm1857, %v1170, 0
        %1999 = vmatprep.subr.bf16.mxu0 0
        %2000 = vmatpush1.bf16.msra.mxu0 0
        %2001 = vmatprep.subr.bf16.mxu0 0
        %2002 = vmatpush1.bf16.msra.mxu0 0
        %2003 = vmatprep.subr.bf16.mxu0 0
        %2004 = vmatpush1.bf16.msra.mxu0 0
        %2005 = vmatprep.subr.bf16.mxu0 0
        %2006 = vmatpush1.bf16.msra.mxu0 0
        %2007 = vmatprep.subr.bf16.mxu0 0
        %2008 = vmatpush1.bf16.msra.mxu0 0
        %2009 = vmatprep.subr.bf16.mxu0 0
        %2010 = vmatpush1.bf16.msra.mxu0 0
        %2011 = vmatprep.subr.bf16.mxu0 0
        %2012 = vmatpush1.bf16.msra.mxu0 0
        %2013 = vmatprep.subr.bf16.mxu0 0
        %2014 = vmatpush1.bf16.msra.mxu0 %v1997
        %2015 = vmatprep.subr.bf16.mxu0 0
        %2016 = vmatpush2.bf16.msra.mxu0 0
        %2017 = vmatprep.subr.bf16.mxu0 0
        %2018 = vmatpush2.bf16.msra.mxu0 0
        %2019 = vmatprep.subr.bf16.mxu0 0
        %2020 = vmatpush2.bf16.msra.mxu0 0
        %2021 = vmatprep.subr.bf16.mxu0 0
        %2022 = vmatpush2.bf16.msra.mxu0 0
        %2023 = vmatprep.subr.bf16.mxu0 0
        %2024 = vmatpush2.bf16.msra.mxu0 0
        %2025 = vmatprep.subr.bf16.mxu0 0
        %2026 = vmatpush2.bf16.msra.mxu0 0
        %2027 = vmatprep.subr.bf16.mxu0 0
        %2028 = vmatpush2.bf16.msra.mxu0 0
        %2029 = vmatprep.subr.bf16.mxu0 0
        %2030 = vmatpush2.bf16.msra.mxu0 0
        %2031 = vmatprep.mubr.bf16.mxu0 0
        %2032 = vmatmul.mubr.bf16.gmra.mxu0 %v1994
        %v2033 = vpop.f32.mrf.mxu0
        %v2034 = vadd.f32 0.0, %v2033
        %v2035 = vpop.f32.mrf.mxu0
        %v2036 = vpop.f32.mrf.mxu0
        %v2037 = vpop.f32.mrf.mxu0
        %2038 = vdwg.mxu0
        %v2040 = vsel %vm1631, %v1730, 0
        %v2043 = vsel %vm1857, %v1171, 0
        %2045 = vmatprep.subr.bf16.mxu0 0
        %2046 = vmatpush1.bf16.msra.mxu0 0
        %2047 = vmatprep.subr.bf16.mxu0 0
        %2048 = vmatpush1.bf16.msra.mxu0 0
        %2049 = vmatprep.subr.bf16.mxu0 0
        %2050 = vmatpush1.bf16.msra.mxu0 0
        %2051 = vmatprep.subr.bf16.mxu0 0
        %2052 = vmatpush1.bf16.msra.mxu0 0
        %2053 = vmatprep.subr.bf16.mxu0 0
        %2054 = vmatpush1.bf16.msra.mxu0 0
        %2055 = vmatprep.subr.bf16.mxu0 0
        %2056 = vmatpush1.bf16.msra.mxu0 0
        %2057 = vmatprep.subr.bf16.mxu0 0
        %2058 = vmatpush1.bf16.msra.mxu0 0
        %2059 = vmatprep.subr.bf16.mxu0 0
        %2060 = vmatpush1.bf16.msra.mxu0 %v2043
        %2061 = vmatprep.subr.bf16.mxu0 0
        %2062 = vmatpush2.bf16.msra.mxu0 0
        %2063 = vmatprep.subr.bf16.mxu0 0
        %2064 = vmatpush2.bf16.msra.mxu0 0
        %2065 = vmatprep.subr.bf16.mxu0 0
        %2066 = vmatpush2.bf16.msra.mxu0 0
        %2067 = vmatprep.subr.bf16.mxu0 0
        %2068 = vmatpush2.bf16.msra.mxu0 0
        %2069 = vmatprep.subr.bf16.mxu0 0
        %2070 = vmatpush2.bf16.msra.mxu0 0
        %2071 = vmatprep.subr.bf16.mxu0 0
        %2072 = vmatpush2.bf16.msra.mxu0 0
        %2073 = vmatprep.subr.bf16.mxu0 0
        %2074 = vmatpush2.bf16.msra.mxu0 0
        %2075 = vmatprep.subr.bf16.mxu0 0
        %2076 = vmatpush2.bf16.msra.mxu0 0
        %2077 = vmatprep.mubr.bf16.mxu0 0
        %2078 = vmatmul.mubr.bf16.gmra.mxu0 %v2040
        %v2079 = vpop.f32.mrf.mxu0
        %v2080 = vadd.f32 0.0, %v2079
        %v2081 = vpop.f32.mrf.mxu0
        %v2082 = vpop.f32.mrf.mxu0
        %v2083 = vpop.f32.mrf.mxu0
        %2084 = vdwg.mxu0
        %v2086 = vsel %vm1631, %v1731, 0
        %v2089 = vsel %vm1857, %v1172, 0
        %2091 = vmatprep.subr.bf16.mxu0 0
        %2092 = vmatpush1.bf16.msra.mxu0 0
        %2093 = vmatprep.subr.bf16.mxu0 0
        %2094 = vmatpush1.bf16.msra.mxu0 0
        %2095 = vmatprep.subr.bf16.mxu0 0
        %2096 = vmatpush1.bf16.msra.mxu0 0
        %2097 = vmatprep.subr.bf16.mxu0 0
        %2098 = vmatpush1.bf16.msra.mxu0 0
        %2099 = vmatprep.subr.bf16.mxu0 0
        %2100 = vmatpush1.bf16.msra.mxu0 0
        %2101 = vmatprep.subr.bf16.mxu0 0
        %2102 = vmatpush1.bf16.msra.mxu0 0
        %2103 = vmatprep.subr.bf16.mxu0 0
        %2104 = vmatpush1.bf16.msra.mxu0 0
        %2105 = vmatprep.subr.bf16.mxu0 0
        %2106 = vmatpush1.bf16.msra.mxu0 %v2089
        %2107 = vmatprep.subr.bf16.mxu0 0
        %2108 = vmatpush2.bf16.msra.mxu0 0
        %2109 = vmatprep.subr.bf16.mxu0 0
        %2110 = vmatpush2.bf16.msra.mxu0 0
        %2111 = vmatprep.subr.bf16.mxu0 0
        %2112 = vmatpush2.bf16.msra.mxu0 0
        %2113 = vmatprep.subr.bf16.mxu0 0
        %2114 = vmatpush2.bf16.msra.mxu0 0
        %2115 = vmatprep.subr.bf16.mxu0 0
        %2116 = vmatpush2.bf16.msra.mxu0 0
        %2117 = vmatprep.subr.bf16.mxu0 0
        %2118 = vmatpush2.bf16.msra.mxu0 0
        %2119 = vmatprep.subr.bf16.mxu0 0
        %2120 = vmatpush2.bf16.msra.mxu0 0
        %2121 = vmatprep.subr.bf16.mxu0 0
        %2122 = vmatpush2.bf16.msra.mxu0 0
        %2123 = vmatprep.mubr.bf16.mxu0 0
        %2124 = vmatmul.mubr.bf16.gmra.mxu0 %v2086
        %v2125 = vpop.f32.mrf.mxu0
        %v2126 = vadd.f32 0.0, %v2125
        %v2127 = vpop.f32.mrf.mxu0
        %v2128 = vpop.f32.mrf.mxu0
        %v2129 = vpop.f32.mrf.mxu0
        %2130 = vdwg.mxu0
        %v2132 = vsel %vm1631, %v1732, 0
        %v2135 = vsel %vm1857, %v1173, 0
        %2137 = vmatprep.subr.bf16.mxu0 0
        %2138 = vmatpush1.bf16.msra.mxu0 0
        %2139 = vmatprep.subr.bf16.mxu0 0
        %2140 = vmatpush1.bf16.msra.mxu0 0
        %2141 = vmatprep.subr.bf16.mxu0 0
        %2142 = vmatpush1.bf16.msra.mxu0 0
        %2143 = vmatprep.subr.bf16.mxu0 0
        %2144 = vmatpush1.bf16.msra.mxu0 0
        %2145 = vmatprep.subr.bf16.mxu0 0
        %2146 = vmatpush1.bf16.msra.mxu0 0
        %2147 = vmatprep.subr.bf16.mxu0 0
        %2148 = vmatpush1.bf16.msra.mxu0 0
        %2149 = vmatprep.subr.bf16.mxu0 0
        %2150 = vmatpush1.bf16.msra.mxu0 0
        %2151 = vmatprep.subr.bf16.mxu0 0
        %2152 = vmatpush1.bf16.msra.mxu0 %v2135
        %2153 = vmatprep.subr.bf16.mxu0 0
        %2154 = vmatpush2.bf16.msra.mxu0 0
        %2155 = vmatprep.subr.bf16.mxu0 0
        %2156 = vmatpush2.bf16.msra.mxu0 0
        %2157 = vmatprep.subr.bf16.mxu0 0
        %2158 = vmatpush2.bf16.msra.mxu0 0
        %2159 = vmatprep.subr.bf16.mxu0 0
        %2160 = vmatpush2.bf16.msra.mxu0 0
        %2161 = vmatprep.subr.bf16.mxu0 0
        %2162 = vmatpush2.bf16.msra.mxu0 0
        %2163 = vmatprep.subr.bf16.mxu0 0
        %2164 = vmatpush2.bf16.msra.mxu0 0
        %2165 = vmatprep.subr.bf16.mxu0 0
        %2166 = vmatpush2.bf16.msra.mxu0 0
        %2167 = vmatprep.subr.bf16.mxu0 0
        %2168 = vmatpush2.bf16.msra.mxu0 0
        %2169 = vmatprep.mubr.bf16.mxu0 0
        %2170 = vmatmul.mubr.bf16.gmra.mxu0 %v2132
        %v2171 = vpop.f32.mrf.mxu0
        %v2172 = vadd.f32 0.0, %v2171
        %v2173 = vpop.f32.mrf.mxu0
        %v2174 = vpop.f32.mrf.mxu0
        %v2175 = vpop.f32.mrf.mxu0
        %2176 = vdwg.mxu0
        %v2178 = vsel %vm1631, %v1733, 0
        %v2181 = vsel %vm1857, %v1174, 0
        %2183 = vmatprep.subr.bf16.mxu0 0
        %2184 = vmatpush1.bf16.msra.mxu0 0
        %2185 = vmatprep.subr.bf16.mxu0 0
        %2186 = vmatpush1.bf16.msra.mxu0 0
        %2187 = vmatprep.subr.bf16.mxu0 0
        %2188 = vmatpush1.bf16.msra.mxu0 0
        %2189 = vmatprep.subr.bf16.mxu0 0
        %2190 = vmatpush1.bf16.msra.mxu0 0
        %2191 = vmatprep.subr.bf16.mxu0 0
        %2192 = vmatpush1.bf16.msra.mxu0 0
        %2193 = vmatprep.subr.bf16.mxu0 0
        %2194 = vmatpush1.bf16.msra.mxu0 0
        %2195 = vmatprep.subr.bf16.mxu0 0
        %2196 = vmatpush1.bf16.msra.mxu0 0
        %2197 = vmatprep.subr.bf16.mxu0 0
        %2198 = vmatpush1.bf16.msra.mxu0 %v2181
        %2199 = vmatprep.subr.bf16.mxu0 0
        %2200 = vmatpush2.bf16.msra.mxu0 0
        %2201 = vmatprep.subr.bf16.mxu0 0
        %2202 = vmatpush2.bf16.msra.mxu0 0
        %2203 = vmatprep.subr.bf16.mxu0 0
        %2204 = vmatpush2.bf16.msra.mxu0 0
        %2205 = vmatprep.subr.bf16.mxu0 0
        %2206 = vmatpush2.bf16.msra.mxu0 0
        %2207 = vmatprep.subr.bf16.mxu0 0
        %2208 = vmatpush2.bf16.msra.mxu0 0
        %2209 = vmatprep.subr.bf16.mxu0 0
        %2210 = vmatpush2.bf16.msra.mxu0 0
        %2211 = vmatprep.subr.bf16.mxu0 0
        %2212 = vmatpush2.bf16.msra.mxu0 0
        %2213 = vmatprep.subr.bf16.mxu0 0
        %2214 = vmatpush2.bf16.msra.mxu0 0
        %2215 = vmatprep.mubr.bf16.mxu0 0
        %2216 = vmatmul.mubr.bf16.gmra.mxu0 %v2178
        %v2217 = vpop.f32.mrf.mxu0
        %v2218 = vadd.f32 0.0, %v2217
        %v2219 = vpop.f32.mrf.mxu0
        %v2220 = vpop.f32.mrf.mxu0
        %v2221 = vpop.f32.mrf.mxu0
        %2222 = vdwg.mxu0
        %v2223 = vld [vmem:[#allocation13] sm:$0xf]
        %v2224 = vld [vmem:[#allocation13 + $0x4] sm:$0xf]
        %v2225 = vld [vmem:[#allocation13 + $0x8] sm:$0xf]
        %v2226 = vld [vmem:[#allocation13 + $0xc] sm:$0xf]
        %v2227 = vld [vmem:[#allocation13 + $0x10] sm:$0xf]
        %v2228 = vld [vmem:[#allocation13 + $0x14] sm:$0xf]
        %v2229 = vld [vmem:[#allocation13 + $0x18] sm:$0xf]
        %v2230 = vld [vmem:[#allocation13 + $0x1c] sm:$0xf]
        %v2232 = vsel %vm1857, %v2223, 0
        %2234 = vmatprep.subr.bf16.mxu0 0
        %2235 = vmatpush1.bf16.msra.mxu0 0
        %2236 = vmatprep.subr.bf16.mxu0 0
        %2237 = vmatpush1.bf16.msra.mxu0 0
        %2238 = vmatprep.subr.bf16.mxu0 0
        %2239 = vmatpush1.bf16.msra.mxu0 0
        %2240 = vmatprep.subr.bf16.mxu0 0
        %2241 = vmatpush1.bf16.msra.mxu0 0
        %2242 = vmatprep.subr.bf16.mxu0 0
        %2243 = vmatpush1.bf16.msra.mxu0 0
        %2244 = vmatprep.subr.bf16.mxu0 0
        %2245 = vmatpush1.bf16.msra.mxu0 0
        %2246 = vmatprep.subr.bf16.mxu0 0
        %2247 = vmatpush1.bf16.msra.mxu0 0
        %2248 = vmatprep.subr.bf16.mxu0 0
        %2249 = vmatpush1.bf16.msra.mxu0 %v2232
        %2250 = vmatprep.subr.bf16.mxu0 0
        %2251 = vmatpush2.bf16.msra.mxu0 0
        %2252 = vmatprep.subr.bf16.mxu0 0
        %2253 = vmatpush2.bf16.msra.mxu0 0
        %2254 = vmatprep.subr.bf16.mxu0 0
        %2255 = vmatpush2.bf16.msra.mxu0 0
        %2256 = vmatprep.subr.bf16.mxu0 0
        %2257 = vmatpush2.bf16.msra.mxu0 0
        %2258 = vmatprep.subr.bf16.mxu0 0
        %2259 = vmatpush2.bf16.msra.mxu0 0
        %2260 = vmatprep.subr.bf16.mxu0 0
        %2261 = vmatpush2.bf16.msra.mxu0 0
        %2262 = vmatprep.subr.bf16.mxu0 0
        %2263 = vmatpush2.bf16.msra.mxu0 0
        %2264 = vmatprep.subr.bf16.mxu0 0
        %2265 = vmatpush2.bf16.msra.mxu0 0
        %2266 = vmatprep.mubr.bf16.mxu0 0
        %2267 = vmatmul.mubr.bf16.gmra.mxu0 %v1855
        %v2268 = vpop.f32.mrf.mxu0
        %v2269 = vadd.f32 0.0, %v2268
        %v2270 = vpop.f32.mrf.mxu0
        %v2271 = vpop.f32.mrf.mxu0
        %v2272 = vpop.f32.mrf.mxu0
        %2273 = vdwg.mxu0
        %v2275 = vsel %vm1857, %v2224, 0
        %2277 = vmatprep.subr.bf16.mxu0 0
        %2278 = vmatpush1.bf16.msra.mxu0 0
        %2279 = vmatprep.subr.bf16.mxu0 0
        %2280 = vmatpush1.bf16.msra.mxu0 0
        %2281 = vmatprep.subr.bf16.mxu0 0
        %2282 = vmatpush1.bf16.msra.mxu0 0
        %2283 = vmatprep.subr.bf16.mxu0 0
        %2284 = vmatpush1.bf16.msra.mxu0 0
        %2285 = vmatprep.subr.bf16.mxu0 0
        %2286 = vmatpush1.bf16.msra.mxu0 0
        %2287 = vmatprep.subr.bf16.mxu0 0
        %2288 = vmatpush1.bf16.msra.mxu0 0
        %2289 = vmatprep.subr.bf16.mxu0 0
        %2290 = vmatpush1.bf16.msra.mxu0 0
        %2291 = vmatprep.subr.bf16.mxu0 0
        %2292 = vmatpush1.bf16.msra.mxu0 %v2275
        %2293 = vmatprep.subr.bf16.mxu0 0
        %2294 = vmatpush2.bf16.msra.mxu0 0
        %2295 = vmatprep.subr.bf16.mxu0 0
        %2296 = vmatpush2.bf16.msra.mxu0 0
        %2297 = vmatprep.subr.bf16.mxu0 0
        %2298 = vmatpush2.bf16.msra.mxu0 0
        %2299 = vmatprep.subr.bf16.mxu0 0
        %2300 = vmatpush2.bf16.msra.mxu0 0
        %2301 = vmatprep.subr.bf16.mxu0 0
        %2302 = vmatpush2.bf16.msra.mxu0 0
        %2303 = vmatprep.subr.bf16.mxu0 0
        %2304 = vmatpush2.bf16.msra.mxu0 0
        %2305 = vmatprep.subr.bf16.mxu0 0
        %2306 = vmatpush2.bf16.msra.mxu0 0
        %2307 = vmatprep.subr.bf16.mxu0 0
        %2308 = vmatpush2.bf16.msra.mxu0 0
        %2309 = vmatprep.mubr.bf16.mxu0 0
        %2310 = vmatmul.mubr.bf16.gmra.mxu0 %v1902
        %v2311 = vpop.f32.mrf.mxu0
        %v2312 = vadd.f32 0.0, %v2311
        %v2313 = vpop.f32.mrf.mxu0
        %v2314 = vpop.f32.mrf.mxu0
        %v2315 = vpop.f32.mrf.mxu0
        %2316 = vdwg.mxu0
        %v2318 = vsel %vm1857, %v2225, 0
        %2320 = vmatprep.subr.bf16.mxu0 0
        %2321 = vmatpush1.bf16.msra.mxu0 0
        %2322 = vmatprep.subr.bf16.mxu0 0
        %2323 = vmatpush1.bf16.msra.mxu0 0
        %2324 = vmatprep.subr.bf16.mxu0 0
        %2325 = vmatpush1.bf16.msra.mxu0 0
        %2326 = vmatprep.subr.bf16.mxu0 0
        %2327 = vmatpush1.bf16.msra.mxu0 0
        %2328 = vmatprep.subr.bf16.mxu0 0
        %2329 = vmatpush1.bf16.msra.mxu0 0
        %2330 = vmatprep.subr.bf16.mxu0 0
        %2331 = vmatpush1.bf16.msra.mxu0 0
        %2332 = vmatprep.subr.bf16.mxu0 0
        %2333 = vmatpush1.bf16.msra.mxu0 0
        %2334 = vmatprep.subr.bf16.mxu0 0
        %2335 = vmatpush1.bf16.msra.mxu0 %v2318
        %2336 = vmatprep.subr.bf16.mxu0 0
        %2337 = vmatpush2.bf16.msra.mxu0 0
        %2338 = vmatprep.subr.bf16.mxu0 0
        %2339 = vmatpush2.bf16.msra.mxu0 0
        %2340 = vmatprep.subr.bf16.mxu0 0
        %2341 = vmatpush2.bf16.msra.mxu0 0
        %2342 = vmatprep.subr.bf16.mxu0 0
        %2343 = vmatpush2.bf16.msra.mxu0 0
        %2344 = vmatprep.subr.bf16.mxu0 0
        %2345 = vmatpush2.bf16.msra.mxu0 0
        %2346 = vmatprep.subr.bf16.mxu0 0
        %2347 = vmatpush2.bf16.msra.mxu0 0
        %2348 = vmatprep.subr.bf16.mxu0 0
        %2349 = vmatpush2.bf16.msra.mxu0 0
        %2350 = vmatprep.subr.bf16.mxu0 0
        %2351 = vmatpush2.bf16.msra.mxu0 0
        %2352 = vmatprep.mubr.bf16.mxu0 0
        %2353 = vmatmul.mubr.bf16.gmra.mxu0 %v1948
        %v2354 = vpop.f32.mrf.mxu0
        %v2355 = vadd.f32 0.0, %v2354
        %v2356 = vpop.f32.mrf.mxu0
        %v2357 = vpop.f32.mrf.mxu0
        %v2358 = vpop.f32.mrf.mxu0
        %2359 = vdwg.mxu0
        %v2361 = vsel %vm1857, %v2226, 0
        %2363 = vmatprep.subr.bf16.mxu0 0
        %2364 = vmatpush1.bf16.msra.mxu0 0
        %2365 = vmatprep.subr.bf16.mxu0 0
        %2366 = vmatpush1.bf16.msra.mxu0 0
        %2367 = vmatprep.subr.bf16.mxu0 0
        %2368 = vmatpush1.bf16.msra.mxu0 0
        %2369 = vmatprep.subr.bf16.mxu0 0
        %2370 = vmatpush1.bf16.msra.mxu0 0
        %2371 = vmatprep.subr.bf16.mxu0 0
        %2372 = vmatpush1.bf16.msra.mxu0 0
        %2373 = vmatprep.subr.bf16.mxu0 0
        %2374 = vmatpush1.bf16.msra.mxu0 0
        %2375 = vmatprep.subr.bf16.mxu0 0
        %2376 = vmatpush1.bf16.msra.mxu0 0
        %2377 = vmatprep.subr.bf16.mxu0 0
        %2378 = vmatpush1.bf16.msra.mxu0 %v2361
        %2379 = vmatprep.subr.bf16.mxu0 0
        %2380 = vmatpush2.bf16.msra.mxu0 0
        %2381 = vmatprep.subr.bf16.mxu0 0
        %2382 = vmatpush2.bf16.msra.mxu0 0
        %2383 = vmatprep.subr.bf16.mxu0 0
        %2384 = vmatpush2.bf16.msra.mxu0 0
        %2385 = vmatprep.subr.bf16.mxu0 0
        %2386 = vmatpush2.bf16.msra.mxu0 0
        %2387 = vmatprep.subr.bf16.mxu0 0
        %2388 = vmatpush2.bf16.msra.mxu0 0
        %2389 = vmatprep.subr.bf16.mxu0 0
        %2390 = vmatpush2.bf16.msra.mxu0 0
        %2391 = vmatprep.subr.bf16.mxu0 0
        %2392 = vmatpush2.bf16.msra.mxu0 0
        %2393 = vmatprep.subr.bf16.mxu0 0
        %2394 = vmatpush2.bf16.msra.mxu0 0
        %2395 = vmatprep.mubr.bf16.mxu0 0
        %2396 = vmatmul.mubr.bf16.gmra.mxu0 %v1994
        %v2397 = vpop.f32.mrf.mxu0
        %v2398 = vadd.f32 0.0, %v2397
        %v2399 = vpop.f32.mrf.mxu0
        %v2400 = vpop.f32.mrf.mxu0
        %v2401 = vpop.f32.mrf.mxu0
        %2402 = vdwg.mxu0
        %v2404 = vsel %vm1857, %v2227, 0
        %2406 = vmatprep.subr.bf16.mxu0 0
        %2407 = vmatpush1.bf16.msra.mxu0 0
        %2408 = vmatprep.subr.bf16.mxu0 0
        %2409 = vmatpush1.bf16.msra.mxu0 0
        %2410 = vmatprep.subr.bf16.mxu0 0
        %2411 = vmatpush1.bf16.msra.mxu0 0
        %2412 = vmatprep.subr.bf16.mxu0 0
        %2413 = vmatpush1.bf16.msra.mxu0 0
        %2414 = vmatprep.subr.bf16.mxu0 0
        %2415 = vmatpush1.bf16.msra.mxu0 0
        %2416 = vmatprep.subr.bf16.mxu0 0
        %2417 = vmatpush1.bf16.msra.mxu0 0
        %2418 = vmatprep.subr.bf16.mxu0 0
        %2419 = vmatpush1.bf16.msra.mxu0 0
        %2420 = vmatprep.subr.bf16.mxu0 0
        %2421 = vmatpush1.bf16.msra.mxu0 %v2404
        %2422 = vmatprep.subr.bf16.mxu0 0
        %2423 = vmatpush2.bf16.msra.mxu0 0
        %2424 = vmatprep.subr.bf16.mxu0 0
        %2425 = vmatpush2.bf16.msra.mxu0 0
        %2426 = vmatprep.subr.bf16.mxu0 0
        %2427 = vmatpush2.bf16.msra.mxu0 0
        %2428 = vmatprep.subr.bf16.mxu0 0
        %2429 = vmatpush2.bf16.msra.mxu0 0
        %2430 = vmatprep.subr.bf16.mxu0 0
        %2431 = vmatpush2.bf16.msra.mxu0 0
        %2432 = vmatprep.subr.bf16.mxu0 0
        %2433 = vmatpush2.bf16.msra.mxu0 0
        %2434 = vmatprep.subr.bf16.mxu0 0
        %2435 = vmatpush2.bf16.msra.mxu0 0
        %2436 = vmatprep.subr.bf16.mxu0 0
        %2437 = vmatpush2.bf16.msra.mxu0 0
        %2438 = vmatprep.mubr.bf16.mxu0 0
        %2439 = vmatmul.mubr.bf16.gmra.mxu0 %v2040
        %v2440 = vpop.f32.mrf.mxu0
        %v2441 = vadd.f32 0.0, %v2440
        %v2442 = vpop.f32.mrf.mxu0
        %v2443 = vpop.f32.mrf.mxu0
        %v2444 = vpop.f32.mrf.mxu0
        %2445 = vdwg.mxu0
        %v2447 = vsel %vm1857, %v2228, 0
        %2449 = vmatprep.subr.bf16.mxu0 0
        %2450 = vmatpush1.bf16.msra.mxu0 0
        %2451 = vmatprep.subr.bf16.mxu0 0
        %2452 = vmatpush1.bf16.msra.mxu0 0
        %2453 = vmatprep.subr.bf16.mxu0 0
        %2454 = vmatpush1.bf16.msra.mxu0 0
        %2455 = vmatprep.subr.bf16.mxu0 0
        %2456 = vmatpush1.bf16.msra.mxu0 0
        %2457 = vmatprep.subr.bf16.mxu0 0
        %2458 = vmatpush1.bf16.msra.mxu0 0
        %2459 = vmatprep.subr.bf16.mxu0 0
        %2460 = vmatpush1.bf16.msra.mxu0 0
        %2461 = vmatprep.subr.bf16.mxu0 0
        %2462 = vmatpush1.bf16.msra.mxu0 0
        %2463 = vmatprep.subr.bf16.mxu0 0
        %2464 = vmatpush1.bf16.msra.mxu0 %v2447
        %2465 = vmatprep.subr.bf16.mxu0 0
        %2466 = vmatpush2.bf16.msra.mxu0 0
        %2467 = vmatprep.subr.bf16.mxu0 0
        %2468 = vmatpush2.bf16.msra.mxu0 0
        %2469 = vmatprep.subr.bf16.mxu0 0
        %2470 = vmatpush2.bf16.msra.mxu0 0
        %2471 = vmatprep.subr.bf16.mxu0 0
        %2472 = vmatpush2.bf16.msra.mxu0 0
        %2473 = vmatprep.subr.bf16.mxu0 0
        %2474 = vmatpush2.bf16.msra.mxu0 0
        %2475 = vmatprep.subr.bf16.mxu0 0
        %2476 = vmatpush2.bf16.msra.mxu0 0
        %2477 = vmatprep.subr.bf16.mxu0 0
        %2478 = vmatpush2.bf16.msra.mxu0 0
        %2479 = vmatprep.subr.bf16.mxu0 0
        %2480 = vmatpush2.bf16.msra.mxu0 0
        %2481 = vmatprep.mubr.bf16.mxu0 0
        %2482 = vmatmul.mubr.bf16.gmra.mxu0 %v2086
        %v2483 = vpop.f32.mrf.mxu0
        %v2484 = vadd.f32 0.0, %v2483
        %v2485 = vpop.f32.mrf.mxu0
        %v2486 = vpop.f32.mrf.mxu0
        %v2487 = vpop.f32.mrf.mxu0
        %2488 = vdwg.mxu0
        %v2490 = vsel %vm1857, %v2229, 0
        %2492 = vmatprep.subr.bf16.mxu0 0
        %2493 = vmatpush1.bf16.msra.mxu0 0
        %2494 = vmatprep.subr.bf16.mxu0 0
        %2495 = vmatpush1.bf16.msra.mxu0 0
        %2496 = vmatprep.subr.bf16.mxu0 0
        %2497 = vmatpush1.bf16.msra.mxu0 0
        %2498 = vmatprep.subr.bf16.mxu0 0
        %2499 = vmatpush1.bf16.msra.mxu0 0
        %2500 = vmatprep.subr.bf16.mxu0 0
        %2501 = vmatpush1.bf16.msra.mxu0 0
        %2502 = vmatprep.subr.bf16.mxu0 0
        %2503 = vmatpush1.bf16.msra.mxu0 0
        %2504 = vmatprep.subr.bf16.mxu0 0
        %2505 = vmatpush1.bf16.msra.mxu0 0
        %2506 = vmatprep.subr.bf16.mxu0 0
        %2507 = vmatpush1.bf16.msra.mxu0 %v2490
        %2508 = vmatprep.subr.bf16.mxu0 0
        %2509 = vmatpush2.bf16.msra.mxu0 0
        %2510 = vmatprep.subr.bf16.mxu0 0
        %2511 = vmatpush2.bf16.msra.mxu0 0
        %2512 = vmatprep.subr.bf16.mxu0 0
        %2513 = vmatpush2.bf16.msra.mxu0 0
        %2514 = vmatprep.subr.bf16.mxu0 0
        %2515 = vmatpush2.bf16.msra.mxu0 0
        %2516 = vmatprep.subr.bf16.mxu0 0
        %2517 = vmatpush2.bf16.msra.mxu0 0
        %2518 = vmatprep.subr.bf16.mxu0 0
        %2519 = vmatpush2.bf16.msra.mxu0 0
        %2520 = vmatprep.subr.bf16.mxu0 0
        %2521 = vmatpush2.bf16.msra.mxu0 0
        %2522 = vmatprep.subr.bf16.mxu0 0
        %2523 = vmatpush2.bf16.msra.mxu0 0
        %2524 = vmatprep.mubr.bf16.mxu0 0
        %2525 = vmatmul.mubr.bf16.gmra.mxu0 %v2132
        %v2526 = vpop.f32.mrf.mxu0
        %v2527 = vadd.f32 0.0, %v2526
        %v2528 = vpop.f32.mrf.mxu0
        %v2529 = vpop.f32.mrf.mxu0
        %v2530 = vpop.f32.mrf.mxu0
        %2531 = vdwg.mxu0
        %v2533 = vsel %vm1857, %v2230, 0
        %2535 = vmatprep.subr.bf16.mxu0 0
        %2536 = vmatpush1.bf16.msra.mxu0 0
        %2537 = vmatprep.subr.bf16.mxu0 0
        %2538 = vmatpush1.bf16.msra.mxu0 0
        %2539 = vmatprep.subr.bf16.mxu0 0
        %2540 = vmatpush1.bf16.msra.mxu0 0
        %2541 = vmatprep.subr.bf16.mxu0 0
        %2542 = vmatpush1.bf16.msra.mxu0 0
        %2543 = vmatprep.subr.bf16.mxu0 0
        %2544 = vmatpush1.bf16.msra.mxu0 0
        %2545 = vmatprep.subr.bf16.mxu0 0
        %2546 = vmatpush1.bf16.msra.mxu0 0
        %2547 = vmatprep.subr.bf16.mxu0 0
        %2548 = vmatpush1.bf16.msra.mxu0 0
        %2549 = vmatprep.subr.bf16.mxu0 0
        %2550 = vmatpush1.bf16.msra.mxu0 %v2533
        %2551 = vmatprep.subr.bf16.mxu0 0
        %2552 = vmatpush2.bf16.msra.mxu0 0
        %2553 = vmatprep.subr.bf16.mxu0 0
        %2554 = vmatpush2.bf16.msra.mxu0 0
        %2555 = vmatprep.subr.bf16.mxu0 0
        %2556 = vmatpush2.bf16.msra.mxu0 0
        %2557 = vmatprep.subr.bf16.mxu0 0
        %2558 = vmatpush2.bf16.msra.mxu0 0
        %2559 = vmatprep.subr.bf16.mxu0 0
        %2560 = vmatpush2.bf16.msra.mxu0 0
        %2561 = vmatprep.subr.bf16.mxu0 0
        %2562 = vmatpush2.bf16.msra.mxu0 0
        %2563 = vmatprep.subr.bf16.mxu0 0
        %2564 = vmatpush2.bf16.msra.mxu0 0
        %2565 = vmatprep.subr.bf16.mxu0 0
        %2566 = vmatpush2.bf16.msra.mxu0 0
        %2567 = vmatprep.mubr.bf16.mxu0 0
        %2568 = vmatmul.mubr.bf16.gmra.mxu0 %v2178
        %v2569 = vpop.f32.mrf.mxu0
        %v2570 = vadd.f32 0.0, %v2569
        %v2571 = vpop.f32.mrf.mxu0
        %v2572 = vpop.f32.mrf.mxu0
        %v2573 = vpop.f32.mrf.mxu0
        %2574 = vdwg.mxu0
        %v2575 = vld [vmem:[%s12] sm:$0x7]
        %v2576 = vlaneseq
        %v2577 = vshrl.u32 %v2576, 7
        %v2578 = vsub.s32 0, %v2577
        %v2579 = vrot.slane %v2575, %v2578
        %v2580 = vmul.f32 %v625, %v2579
        %2581 = vadd.xlane.f32.xlu0 %v2580
        %v2582 = vpop.xlane.xlu0 %2581
        %v2583 = vlaneseq
        %v2584 = vshrl.u32 %v2583, 7
        %v2585 = vsub.s32 1, %v2584
        %v2586 = vrot.slane %v2575, %v2585
        %v2587 = vmul.f32 %v1165, %v2586
        %2588 = vadd.xlane.f32.xlu0 %v2587
        %v2589 = vpop.xlane.xlu0 %2588
        %v2590 = vadd.f32 %v2582, %v2589
        %v2591 = vlaneseq
        %v2592 = vshrl.u32 %v2591, 7
        %v2593 = vsub.s32 2, %v2592
        %v2594 = vrot.slane %v2575, %v2593
        %v2595 = vmul.f32 %v1896, %v2594
        %v2596 = vmul.f32 %v1942, %v2594
        %v2597 = vmul.f32 %v1988, %v2594
        %v2598 = vmul.f32 %v2034, %v2594
        %v2599 = vmul.f32 %v2080, %v2594
        %v2600 = vmul.f32 %v2126, %v2594
        %v2601 = vmul.f32 %v2172, %v2594
        %v2602 = vmul.f32 %v2218, %v2594
        %v2611 = vrot.slane %v2596, 7
        %v2612 = vsel %vm1610, %v2611, %v2595
        %v2613 = vrot.slane %v2597, 6
        %v2614 = vsel %vm1613, %v2613, %v2612
        %v2615 = vrot.slane %v2598, 5
        %v2616 = vsel %vm1616, %v2615, %v2614
        %v2617 = vrot.slane %v2599, 4
        %v2618 = vsel %vm1619, %v2617, %v2616
        %v2619 = vrot.slane %v2600, 3
        %v2620 = vsel %vm1622, %v2619, %v2618
        %v2621 = vrot.slane %v2601, 2
        %v2622 = vsel %vm1625, %v2621, %v2620
        %v2623 = vrot.slane %v2602, 1
        %v2624 = vsel %vm1628, %v2623, %v2622
        %2626 = vadd.xlane.f32.xlu0 %v2624
        %v2627 = vpop.xlane.xlu0 %2626
        %v2628 = vadd.f32 %v2590, %v2627
        %v2629 = vld [vmem:[#allocation4] sm:$0x1]
        %s2630 = vtos %v2629
        %v2631 = vstv %s2630
        %v2632 = vadd.f32 %v2628, %v2631
        %v2633 = vxor.u32 %v2632, 2147483648
        %v2634 = vmul.f32 %v2633, 1.442695
        %v2635 = vpow.pop %v2634
        %v2636 = vadd.f32 %v2635, 1.0
        %v2637 = vrcp.pop %v2636
        %v2638 = vmul.f32 1.0, %v2637
        %v2639 = vmul.f32 %v2638, %v1853
        %v2640 = vsub.f32 1.0, %v2638
        %v2649 = vrot.slane %v2312, 7
        %v2650 = vsel %vm1610, %v2649, %v2269
        %v2651 = vrot.slane %v2355, 6
        %v2652 = vsel %vm1613, %v2651, %v2650
        %v2653 = vrot.slane %v2398, 5
        %v2654 = vsel %vm1616, %v2653, %v2652
        %v2655 = vrot.slane %v2441, 4
        %v2656 = vsel %vm1619, %v2655, %v2654
        %v2657 = vrot.slane %v2484, 3
        %v2658 = vsel %vm1622, %v2657, %v2656
        %v2659 = vrot.slane %v2527, 2
        %v2660 = vsel %vm1625, %v2659, %v2658
        %v2661 = vrot.slane %v2570, 1
        %v2662 = vsel %vm1628, %v2661, %v2660
        %v2664 = vmul.f32 %v2640, %v2662
        %v2665 = vadd.f32 %v2639, %v2664
        %2666 = vst [vmem:[%s610] sm:$0xff] %v2665
        %v2667 = vlaneseq
        %v2668 = vand.u32 %v2667, 127
        %2669 = vmax.xlane.f32.xlu0 %v2665
        %v2670 = vpop.xlane.xlu0 %2669
        %vm2671 = vcmp.eq.f32.partialorder %v2665, %v2670
        %v2672 = vsel %vm2671, %v2668, 128
        %v2673 = vand.u32 %v2672, 65535
        %v2674 = vshra.s32 %v2672, 16
        %v2675 = vcvt.s32.f32 %v2673
        %v2676 = vcvt.s32.f32 %v2674
        %2677 = vmin.xlane.f32.xlu0 %v2676
        %v2678 = vpop.xlane.xlu0 %2677
        %vm2679 = vcmp.eq.f32.partialorder %v2676, %v2678
        %v2680 = vsel %vm2679, %v2675, inf
        %2681 = vmin.xlane.f32.xlu0 %v2680
        %v2682 = vpop.xlane.xlu0 %2681
        %v2683 = vcvt.f32.s32 %v2682
        %v2684 = vcvt.f32.s32 %v2678
        %v2685 = vshll.u32 %v2684, 16
        %v2686 = vadd.s32 %v2685, %v2683
        %vm2687 = vcmp.eq.s32.totalorder %v2668, %v2686
        %v2688 = vsel %vm2687, 1, 0
        %v2689 = vcvt.s32.f32 %v2688
        %v2690 = vpack.c.bf16 %v2689, %v2689
        %v2691 = vld [vmem:[#allocation14] sm:$0xf]
        %v2692 = vld [vmem:[#allocation14 + $0x4] sm:$0xf]
        %v2693 = vld [vmem:[#allocation14 + $0x8] sm:$0xf]
        %v2694 = vld [vmem:[#allocation14 + $0xc] sm:$0xf]
        %v2695 = vld [vmem:[#allocation14 + $0x10] sm:$0xf]
        %v2696 = vld [vmem:[#allocation14 + $0x14] sm:$0xf]
        %v2697 = vld [vmem:[#allocation14 + $0x18] sm:$0xf]
        %v2698 = vld [vmem:[#allocation14 + $0x1c] sm:$0xf]
        %v2699 = vld [vmem:[#allocation14 + $0x20] sm:$0xf]
        %v2700 = vld [vmem:[#allocation14 + $0x24] sm:$0xf]
        %v2701 = vld [vmem:[#allocation14 + $0x28] sm:$0xf]
        %v2702 = vld [vmem:[#allocation14 + $0x2c] sm:$0xf]
        %v2703 = vld [vmem:[#allocation14 + $0x30] sm:$0xf]
        %v2704 = vld [vmem:[#allocation14 + $0x34] sm:$0xf]
        %v2705 = vld [vmem:[#allocation14 + $0x38] sm:$0xf]
        %v2706 = vld [vmem:[#allocation14 + $0x3c] sm:$0xf]
        %v2723 = vunpack.c.l.b16 %v2691
        %v2724 = vunpack.c.l.b16 %v2692
        %v2725 = vunpack.c.l.b16 %v2693
        %v2726 = vunpack.c.l.b16 %v2694
        %v2727 = vunpack.c.l.b16 %v2695
        %v2728 = vunpack.c.l.b16 %v2696
        %v2729 = vunpack.c.l.b16 %v2697
        %v2730 = vunpack.c.l.b16 %v2698
        %v2731 = vunpack.c.l.b16 %v2699
        %v2732 = vunpack.c.l.b16 %v2700
        %v2733 = vunpack.c.l.b16 %v2701
        %v2734 = vunpack.c.l.b16 %v2702
        %v2735 = vunpack.c.l.b16 %v2703
        %v2736 = vunpack.c.l.b16 %v2704
        %v2737 = vunpack.c.l.b16 %v2705
        %v2738 = vunpack.c.l.b16 %v2706
        %v2739 = vpack.c.b16 %v2724, %v2723
        %v2740 = vpack.c.b16 %v2726, %v2725
        %v2741 = vpack.c.b16 %v2728, %v2727
        %v2742 = vpack.c.b16 %v2730, %v2729
        %v2743 = vpack.c.b16 %v2732, %v2731
        %v2744 = vpack.c.b16 %v2734, %v2733
        %v2745 = vpack.c.b16 %v2736, %v2735
        %v2746 = vpack.c.b16 %v2738, %v2737
        %2755 = vmatprep.subr.bf16.mxu0 0
        %2756 = vmatpush1.bf16.msra.mxu0 %v2746
        %2757 = vmatprep.subr.bf16.mxu0 0
        %2758 = vmatpush1.bf16.msra.mxu0 %v2745
        %2759 = vmatprep.subr.bf16.mxu0 0
        %2760 = vmatpush1.bf16.msra.mxu0 %v2744
        %2761 = vmatprep.subr.bf16.mxu0 0
        %2762 = vmatpush1.bf16.msra.mxu0 %v2743
        %2763 = vmatprep.subr.bf16.mxu0 0
        %2764 = vmatpush1.bf16.msra.mxu0 %v2742
        %2765 = vmatprep.subr.bf16.mxu0 0
        %2766 = vmatpush1.bf16.msra.mxu0 %v2741
        %2767 = vmatprep.subr.bf16.mxu0 0
        %2768 = vmatpush1.bf16.msra.mxu0 %v2740
        %2769 = vmatprep.subr.bf16.mxu0 0
        %2770 = vmatpush1.bf16.msra.mxu0 %v2739
        %2771 = vmatprep.subr.bf16.mxu0 0
        %2772 = vmatpush2.bf16.msra.mxu0 0
        %2773 = vmatprep.subr.bf16.mxu0 0
        %2774 = vmatpush2.bf16.msra.mxu0 0
        %2775 = vmatprep.subr.bf16.mxu0 0
        %2776 = vmatpush2.bf16.msra.mxu0 0
        %2777 = vmatprep.subr.bf16.mxu0 0
        %2778 = vmatpush2.bf16.msra.mxu0 0
        %2779 = vmatprep.subr.bf16.mxu0 0
        %2780 = vmatpush2.bf16.msra.mxu0 0
        %2781 = vmatprep.subr.bf16.mxu0 0
        %2782 = vmatpush2.bf16.msra.mxu0 0
        %2783 = vmatprep.subr.bf16.mxu0 0
        %2784 = vmatpush2.bf16.msra.mxu0 0
        %2785 = vmatprep.subr.bf16.mxu0 0
        %2786 = vmatpush2.bf16.msra.mxu0 0
        %2787 = vmatprep.mubr.bf16.mxu0 0
        %2788 = vmatmul.mubr.bf16.gmra.mxu0 %v2690
        %v2789 = vpop.f32.mrf.mxu0
        %v2790 = vadd.f32 0.0, %v2789
        %v2791 = vpop.f32.mrf.mxu0
        %v2792 = vpop.f32.mrf.mxu0
        %v2793 = vpop.f32.mrf.mxu0
        %2794 = vdwg.mxu0
        %2795 = vst [vmem:[#allocation2] sm:$0xff] %v1165
        %2796 = vst [vmem:[#allocation3] sm:$0xff] %v2790
        %s2797 = sand.u32 %s358, 1
        %s2798 = scalar_lea.sflag [#allocation7], %s2797
        %s2799 = sand.u32 %s358, 1
        %s2800 = smul.addr %s2799, 8
        %s2801 = scalar_lea.vmem [#allocation20], %s2800
        // Predicated region
        $region121: #{tpu_custom_call.1} parent=75 // pred_check
          %p2802 = pneg %p368
        $region122: #{tpu_custom_call.1} parent=75 // pred_check_branch
          %2804 = sbr.rel (%p2802) target = $region124
        $region123: #{tpu_custom_call.1} parent=75 // pred_region
          %s2806 = ssub.s32 128, 128
          %2807 = vsyncadd %s2798, %s2806
          %s2808 = smul.addr %s41, 4
          %s2809 = sadd.s32 %s42, %s2808
          %s2810 = smul.addr %s2809, 128
          %s2811 = scalar_lea.hbm %s14, %s2810
          %s2813 = sshll.u32 %s2801, 4
          %s2814 = int_to_ptr.vmem [resolvable:$true] %s2813
          %2816 = dma.vmem_to_hbm [thread:$0]  %s2814, 128, %s2811, %s2798
        $region124: #{tpu_custom_call.1} parent=75 // pred_fallthru
          _
      $region76: #{tpu_custom_call.1} parent=5 // pred_fallthru
        _
      %p2817 = scmp.le.s32.totalorder 2, %s32
      // Predicated region
      $region125: #{tpu_custom_call.1} parent=5 // pred_check
        %p2818 = pneg %p2817
      $region126: #{tpu_custom_call.1} parent=5 // pred_check_branch
        %2820 = sbr.rel (%p2818) target = $region128
      $region127: #{tpu_custom_call.1} parent=5 // pred_region
        %s2821 = ssub.s32 %s32, 2
        // Predicated region
        $region129: #{tpu_custom_call.1} parent=127 // pred_check
          %p2822 = pneg %p374
        $region130: #{tpu_custom_call.1} parent=127 // pred_check_branch
          %2824 = sbr.rel (%p2822) target = $region132
        $region131: #{tpu_custom_call.1} parent=127 // pred_region
          %s2825 = sand.u32 %s359, 1
          %s2826 = scalar_lea.sflag [#allocation7], %s2825
          %s2827 = sand.u32 %s359, 1
          %s2828 = smul.addr %s2827, 8
          %s2829 = scalar_lea.vmem [#allocation20], %s2828
          %2830 = dma.done %s2826, 128
        $region132: #{tpu_custom_call.1} parent=127 // pred_fallthru
          _
      $region128: #{tpu_custom_call.1} parent=5 // pred_fallthru
        _
    $region6: #{tpu_custom_call.1} parent=1 // loop_footer
      %s36 = sadd.s32 1, %s32
    $region7: #{tpu_custom_call.1} parent=1 // loop_footer_branch
      %31 = sbr.rel target = $region3
    $region8: #{tpu_custom_call.1} parent=1 // loop_exit
      _
    %2831 = vsyncpa [#allocation6], 1
    %s2832 = scalar_lea.sflag [#allocation6], 1
    %2833 = vsyncpa %s2832, 1
    %2834 = vsyncpa [#allocation9], 1
    %2835 = vsyncpa [#allocation12], 1
    %2836 = vsyncpa [#allocation15], 1
    %2837 = vsyncpa [#allocation18], 1
    %2838 = vsyncpa [#allocation7], 1
    %s2839 = scalar_lea.sflag [#allocation7], 1
    %2840 = vsyncpa %s2839, 1

</llo_original>
